<compile_context>
chip_gen: v7x
topology: tpu7x:2x2x1
jax: 0.10.0
libtpu: 0.0.40
codegen_flags: <defaults>
</compile_context>

<pallas_src>
import functools
import math

import jax
import jax.numpy as jnp
from jax.experimental import pallas as pl
from jax.experimental.pallas import tpu as pltpu

LANE = 128


def _round_up(x, m):
    return -(-x // m) * m


@functools.lru_cache(maxsize=None)
def _pick_vmem_limit():
    """Scoped VMEM budget per generation (v5e/v6e: ~96 MiB of 128 MiB physical,
    v7x: ~48 MiB of 64 MiB physical).  Falls back to 48 MiB if the query fails."""
    try:
        cap = int(pltpu.get_tpu_info().vmem_capacity_bytes)
    except Exception:
        cap = 64 * 1024 * 1024
    return max(32 * 1024 * 1024, min(96 * 1024 * 1024, (cap * 3) // 4))


# ---------------------------------------------------------------------------
# Graph operator: dense scaled Chebyshev operator  L_hat = -D^{-1/2} A D^{-1/2}
# (PyG ChebConv "sym" norm with lambda_max = 2: self-loops removed, degree over
#  edge_index[0] (source), aggregation at edge_index[1] (target)).
# Built directly at the padded size / final dtype (no extra O(N^2) pad copy).
# ---------------------------------------------------------------------------
def build_cheb_operator(edge_index, edge_weight, num_nodes, *, num_rows=None,
                        dtype=jnp.float32):
    if num_rows is None:
        num_rows = num_nodes
    src, dst = edge_index[0], edge_index[1]
    ew = jnp.where(src == dst, 0.0, edge_weight.astype(jnp.float32))
    deg = jnp.zeros((num_nodes,), jnp.float32).at[src].add(ew)
    dinv = jnp.where(deg > 0.0, jax.lax.rsqrt(jnp.maximum(deg, 1e-12)), 0.0)
    vals = (-dinv[src] * ew * dinv[dst]).astype(dtype)
    return jnp.zeros((num_rows, num_rows), dtype).at[dst, src].add(vals)


# ---------------------------------------------------------------------------
# Kernel 1: one Chebyshev recurrence step   out = coef * (L_hat @ Z) - T_prev
# ---------------------------------------------------------------------------
def _make_cheb_kernel(coef, has_prev, z_resident, red_tile):
    def kernel(*refs):
        if has_prev:
            l_ref, z_ref, tprev_ref, out_ref, acc_ref = refs
        else:
            l_ref, z_ref, out_ref, acc_ref = refs

        kk = pl.program_id(1)

        @pl.when(kk == 0)
        def _():
            acc_ref[...] = jnp.zeros_like(acc_ref)

        if z_resident:
            off = pl.multiple_of(kk * red_tile, red_tile)
            z_blk = z_ref[pl.ds(off, red_tile), :]
        else:
            z_blk = z_ref[...]

        # bf16 x bf16 -> f32 MXU path (f32 carries, cast only at the dot).
        acc_ref[...] += jnp.dot(l_ref[...], z_blk.astype(l_ref.dtype),
                                preferred_element_type=jnp.float32)

        @pl.when(kk == pl.num_programs(1) - 1)
        def _():
            r = acc_ref[...]
            if coef != 1.0:
                r = coef * r
            if has_prev:
                r = r - tprev_ref[...]
            out_ref[...] = r.astype(out_ref.dtype)

    return kernel


def _cheb_step(l_op, z, t_prev, coef, *, row_tile, red_tile, z_resident,
               vmem_limit):
    npad = l_op.shape[0]
    cp = z.shape[1]
    grid = (npad // row_tile, npad // red_tile)
    has_prev = t_prev is not None

    if z_resident:
        # Whole previous-T resident in VMEM: constant index map -> single DMA.
        z_spec = pl.BlockSpec((npad, cp), lambda i, k: (0, 0))
    else:
        z_spec = pl.BlockSpec((red_tile, cp), lambda i, k: (k, 0))

    in_specs = [pl.BlockSpec((row_tile, red_tile), lambda i, k: (i, k)), z_spec]
    operands = [l_op, z]
    if has_prev:
        in_specs.append(pl.BlockSpec((row_tile, cp), lambda i, k: (i, 0)))
        operands.append(t_prev)

    return pl.pallas_call(
        _make_cheb_kernel(coef, has_prev, z_resident, red_tile),
        out_shape=jax.ShapeDtypeStruct((npad, cp), jnp.float32),
        grid_spec=pltpu.PrefetchScalarGridSpec(
            num_scalar_prefetch=0,
            grid=grid,
            in_specs=in_specs,
            out_specs=pl.BlockSpec((row_tile, cp), lambda i, k: (i, 0)),
            scratch_shapes=[pltpu.VMEM((row_tile, cp), jnp.float32)],
        ),
        compiler_params=pltpu.CompilerParams(
            dimension_semantics=("parallel", "arbitrary"),
            vmem_limit_bytes=vmem_limit),
    )(*operands)


# ---------------------------------------------------------------------------
# Kernel 2: fused LSTM gates + ReLU + Linear, one row-tile per grid step
# ---------------------------------------------------------------------------
def _make_gate_kernel(hc):
    def kernel(t_ref, c_ref, w_ref, b_ref, peep_ref, wo_ref, bo_ref,
               y_ref, hcout_ref):
        def sigmoid(v):  # stable, tanh lands on the EUP slot
            return 0.5 * jnp.tanh(0.5 * v) + 0.5

        # Single deep contraction: all 4 gates x K hops x {x,h} weights stacked.
        gates = jnp.dot(t_ref[...], w_ref[...],
                        preferred_element_type=jnp.float32) + b_ref[...]

        c_prev = c_ref[...].astype(jnp.float32)
        wci = peep_ref[0:1, :]
        wcf = peep_ref[1:2, :]
        wco = peep_ref[2:3, :]

        i_g = sigmoid(gates[:, 0 * hc:1 * hc] + wci * c_prev)
        f_g = sigmoid(gates[:, 1 * hc:2 * hc] + wcf * c_prev)
        g_g = jnp.tanh(gates[:, 2 * hc:3 * hc])
        c_new = f_g * c_prev + i_g * g_g
        o_g = sigmoid(gates[:, 3 * hc:4 * hc] + wco * c_new)
        h_new = o_g * jnp.tanh(c_new)

        # Lane-dense packed [h_new | c_new | 0] store (one unmasked 128-lane vst).
        tm = h_new.shape[0]
        pad = hcout_ref.shape[1] - 2 * hc
        pieces = [h_new, c_new]
        if pad:
            pieces.append(jnp.zeros((tm, pad), jnp.float32))
        hcout_ref[...] = jnp.concatenate(pieces, axis=1).astype(hcout_ref.dtype)

        # ReLU + Linear against a 128-lane-padded W_out (lane-dense y store).
        y = jnp.dot(jnp.maximum(h_new, 0.0), wo_ref[...],
                    preferred_element_type=jnp.float32) + bo_ref[...]
        y_ref[...] = y.astype(y_ref.dtype)

    return kernel


def _gate_call(t_cat, c_pad, w_cat, b_all, w_peep, w_out_pad, b_out_pad, *,
               row_tile, hc, hc_pack, vmem_limit):
    npad, kcp = t_cat.shape
    out_pad = w_out_pad.shape[1]
    grid = (npad // row_tile,)

    def full_spec(arr):
        return pl.BlockSpec(arr.shape, lambda i: (0, 0))

    in_specs = [pl.BlockSpec((row_tile, kcp), lambda i: (i, 0)),
                pl.BlockSpec((row_tile, hc), lambda i: (i, 0)),
                full_spec(w_cat), full_spec(b_all), full_spec(w_peep),
                full_spec(w_out_pad), full_spec(b_out_pad)]
    out_specs = (pl.BlockSpec((row_tile, out_pad), lambda i: (i, 0)),
                 pl.BlockSpec((row_tile, hc_pack), lambda i: (i, 0)))
    out_shape = (jax.ShapeDtypeStruct((npad, out_pad), jnp.float32),
                 jax.ShapeDtypeStruct((npad, hc_pack), jnp.float32))

    return pl.pallas_call(
        _make_gate_kernel(hc),
        out_shape=out_shape,
        grid_spec=pltpu.PrefetchScalarGridSpec(
            num_scalar_prefetch=0,
            grid=grid,
            in_specs=in_specs,
            out_specs=out_specs,
        ),
        compiler_params=pltpu.CompilerParams(
            dimension_semantics=("parallel",),
            vmem_limit_bytes=vmem_limit),
    )(t_cat, c_pad, w_cat, b_all, w_peep, w_out_pad, b_out_pad)


# ---------------------------------------------------------------------------
# Full forward:  (Linear(ReLU(h0)), h0, c0)
# ---------------------------------------------------------------------------
@functools.partial(jax.jit, static_argnames=("k_hops", "operator_dtype",
                                              "row_tile", "red_tile"))
def recurrent_gconv_lstm_forward(x, edge_index, edge_weight, h, c, params,
                                 *, k_hops=4, operator_dtype=jnp.bfloat16,
                                 row_tile=None, red_tile=None):
    n, cin = x.shape
    hc = h.shape[1]
    out_ch = params["w_out"].shape[1]

    # 256 tiles hit ~most of the HBM roofline; 512 for bigger graphs.  Keep
    # >= 2 row tiles where possible so the parallel axis shards on v7x's 2 TCs.
    if row_tile is None:
        row_tile = 512 if n >= 2048 else 256
    if red_tile is None:
        red_tile = row_tile

    vmem_limit = _pick_vmem_limit()

    tile = math.lcm(row_tile, red_tile)
    npad = _round_up(n, tile)
    cp = _round_up(cin + hc, LANE)          # joint [X | H | 0] feature block
    out_pad = _round_up(out_ch, LANE)
    hc_pack = _round_up(2 * hc, LANE)       # packed [h | c | 0] output block

    # bf16 operator built directly at the padded size (no extra O(N^2) copy).
    l_op = build_cheb_operator(edge_index, edge_weight, n,
                               num_rows=npad, dtype=operator_dtype)

    t0 = (jnp.zeros((npad, cp), jnp.float32)
          .at[:n, :cin].set(x.astype(jnp.float32))
          .at[:n, cin:cin + hc].set(h.astype(jnp.float32)))
    c_pad = jnp.zeros((npad, hc), jnp.float32).at[:n, :].set(c.astype(jnp.float32))

    # Keep whole previous-T resident in VMEM (double-buffered) when it fits the
    # per-generation budget; otherwise fall back to streaming reduction tiles.
    z_resident = (2 * npad * cp * 4) <= min(16 * 1024 * 1024, vmem_limit // 3)

    # Chebyshev recurrence: T_0 = [X|H], T_1 = L T_0, T_k = 2 L T_{k-1} - T_{k-2}
    t_list = [t0]
    for k in range(1, k_hops):
        t_prev = None if k == 1 else t_list[k - 2]     # k=1 specialized
        coef = 1.0 if k == 1 else 2.0
        t_list.append(_cheb_step(l_op, t_list[k - 1], t_prev, coef,
                                 row_tile=row_tile, red_tile=red_tile,
                                 z_resident=z_resident, vmem_limit=vmem_limit))

    # Lane-concatenated hop tensor -> one deep contraction in the gate kernel.
    t_cat = jnp.concatenate(t_list, axis=1) if k_hops > 1 else t_list[0]

    # Stack all ChebConv weights: (K*cp, 4*hc), gate order [i, f, c, o].
    w_all = jnp.zeros((k_hops, cp, 4 * hc), jnp.float32)
    for g in range(4):
        w_all = w_all.at[:, :cin, g * hc:(g + 1) * hc].set(params["theta_x"][g])
        w_all = w_all.at[:, cin:cin + hc, g * hc:(g + 1) * hc].set(params["theta_h"][g])
    w_cat = w_all.reshape(k_hops * cp, 4 * hc)
    b_all = (params["b_conv_x"] + params["b_conv_h"]
             + params["b_gate"]).reshape(1, 4 * hc)

    w_out_pad = jnp.zeros((hc, out_pad), jnp.float32).at[:, :out_ch].set(params["w_out"])
    b_out_pad = jnp.zeros((1, out_pad), jnp.float32).at[:, :out_ch].set(
        params["b_out"].reshape(1, out_ch))

    y_pad, hcout = _gate_call(t_cat, c_pad, w_cat, b_all, params["w_peep"],
                              w_out_pad, b_out_pad,
                              row_tile=row_tile, hc=hc, hc_pack=hc_pack,
                              vmem_limit=vmem_limit)

    return y_pad[:n, :out_ch], hcout[:n, :hc], hcout[:n, hc:2 * hc]


# ---------------------------------------------------------------------------
# Pure-JAX reference (same math, no Pallas).  operator_dtype lets the reference
# mirror the kernel's bf16-operator numerics while keeping f32 carries.
# ---------------------------------------------------------------------------
def reference_forward(x, edge_index, edge_weight, h, c, params, k_hops=4,
                      operator_dtype=jnp.float32):
    n = x.shape[0]
    l_hat = build_cheb_operator(edge_index, edge_weight, n, dtype=operator_dtype)
    hi = jax.lax.Precision.HIGHEST

    def apply_op(m):
        return jnp.dot(l_hat, m.astype(operator_dtype),
                       preferred_element_type=jnp.float32, precision=hi)

    def cheb_conv(feat, theta, bias):
        t_km2 = feat.astype(jnp.float32)
        out = jnp.dot(t_km2, theta[0], precision=hi)
        if k_hops > 1:
            t_km1 = apply_op(t_km2)
            out = out + jnp.dot(t_km1, theta[1], precision=hi)
            for k in range(2, k_hops):
                t_k = 2.0 * apply_op(t_km1) - t_km2
                out = out + jnp.dot(t_k, theta[k], precision=hi)
                t_km2, t_km1 = t_km1, t_k
        return out + bias

    thx, thh = params["theta_x"], params["theta_h"]
    bcx, bch, bg = params["b_conv_x"], params["b_conv_h"], params["b_gate"]
    wp = params["w_peep"]

    def pre(g):
        return cheb_conv(x, thx[g], bcx[g]) + cheb_conv(h, thh[g], bch[g]) + bg[g]

    i_g = jax.nn.sigmoid(pre(0) + wp[0] * c)
    f_g = jax.nn.sigmoid(pre(1) + wp[1] * c)
    g_g = jnp.tanh(pre(2))
    c_new = f_g * c + i_g * g_g
    o_g = jax.nn.sigmoid(pre(3) + wp[2] * c_new)
    h_new = o_g * jnp.tanh(c_new)
    y = jnp.dot(jnp.maximum(h_new, 0.0), params["w_out"],
                precision=hi) + params["b_out"]
    return y, h_new, c_new


if __name__ == "__main__":
    key = jax.random.PRNGKey(0)
    keys = jax.random.split(key, 13)

    num_nodes = 600          # pads to 768 -> 3x3 cheb grid (pipelining + padding)
    num_edges = 1800
    in_channels = 8
    hidden_channels = 32     # 4 gates * 32 = 128 -> one lane-dense gate block
    out_channels = 4
    k_hops = 4               # module default k=4

    x = jax.random.normal(keys[0], (num_nodes, in_channels), jnp.float32)
    h = jax.random.normal(keys[1], (num_nodes, hidden_channels), jnp.float32)
    c = jax.random.normal(keys[2], (num_nodes, hidden_channels), jnp.float32)
    edge_index = jax.random.randint(keys[3], (2, num_edges), 0, num_nodes, jnp.int32)
    edge_weight = jax.random.uniform(keys[4], (num_edges,), jnp.float32, 0.5, 1.5)

    params = {
        # gate order [i, f, c, o]; weights stored (in, out)
        "theta_x": 0.1 * jax.random.normal(keys[5], (4, k_hops, in_channels, hidden_channels), jnp.float32),
        "theta_h": 0.1 * jax.random.normal(keys[6], (4, k_hops, hidden_channels, hidden_channels), jnp.float32),
        "b_conv_x": 0.1 * jax.random.normal(keys[7], (4, hidden_channels), jnp.float32),
        "b_conv_h": 0.1 * jax.random.normal(keys[8], (4, hidden_channels), jnp.float32),
        "b_gate":   0.1 * jax.random.normal(keys[9], (4, hidden_channels), jnp.float32),
        "w_peep":   0.1 * jax.random.normal(keys[10], (3, hidden_channels), jnp.float32),  # [w_ci, w_cf, w_co]
        "w_out":    0.1 * jax.random.normal(keys[11], (hidden_channels, out_channels), jnp.float32),
        "b_out":    0.1 * jax.random.normal(keys[12], (out_channels,), jnp.float32),
    }

    # Check both the fast bf16-operator path (default) and the f32 fallback,
    # each against a numerics-matched reference (tight tolerance in both cases;
    # remaining differences are MXU vs XLA accumulation order only).
    for op_dtype in (jnp.bfloat16, jnp.float32):
        y, h0, c0 = recurrent_gconv_lstm_forward(
            x, edge_index, edge_weight, h, c, params,
            k_hops=k_hops, operator_dtype=op_dtype)
        jax.block_until_ready((y, h0, c0))

        y_ref, h0_ref, c0_ref = reference_forward(
            x, edge_index, edge_weight, h, c, params, k_hops=k_hops,
            operator_dtype=op_dtype)

        for got, want, name in ((y, y_ref, "y"), (h0, h0_ref, "h0"), (c0, c0_ref, "c0")):
            assert got.shape == want.shape, (name, got.shape, want.shape)
            err = float(jnp.max(jnp.abs(got - want)))
            assert jnp.allclose(got, want, atol=2e-3, rtol=2e-3), (name, str(op_dtype), err)

    print("KERNEL_OK")
</pallas_src>

<mosaic_0001>
module attributes {stable_mosaic.version = 11 : i64} {
  func.func @kernel(%arg0: i32, %arg1: i32, %arg2: memref<256x256xbf16, #tpu.memory_space<vmem>>, %arg3: memref<768x128xf32, #tpu.memory_space<vmem>>, %arg4: memref<256x128xf32, #tpu.memory_space<vmem>>, %arg5: memref<256x128xf32, #tpu.memory_space<vmem>>) attributes {dimension_semantics = [#tpu.dimension_semantics<parallel>, #tpu.dimension_semantics<arbitrary>], iteration_bounds = array<i64: 3, 3>, scalar_prefetch = 0 : i64, scratch_operands = 1 : i64, tpu.core_type = #tpu.core_type<tc>, window_params = [{transform_indices = @transform_0, window_bounds = array<i64: 256, 256>}, {pipeline_mode = #tpu.pipeline_mode<synchronous>, transform_indices = @transform_1, window_bounds = array<i64: 768, 128>}, {transform_indices = @transform_2, window_bounds = array<i64: 256, 128>}]} {
    %c0_i32 = arith.constant 0 : i32
    %0 = arith.cmpi eq, %arg1, %c0_i32 : i32
    %1 = arith.extui %0 : i1 to i32
    %c0_i32_0 = arith.constant 0 : i32
    %2 = arith.cmpi ne, %1, %c0_i32_0 : i32
    scf.if %2 {
      %cst_8 = arith.constant 0.000000e+00 : f32
      %16 = vector.broadcast %cst_8 : f32 to vector<256x128xf32>
      %c0_9 = arith.constant 0 : index
      %c0_10 = arith.constant 0 : index
      %17 = vector.load %arg5[%c0_9, %c0_10] : memref<256x128xf32, #tpu.memory_space<vmem>>, vector<256x128xf32>
      tpu.vector_store %arg5[%c0_9, %c0_10], %16 {strides = array<i32>} : memref<256x128xf32, #tpu.memory_space<vmem>>, vector<256x128xf32>,
    } else {
    }
    %c256_i32 = arith.constant 256 : i32
    %3 = arith.muli %arg1, %c256_i32 : i32
    %4 = tpu.assume_multiple %3, 256 : i32
    %5 = arith.index_cast %4 : i32 to index
    %c0 = arith.constant 0 : index
    %6 = vector.load %arg3[%5, %c0] : memref<768x128xf32, #tpu.memory_space<vmem>>, vector<256x128xf32>
    %c0_1 = arith.constant 0 : index
    %c0_2 = arith.constant 0 : index
    %7 = vector.load %arg5[%c0_1, %c0_2] : memref<256x128xf32, #tpu.memory_space<vmem>>, vector<256x128xf32>
    %c0_3 = arith.constant 0 : index
    %c0_4 = arith.constant 0 : index
    %8 = vector.load %arg2[%c0_3, %c0_4] : memref<256x256xbf16, #tpu.memory_space<vmem>>, vector<256x256xbf16>
    %9 = arith.truncf %6 : vector<256x128xf32> to vector<256x128xbf16>
    %cst = arith.constant dense<0.000000e+00> : vector<256x128xf32>
    %10 = tpu.matmul %8, %9, %cst {dimension_numbers = #tpu.dot_dimension_numbers<[1], [0], [0], [1], [0, 0, 1, 1], [], []>} : vector<256x256xbf16>, vector<256x128xbf16>, vector<256x128xf32> -> vector<256x128xf32>
    %11 = arith.addf %7, %10 : vector<256x128xf32>
    %c0_5 = arith.constant 0 : index
    %c0_6 = arith.constant 0 : index
    %12 = vector.load %arg5[%c0_5, %c0_6] : memref<256x128xf32, #tpu.memory_space<vmem>>, vector<256x128xf32>
    tpu.vector_store %arg5[%c0_5, %c0_6], %11 {strides = array<i32>} : memref<256x128xf32, #tpu.memory_space<vmem>>, vector<256x128xf32>,
    %c2_i32 = arith.constant 2 : i32
    %13 = arith.cmpi eq, %arg1, %c2_i32 : i32
    %14 = arith.extui %13 : i1 to i32
    %c0_i32_7 = arith.constant 0 : i32
    %15 = arith.cmpi ne, %14, %c0_i32_7 : i32
    scf.if %15 {
      %c0_8 = arith.constant 0 : index
      %c0_9 = arith.constant 0 : index
      %16 = vector.load %arg5[%c0_8, %c0_9] : memref<256x128xf32, #tpu.memory_space<vmem>>, vector<256x128xf32>
      %c0_10 = arith.constant 0 : index
      %c0_11 = arith.constant 0 : index
      %17 = vector.load %arg4[%c0_10, %c0_11] : memref<256x128xf32, #tpu.memory_space<vmem>>, vector<256x128xf32>
      tpu.vector_store %arg4[%c0_10, %c0_11], %16 {strides = array<i32>} : memref<256x128xf32, #tpu.memory_space<vmem>>, vector<256x128xf32>,
    } else {
    }
    return
  }
  func.func @transform_0(%arg0: i32, %arg1: i32) -> (i32, i32) {
    %c0_i32 = arith.constant 0 : i32
    return %arg0, %arg1 : i32, i32
  }
  func.func @transform_1(%arg0: i32, %arg1: i32) -> (i32, i32) {
    %c0_i32 = arith.constant 0 : i32
    %c0_i32_0 = arith.constant 0 : i32
    %c0_i32_1 = arith.constant 0 : i32
    return %c0_i32, %c0_i32_0 : i32, i32
  }
  func.func @transform_2(%arg0: i32, %arg1: i32) -> (i32, i32) {
    %c0_i32 = arith.constant 0 : i32
    %c0_i32_0 = arith.constant 0 : i32
    return %arg0, %c0_i32 : i32, i32
  }
}

module attributes {stable_mosaic.version = 11 : i64} {
  func.func @kernel(%arg0: i32, %arg1: i32, %arg2: memref<256x256xbf16, #tpu.memory_space<vmem>>, %arg3: memref<768x128xf32, #tpu.memory_space<vmem>>, %arg4: memref<256x128xf32, #tpu.memory_space<vmem>>, %arg5: memref<256x128xf32, #tpu.memory_space<vmem>>, %arg6: memref<256x128xf32, #tpu.memory_space<vmem>>) attributes {dimension_semantics = [#tpu.dimension_semantics<parallel>, #tpu.dimension_semantics<arbitrary>], iteration_bounds = array<i64: 3, 3>, scalar_prefetch = 0 : i64, scratch_operands = 1 : i64, tpu.core_type = #tpu.core_type<tc>, window_params = [{transform_indices = @transform_0, window_bounds = array<i64: 256, 256>}, {pipeline_mode = #tpu.pipeline_mode<synchronous>, transform_indices = @transform_1, window_bounds = array<i64: 768, 128>}, {transform_indices = @transform_2, window_bounds = array<i64: 256, 128>}, {transform_indices = @transform_3, window_bounds = array<i64: 256, 128>}]} {
    %c0_i32 = arith.constant 0 : i32
    %0 = arith.cmpi eq, %arg1, %c0_i32 : i32
    %1 = arith.extui %0 : i1 to i32
    %c0_i32_0 = arith.constant 0 : i32
    %2 = arith.cmpi ne, %1, %c0_i32_0 : i32
    scf.if %2 {
      %cst_8 = arith.constant 0.000000e+00 : f32
      %16 = vector.broadcast %cst_8 : f32 to vector<256x128xf32>
      %c0_9 = arith.constant 0 : index
      %c0_10 = arith.constant 0 : index
      %17 = vector.load %arg6[%c0_9, %c0_10] : memref<256x128xf32, #tpu.memory_space<vmem>>, vector<256x128xf32>
      tpu.vector_store %arg6[%c0_9, %c0_10], %16 {strides = array<i32>} : memref<256x128xf32, #tpu.memory_space<vmem>>, vector<256x128xf32>,
    } else {
    }
    %c256_i32 = arith.constant 256 : i32
    %3 = arith.muli %arg1, %c256_i32 : i32
    %4 = tpu.assume_multiple %3, 256 : i32
    %5 = arith.index_cast %4 : i32 to index
    %c0 = arith.constant 0 : index
    %6 = vector.load %arg3[%5, %c0] : memref<768x128xf32, #tpu.memory_space<vmem>>, vector<256x128xf32>
    %c0_1 = arith.constant 0 : index
    %c0_2 = arith.constant 0 : index
    %7 = vector.load %arg6[%c0_1, %c0_2] : memref<256x128xf32, #tpu.memory_space<vmem>>, vector<256x128xf32>
    %c0_3 = arith.constant 0 : index
    %c0_4 = arith.constant 0 : index
    %8 = vector.load %arg2[%c0_3, %c0_4] : memref<256x256xbf16, #tpu.memory_space<vmem>>, vector<256x256xbf16>
    %9 = arith.truncf %6 : vector<256x128xf32> to vector<256x128xbf16>
    %cst = arith.constant dense<0.000000e+00> : vector<256x128xf32>
    %10 = tpu.matmul %8, %9, %cst {dimension_numbers = #tpu.dot_dimension_numbers<[1], [0], [0], [1], [0, 0, 1, 1], [], []>} : vector<256x256xbf16>, vector<256x128xbf16>, vector<256x128xf32> -> vector<256x128xf32>
    %11 = arith.addf %7, %10 : vector<256x128xf32>
    %c0_5 = arith.constant 0 : index
    %c0_6 = arith.constant 0 : index
    %12 = vector.load %arg6[%c0_5, %c0_6] : memref<256x128xf32, #tpu.memory_space<vmem>>, vector<256x128xf32>
    tpu.vector_store %arg6[%c0_5, %c0_6], %11 {strides = array<i32>} : memref<256x128xf32, #tpu.memory_space<vmem>>, vector<256x128xf32>,
    %c2_i32 = arith.constant 2 : i32
    %13 = arith.cmpi eq, %arg1, %c2_i32 : i32
    %14 = arith.extui %13 : i1 to i32
    %c0_i32_7 = arith.constant 0 : i32
    %15 = arith.cmpi ne, %14, %c0_i32_7 : i32
    scf.if %15 {
      %c0_8 = arith.constant 0 : index
      %c0_9 = arith.constant 0 : index
      %16 = vector.load %arg6[%c0_8, %c0_9] : memref<256x128xf32, #tpu.memory_space<vmem>>, vector<256x128xf32>
      %cst_10 = arith.constant 2.000000e+00 : f32
      %17 = vector.broadcast %cst_10 : f32 to vector<256x128xf32>
      %18 = arith.mulf %17, %16 : vector<256x128xf32>
      %c0_11 = arith.constant 0 : index
      %c0_12 = arith.constant 0 : index
      %19 = vector.load %arg4[%c0_11, %c0_12] : memref<256x128xf32, #tpu.memory_space<vmem>>, vector<256x128xf32>
      %20 = arith.subf %18, %19 : vector<256x128xf32>
      %c0_13 = arith.constant 0 : index
      %c0_14 = arith.constant 0 : index
      %21 = vector.load %arg5[%c0_13, %c0_14] : memref<256x128xf32, #tpu.memory_space<vmem>>, vector<256x128xf32>
      tpu.vector_store %arg5[%c0_13, %c0_14], %20 {strides = array<i32>} : memref<256x128xf32, #tpu.memory_space<vmem>>, vector<256x128xf32>,
    } else {
    }
    return
  }
  func.func @transform_0(%arg0: i32, %arg1: i32) -> (i32, i32) {
    %c0_i32 = arith.constant 0 : i32
    return %arg0, %arg1 : i32, i32
  }
  func.func @transform_1(%arg0: i32, %arg1: i32) -> (i32, i32) {
    %c0_i32 = arith.constant 0 : i32
    %c0_i32_0 = arith.constant 0 : i32
    %c0_i32_1 = arith.constant 0 : i32
    return %c0_i32, %c0_i32_0 : i32, i32
  }
  func.func @transform_2(%arg0: i32, %arg1: i32) -> (i32, i32) {
    %c0_i32 = arith.constant 0 : i32
    %c0_i32_0 = arith.constant 0 : i32
    return %arg0, %c0_i32 : i32, i32
  }
  func.func @transform_3(%arg0: i32, %arg1: i32) -> (i32, i32) {
    %c0_i32 = arith.constant 0 : i32
    %c0_i32_0 = arith.constant 0 : i32
    return %arg0, %c0_i32 : i32, i32
  }
}

module attributes {stable_mosaic.version = 11 : i64} {
  func.func @kernel(%arg0: i32, %arg1: memref<256x512xf32, #tpu.memory_space<vmem>>, %arg2: memref<256x32xf32, #tpu.memory_space<vmem>>, %arg3: memref<512x128xf32, #tpu.memory_space<vmem>>, %arg4: memref<1x128xf32, #tpu.memory_space<vmem>>, %arg5: memref<3x32xf32, #tpu.memory_space<vmem>>, %arg6: memref<32x128xf32, #tpu.memory_space<vmem>>, %arg7: memref<1x128xf32, #tpu.memory_space<vmem>>, %arg8: memref<256x128xf32, #tpu.memory_space<vmem>>, %arg9: memref<256x128xf32, #tpu.memory_space<vmem>>) attributes {dimension_semantics = [#tpu.dimension_semantics<parallel>], iteration_bounds = array<i64: 3>, scalar_prefetch = 0 : i64, scratch_operands = 0 : i64, tpu.core_type = #tpu.core_type<tc>, window_params = [{transform_indices = @transform_0, window_bounds = array<i64: 256, 512>}, {transform_indices = @transform_1, window_bounds = array<i64: 256, 32>}, {pipeline_mode = #tpu.pipeline_mode<synchronous>, transform_indices = @transform_2, window_bounds = array<i64: 512, 128>}, {pipeline_mode = #tpu.pipeline_mode<synchronous>, transform_indices = @transform_3, window_bounds = array<i64: 1, 128>}, {pipeline_mode = #tpu.pipeline_mode<synchronous>, transform_indices = @transform_4, window_bounds = array<i64: 3, 32>}, {pipeline_mode = #tpu.pipeline_mode<synchronous>, transform_indices = @transform_5, window_bounds = array<i64: 32, 128>}, {pipeline_mode = #tpu.pipeline_mode<synchronous>, transform_indices = @transform_6, window_bounds = array<i64: 1, 128>}, {transform_indices = @transform_7, window_bounds = array<i64: 256, 128>}, {transform_indices = @transform_8, window_bounds = array<i64: 256, 128>}]} {
    %c0 = arith.constant 0 : index
    %c0_0 = arith.constant 0 : index
    %0 = vector.load %arg1[%c0, %c0_0] : memref<256x512xf32, #tpu.memory_space<vmem>>, vector<256x512xf32>
    %c0_1 = arith.constant 0 : index
    %c0_2 = arith.constant 0 : index
    %1 = vector.load %arg3[%c0_1, %c0_2] : memref<512x128xf32, #tpu.memory_space<vmem>>, vector<512x128xf32>
    %cst = arith.constant dense<0.000000e+00> : vector<256x128xf32>
    %2 = tpu.matmul %0, %1, %cst {dimension_numbers = #tpu.dot_dimension_numbers<[1], [0], [0], [1], [0, 0, 1, 1], [], []>} : vector<256x512xf32>, vector<512x128xf32>, vector<256x128xf32> -> vector<256x128xf32>
    %c0_3 = arith.constant 0 : index
    %c0_4 = arith.constant 0 : index
    %3 = vector.load %arg4[%c0_3, %c0_4] : memref<1x128xf32, #tpu.memory_space<vmem>>, vector<1x128xf32>
    %4 = vector.broadcast %3 : vector<1x128xf32> to vector<256x128xf32>
    %5 = arith.addf %2, %4 : vector<256x128xf32>
    %c0_5 = arith.constant 0 : index
    %c0_6 = arith.constant 0 : index
    %6 = vector.load %arg2[%c0_5, %c0_6] : memref<256x32xf32, #tpu.memory_space<vmem>>, vector<256x32xf32>
    %c0_7 = arith.constant 0 : index
    %c0_8 = arith.constant 0 : index
    %7 = vector.load %arg5[%c0_7, %c0_8] : memref<3x32xf32, #tpu.memory_space<vmem>>, vector<1x32xf32>
    %c1 = arith.constant 1 : index
    %c0_9 = arith.constant 0 : index
    %8 = vector.load %arg5[%c1, %c0_9] : memref<3x32xf32, #tpu.memory_space<vmem>>, vector<1x32xf32>
    %c2 = arith.constant 2 : index
    %c0_10 = arith.constant 0 : index
    %9 = vector.load %arg5[%c2, %c0_10] : memref<3x32xf32, #tpu.memory_space<vmem>>, vector<1x32xf32>
    %10 = vector.extract_strided_slice %5 {offsets = [0, 0], sizes = [256, 32], strides = [1, 1]} : vector<256x128xf32> to vector<256x32xf32>
    %11 = vector.broadcast %7 : vector<1x32xf32> to vector<256x32xf32>
    %12 = arith.mulf %11, %6 : vector<256x32xf32>
    %13 = arith.addf %10, %12 : vector<256x32xf32>
    %cst_11 = arith.constant 5.000000e-01 : f32
    %14 = vector.broadcast %cst_11 : f32 to vector<256x32xf32>
    %15 = arith.mulf %14, %13 : vector<256x32xf32>
    %16 = math.tanh %15 : vector<256x32xf32>
    %cst_12 = arith.constant 5.000000e-01 : f32
    %17 = vector.broadcast %cst_12 : f32 to vector<256x32xf32>
    %18 = arith.mulf %17, %16 : vector<256x32xf32>
    %cst_13 = arith.constant 5.000000e-01 : f32
    %19 = vector.broadcast %cst_13 : f32 to vector<256x32xf32>
    %20 = arith.addf %18, %19 : vector<256x32xf32>
    %21 = vector.extract_strided_slice %5 {offsets = [0, 32], sizes = [256, 32], strides = [1, 1]} : vector<256x128xf32> to vector<256x32xf32>
    %22 = vector.broadcast %8 : vector<1x32xf32> to vector<256x32xf32>
    %23 = arith.mulf %22, %6 : vector<256x32xf32>
    %24 = arith.addf %21, %23 : vector<256x32xf32>
    %cst_14 = arith.constant 5.000000e-01 : f32
    %25 = vector.broadcast %cst_14 : f32 to vector<256x32xf32>
    %26 = arith.mulf %25, %24 : vector<256x32xf32>
    %27 = math.tanh %26 : vector<256x32xf32>
    %cst_15 = arith.constant 5.000000e-01 : f32
    %28 = vector.broadcast %cst_15 : f32 to vector<256x32xf32>
    %29 = arith.mulf %28, %27 : vector<256x32xf32>
    %cst_16 = arith.constant 5.000000e-01 : f32
    %30 = vector.broadcast %cst_16 : f32 to vector<256x32xf32>
    %31 = arith.addf %29, %30 : vector<256x32xf32>
    %32 = vector.extract_strided_slice %5 {offsets = [0, 64], sizes = [256, 32], strides = [1, 1]} : vector<256x128xf32> to vector<256x32xf32>
    %33 = math.tanh %32 : vector<256x32xf32>
    %34 = arith.mulf %31, %6 : vector<256x32xf32>
    %35 = arith.mulf %20, %33 : vector<256x32xf32>
    %36 = arith.addf %34, %35 : vector<256x32xf32>
    %37 = vector.extract_strided_slice %5 {offsets = [0, 96], sizes = [256, 32], strides = [1, 1]} : vector<256x128xf32> to vector<256x32xf32>
    %38 = vector.broadcast %9 : vector<1x32xf32> to vector<256x32xf32>
    %39 = arith.mulf %38, %36 : vector<256x32xf32>
    %40 = arith.addf %37, %39 : vector<256x32xf32>
    %cst_17 = arith.constant 5.000000e-01 : f32
    %41 = vector.broadcast %cst_17 : f32 to vector<256x32xf32>
    %42 = arith.mulf %41, %40 : vector<256x32xf32>
    %43 = math.tanh %42 : vector<256x32xf32>
    %cst_18 = arith.constant 5.000000e-01 : f32
    %44 = vector.broadcast %cst_18 : f32 to vector<256x32xf32>
    %45 = arith.mulf %44, %43 : vector<256x32xf32>
    %cst_19 = arith.constant 5.000000e-01 : f32
    %46 = vector.broadcast %cst_19 : f32 to vector<256x32xf32>
    %47 = arith.addf %45, %46 : vector<256x32xf32>
    %48 = math.tanh %36 : vector<256x32xf32>
    %49 = arith.mulf %47, %48 : vector<256x32xf32>
    %cst_20 = arith.constant 0.000000e+00 : f32
    %50 = vector.broadcast %cst_20 : f32 to vector<256x64xf32>
    %51 = tpu.concatenate %49, %36, %50 in 1 : vector<256x32xf32>, vector<256x32xf32>, vector<256x64xf32> -> vector<256x128xf32>
    %c0_21 = arith.constant 0 : index
    %c0_22 = arith.constant 0 : index
    %52 = vector.load %arg9[%c0_21, %c0_22] : memref<256x128xf32, #tpu.memory_space<vmem>>, vector<256x128xf32>
    tpu.vector_store %arg9[%c0_21, %c0_22], %51 {strides = array<i32>} : memref<256x128xf32, #tpu.memory_space<vmem>>, vector<256x128xf32>,
    %cst_23 = arith.constant 0.000000e+00 : f32
    %53 = vector.broadcast %cst_23 : f32 to vector<256x32xf32>
    %54 = arith.maximumf %49, %53 : vector<256x32xf32>
    %c0_24 = arith.constant 0 : index
    %c0_25 = arith.constant 0 : index
    %55 = vector.load %arg6[%c0_24, %c0_25] : memref<32x128xf32, #tpu.memory_space<vmem>>, vector<32x128xf32>
    %cst_26 = arith.constant dense<0.000000e+00> : vector<256x128xf32>
    %56 = tpu.matmul %54, %55, %cst_26 {dimension_numbers = #tpu.dot_dimension_numbers<[1], [0], [0], [1], [0, 0, 1, 1], [], []>} : vector<256x32xf32>, vector<32x128xf32>, vector<256x128xf32> -> vector<256x128xf32>
    %c0_27 = arith.constant 0 : index
    %c0_28 = arith.constant 0 : index
    %57 = vector.load %arg7[%c0_27, %c0_28] : memref<1x128xf32, #tpu.memory_space<vmem>>, vector<1x128xf32>
    %58 = vector.broadcast %57 : vector<1x128xf32> to vector<256x128xf32>
    %59 = arith.addf %56, %58 : vector<256x128xf32>
    %c0_29 = arith.constant 0 : index
    %c0_30 = arith.constant 0 : index
    %60 = vector.load %arg8[%c0_29, %c0_30] : memref<256x128xf32, #tpu.memory_space<vmem>>, vector<256x128xf32>
    tpu.vector_store %arg8[%c0_29, %c0_30], %59 {strides = array<i32>} : memref<256x128xf32, #tpu.memory_space<vmem>>, vector<256x128xf32>,
    return
  }
  func.func @transform_0(%arg0: i32) -> (i32, i32) {
    %c0_i32 = arith.constant 0 : i32
    %c0_i32_0 = arith.constant 0 : i32
    return %arg0, %c0_i32 : i32, i32
  }
  func.func @transform_1(%arg0: i32) -> (i32, i32) {
    %c0_i32 = arith.constant 0 : i32
    %c0_i32_0 = arith.constant 0 : i32
    return %arg0, %c0_i32 : i32, i32
  }
  func.func @transform_2(%arg0: i32) -> (i32, i32) {
    %c0_i32 = arith.constant 0 : i32
    %c0_i32_0 = arith.constant 0 : i32
    %c0_i32_1 = arith.constant 0 : i32
    return %c0_i32, %c0_i32_0 : i32, i32
  }
  func.func @transform_3(%arg0: i32) -> (i32, i32) {
    %c0_i32 = arith.constant 0 : i32
    %c0_i32_0 = arith.constant 0 : i32
    %c0_i32_1 = arith.constant 0 : i32
    return %c0_i32, %c0_i32_0 : i32, i32
  }
  func.func @transform_4(%arg0: i32) -> (i32, i32) {
    %c0_i32 = arith.constant 0 : i32
    %c0_i32_0 = arith.constant 0 : i32
    %c0_i32_1 = arith.constant 0 : i32
    return %c0_i32, %c0_i32_0 : i32, i32
  }
  func.func @transform_5(%arg0: i32) -> (i32, i32) {
    %c0_i32 = arith.constant 0 : i32
    %c0_i32_0 = arith.constant 0 : i32
    %c0_i32_1 = arith.constant 0 : i32
    return %c0_i32, %c0_i32_0 : i32, i32
  }
  func.func @transform_6(%arg0: i32) -> (i32, i32) {
    %c0_i32 = arith.constant 0 : i32
    %c0_i32_0 = arith.constant 0 : i32
    %c0_i32_1 = arith.constant 0 : i32
    return %c0_i32, %c0_i32_0 : i32, i32
  }
  func.func @transform_7(%arg0: i32) -> (i32, i32) {
    %c0_i32 = arith.constant 0 : i32
    %c0_i32_0 = arith.constant 0 : i32
    return %arg0, %c0_i32 : i32, i32
  }
  func.func @transform_8(%arg0: i32) -> (i32, i32) {
    %c0_i32 = arith.constant 0 : i32
    %c0_i32_0 = arith.constant 0 : i32
    return %arg0, %c0_i32 : i32, i32
  }
}

</mosaic_0001>

<llo_original>
// kernel: recurrent_gconv_lstm_forward.4
$region0: #{recurrent_gconv_lstm_forward.4}
  #allocation0 [shape = 'u32[]', space=smem, size = 0x4, offset = 0x4, fixed_abs, tag = 'smem constant byte address 0x4 - core index']
  #allocation1 [shape = 'u32[144,128]{1,0:T(1,128)}', space=vmem, size = 0x12000, scoped, tag = 'internal scratch']
  #allocation2 [shape = 'f32[256,128]{1,0:T(8,128)}', space=vmem, size = 0x20000, scoped, tag = 'scratch operand']
  %s0 = inlined_call_operand.vmem [shape: bf16[768,768], index: 0, kind: input, shape index: {}]
  %s1 = inlined_call_operand.vmem [shape: f32[768,128], index: 1, kind: input, shape index: {}]
  %s2 = inlined_call_operand.vmem [shape: f32[768,128], index: 2, kind: output, shape index: {}]
  %s3 = sld [smem:[#allocation0]]
  $region87: #{recurrent_gconv_lstm_forward.4} parent=0
    _
  %s5 = ssub.s32 1, %s3
  %s6 = scalar_select 0, %s5, %s3
  $region1: #{recurrent_gconv_lstm_forward.4} parent=0
    #allocation3 [shape = 'u8[262144]{0}', space=vmem, size = 0x40000, scoped, tag = 'input window, operand 0']
    loop: start=0, step=1, limit=11
    $region2: #{recurrent_gconv_lstm_forward.4} parent=1 // loop_pre_header
      _
    $region3: #{recurrent_gconv_lstm_forward.4} parent=1 // loop_header
      %s8 = sphi 0, %s12
      %p9 = scmp.ge.s32.totalorder %s8, 11
      %s15 = sphi 0, %s27
      %s16 = sphi 0, %s23
      %s17 = sphi 0, %s15
      %s18 = sphi 0, %s16
      %s19 = sphi 0, %s17
      %s20 = sphi 0, %s18
      %s32 = sphi 0, %s34
      %s35 = sphi 0, %s32
      %s36 = sphi 0, %s35
      %s52 = sphi 0, %s36
      %s56 = sphi 0, %s56
      %s58 = sphi 0, %s56
      %s59 = sphi 0, %s58
      %s73 = sphi 0, %s59
      %s79 = sphi 0, %s81
      %s82 = sphi 0, %s79
      %s83 = sphi 0, %s82
      %s99 = sphi 0, %s83
    $region4: #{recurrent_gconv_lstm_forward.4} parent=1 // loop_header_branch
      %11 = sbr.rel (%p9) target = $region8
    $region5: #{recurrent_gconv_lstm_forward.4} parent=1 // loop_body
      %s13 = ssub.s32 %s8, 1
      %s14 = ssub.s32 %s8, 2
      %s21 = sadd.s32 1, %s16
      %p22 = scmp.ge.s32.totalorder %s21, 3
      %s23 = scalar_select %p22, 0, %s21
      %s24 = sadd.s32 1, %s15
      %s25 = scalar_select %p22, %s24, %s15
      %p26 = scmp.ge.s32.totalorder %s25, 3
      %s27 = scalar_select %p26, 0, %s25
      %s28 = ssub.s32 %s15, %s27
      %s29 = ssub.s32 %s16, %s23
      %s30 = sor.u32 %s28, %s29
      %p31 = scmp.eq.s32.totalorder %s30, 0
      %s33 = sadd.s32 %s32, 1
      %s34 = scalar_select %p31, %s32, %s33
      %p37 = pneg %p31
      %p38 = scmp.eq.s32.totalorder %s8, 8
      %p39 = por %p37, %p38
      %p40 = scmp.ne.s32.totalorder %s32, %s35
      %p41 = scmp.eq.s32.totalorder %s8, 0
      %p42 = por %p40, %p41
      %p43 = scmp.ne.s32.totalorder %s32, %s35
      %p44 = scmp.eq.s32.totalorder %s13, 8
      %p45 = por %p43, %p44
      %p46 = scmp.ne.s32.totalorder %s35, %s36
      %p47 = scmp.eq.s32.totalorder %s13, 0
      %p48 = por %p46, %p47
      %p49 = scmp.ne.s32.totalorder %s35, %s36
      %p50 = scmp.eq.s32.totalorder %s14, 8
      %p51 = por %p49, %p50
      %p53 = scmp.ne.s32.totalorder %s36, %s52
      %p54 = scmp.eq.s32.totalorder %s14, 0
      %p55 = por %p53, %p54
      %s57 = sadd.s32 %s56, 1
      %p60 = scmp.eq.s32.totalorder %s8, 8
      %p61 = scmp.ne.s32.totalorder %s56, %s58
      %p62 = scmp.eq.s32.totalorder %s8, 0
      %p63 = por %p61, %p62
      %p64 = scmp.ne.s32.totalorder %s56, %s58
      %p65 = scmp.eq.s32.totalorder %s13, 8
      %p66 = por %p64, %p65
      %p67 = scmp.ne.s32.totalorder %s58, %s59
      %p68 = scmp.eq.s32.totalorder %s13, 0
      %p69 = por %p67, %p68
      %p70 = scmp.ne.s32.totalorder %s58, %s59
      %p71 = scmp.eq.s32.totalorder %s14, 8
      %p72 = por %p70, %p71
      %p74 = scmp.ne.s32.totalorder %s59, %s73
      %p75 = scmp.eq.s32.totalorder %s14, 0
      %p76 = por %p74, %p75
      %s77 = ssub.s32 %s15, %s27
      %p78 = scmp.eq.s32.totalorder %s77, 0
      %s80 = sadd.s32 %s79, 1
      %s81 = scalar_select %p78, %s79, %s80
      %p84 = pneg %p78
      %p85 = scmp.eq.s32.totalorder %s8, 8
      %p86 = por %p84, %p85
      %p87 = scmp.ne.s32.totalorder %s79, %s82
      %p88 = scmp.eq.s32.totalorder %s8, 0
      %p89 = por %p87, %p88
      %p90 = scmp.ne.s32.totalorder %s79, %s82
      %p91 = scmp.eq.s32.totalorder %s13, 8
      %p92 = por %p90, %p91
      %p93 = scmp.ne.s32.totalorder %s82, %s83
      %p94 = scmp.eq.s32.totalorder %s13, 0
      %p95 = por %p93, %p94
      %p96 = scmp.ne.s32.totalorder %s82, %s83
      %p97 = scmp.eq.s32.totalorder %s14, 8
      %p98 = por %p96, %p97
      %p100 = scmp.ne.s32.totalorder %s83, %s99
      %p101 = scmp.eq.s32.totalorder %s14, 0
      %p102 = por %p100, %p101
      %p103 = scmp.le.s32.totalorder 1, %s8
      %p104 = scmp.lt.s32.totalorder %s8, 10
      %p105 = pnand %p103, %p104
      %p106 = pneg %p105
      // Predicated region
      $region9: #{recurrent_gconv_lstm_forward.4} parent=5 // pred_check
        _
      $region10: #{recurrent_gconv_lstm_forward.4} parent=5 // pred_check_branch
        %108 = sbr.rel (%p105) target = $region12
      $region11: #{recurrent_gconv_lstm_forward.4} parent=5 // pred_region
        %s109 = ssub.s32 %s8, 1
        // Predicated region
        $region13: #{recurrent_gconv_lstm_forward.4} parent=11 // pred_check
          %p110 = pneg %p69
        $region14: #{recurrent_gconv_lstm_forward.4} parent=11 // pred_check_branch
          %112 = sbr.rel (%p110) target = $region16
        $region15: #{recurrent_gconv_lstm_forward.4} parent=11 // pred_region
          _
        $region16: #{recurrent_gconv_lstm_forward.4} parent=11 // pred_fallthru
          _
      $region12: #{recurrent_gconv_lstm_forward.4} parent=5 // pred_fallthru
        _
      %p113 = scmp.lt.s32.totalorder %s8, 9
      // Predicated region
      $region17: #{recurrent_gconv_lstm_forward.4} parent=5 // pred_check
        %p114 = pneg %p113
      $region18: #{recurrent_gconv_lstm_forward.4} parent=5 // pred_check_branch
        %116 = sbr.rel (%p114) target = $region20
      $region19: #{recurrent_gconv_lstm_forward.4} parent=5 // pred_region
        // Predicated region
        $region21: #{recurrent_gconv_lstm_forward.4} parent=19 // pred_check
          %p117 = pneg %p42
        $region22: #{recurrent_gconv_lstm_forward.4} parent=19 // pred_check_branch
          %119 = sbr.rel (%p117) target = $region24
        $region23: #{recurrent_gconv_lstm_forward.4} parent=19 // pred_region
          %s120 = sand.u32 %s32, 1
          %s121 = sand.u32 %s32, 1
          %s122 = smul.addr %s121, 256
          %s123 = scalar_lea.vmem [#allocation3], %s122
          %s124 = smul.u32 32, %s15
          %s125 = smul.u32 2, %s16
          %s126 = smul.addr %s124, 6
          %s127 = sadd.s32 %s125, %s126
          %s128 = smul.addr %s127, 4
          %s129 = scalar_lea.vmem %s0, %s128
          // Predicated region
          $region25: #{recurrent_gconv_lstm_forward.4} parent=23 // pred_check
            _
          $region26: #{recurrent_gconv_lstm_forward.4} parent=23 // pred_check_branch
            %131 = sbr.rel (0) target = $region28
          $region27: #{recurrent_gconv_lstm_forward.4} parent=23 // pred_region
            // Predicated region
            $region29: #{recurrent_gconv_lstm_forward.4} parent=27 // pred_check
              _
            $region30: #{recurrent_gconv_lstm_forward.4} parent=27 // pred_check_branch
              %133 = sbr.rel (0) target = $region32
            $region31: #{recurrent_gconv_lstm_forward.4} parent=27 // pred_region
              // Predicated region
              $region44: #{recurrent_gconv_lstm_forward.4} parent=31 // pred_check
                _
              $region45: #{recurrent_gconv_lstm_forward.4} parent=31 // pred_check_branch
                %210 = sbr.rel (0) target = $region47
              $region46: #{recurrent_gconv_lstm_forward.4} parent=31 // pred_region
                loop: start=0, step=1, limit=1
                $region48: #{recurrent_gconv_lstm_forward.4} parent=46 // loop_pre_header
                  _
                $region49: #{recurrent_gconv_lstm_forward.4} parent=46 // loop_header
                  %s212 = sphi 0, %s216
                  %p213 = scmp.ge.s32.totalorder %s212, 1
                  %s217 = sphi %s129, %s129
                  %s218 = sphi %s123, %s123
                $region50: #{recurrent_gconv_lstm_forward.4} parent=46 // loop_header_branch
                  %215 = sbr.rel (%p213) target = $region54
                $region51: #{recurrent_gconv_lstm_forward.4} parent=46 // loop_body
                  %v219 = vld [vmem:[%s217] sm:$0xff]
                  %220 = vst [vmem:[%s218] sm:$0xff] %v219
                  %v221 = vld [vmem:[%s217 + $0x18] sm:$0xff]
                  %222 = vst [vmem:[%s218 + $0x8] sm:$0xff] %v221
                  %v223 = vld [vmem:[%s217 + $0x30] sm:$0xff]
                  %224 = vst [vmem:[%s218 + $0x10] sm:$0xff] %v223
                  %v225 = vld [vmem:[%s217 + $0x48] sm:$0xff]
                  %226 = vst [vmem:[%s218 + $0x18] sm:$0xff] %v225
                  %v227 = vld [vmem:[%s217 + $0x60] sm:$0xff]
                  %228 = vst [vmem:[%s218 + $0x20] sm:$0xff] %v227
                  %v229 = vld [vmem:[%s217 + $0x78] sm:$0xff]
                  %230 = vst [vmem:[%s218 + $0x28] sm:$0xff] %v229
                  %v231 = vld [vmem:[%s217 + $0x90] sm:$0xff]
                  %232 = vst [vmem:[%s218 + $0x30] sm:$0xff] %v231
                  %v233 = vld [vmem:[%s217 + $0xa8] sm:$0xff]
                  %234 = vst [vmem:[%s218 + $0x38] sm:$0xff] %v233
                  %v235 = vld [vmem:[%s217 + $0xc0] sm:$0xff]
                  %236 = vst [vmem:[%s218 + $0x40] sm:$0xff] %v235
                  %v237 = vld [vmem:[%s217 + $0xd8] sm:$0xff]
                  %238 = vst [vmem:[%s218 + $0x48] sm:$0xff] %v237
                  %v239 = vld [vmem:[%s217 + $0xf0] sm:$0xff]
                  %240 = vst [vmem:[%s218 + $0x50] sm:$0xff] %v239
                  %v241 = vld [vmem:[%s217 + $0x108] sm:$0xff]
                  %242 = vst [vmem:[%s218 + $0x58] sm:$0xff] %v241
                  %v243 = vld [vmem:[%s217 + $0x120] sm:$0xff]
                  %244 = vst [vmem:[%s218 + $0x60] sm:$0xff] %v243
                  %v245 = vld [vmem:[%s217 + $0x138] sm:$0xff]
                  %246 = vst [vmem:[%s218 + $0x68] sm:$0xff] %v245
                  %v247 = vld [vmem:[%s217 + $0x150] sm:$0xff]
                  %248 = vst [vmem:[%s218 + $0x70] sm:$0xff] %v247
                  %v249 = vld [vmem:[%s217 + $0x168] sm:$0xff]
                  %250 = vst [vmem:[%s218 + $0x78] sm:$0xff] %v249
                  %v251 = vld [vmem:[%s217 + $0x180] sm:$0xff]
                  %252 = vst [vmem:[%s218 + $0x80] sm:$0xff] %v251
                  %v253 = vld [vmem:[%s217 + $0x198] sm:$0xff]
                  %254 = vst [vmem:[%s218 + $0x88] sm:$0xff] %v253
                  %v255 = vld [vmem:[%s217 + $0x1b0] sm:$0xff]
                  %256 = vst [vmem:[%s218 + $0x90] sm:$0xff] %v255
                  %v257 = vld [vmem:[%s217 + $0x1c8] sm:$0xff]
                  %258 = vst [vmem:[%s218 + $0x98] sm:$0xff] %v257
                  %v259 = vld [vmem:[%s217 + $0x1e0] sm:$0xff]
                  %260 = vst [vmem:[%s218 + $0xa0] sm:$0xff] %v259
                  %v261 = vld [vmem:[%s217 + $0x1f8] sm:$0xff]
                  %262 = vst [vmem:[%s218 + $0xa8] sm:$0xff] %v261
                  %v263 = vld [vmem:[%s217 + $0x210] sm:$0xff]
                  %264 = vst [vmem:[%s218 + $0xb0] sm:$0xff] %v263
                  %v265 = vld [vmem:[%s217 + $0x228] sm:$0xff]
                  %266 = vst [vmem:[%s218 + $0xb8] sm:$0xff] %v265
                  %v267 = vld [vmem:[%s217 + $0x240] sm:$0xff]
                  %268 = vst [vmem:[%s218 + $0xc0] sm:$0xff] %v267
                  %v269 = vld [vmem:[%s217 + $0x258] sm:$0xff]
                  %270 = vst [vmem:[%s218 + $0xc8] sm:$0xff] %v269
                  %v271 = vld [vmem:[%s217 + $0x270] sm:$0xff]
                  %272 = vst [vmem:[%s218 + $0xd0] sm:$0xff] %v271
                  %v273 = vld [vmem:[%s217 + $0x288] sm:$0xff]
                  %274 = vst [vmem:[%s218 + $0xd8] sm:$0xff] %v273
                  %v275 = vld [vmem:[%s217 + $0x2a0] sm:$0xff]
                  %276 = vst [vmem:[%s218 + $0xe0] sm:$0xff] %v275
                  %v277 = vld [vmem:[%s217 + $0x2b8] sm:$0xff]
                  %278 = vst [vmem:[%s218 + $0xe8] sm:$0xff] %v277
                  %v279 = vld [vmem:[%s217 + $0x2d0] sm:$0xff]
                  %280 = vst [vmem:[%s218 + $0xf0] sm:$0xff] %v279
                  %v281 = vld [vmem:[%s217 + $0x2e8] sm:$0xff]
                  %282 = vst [vmem:[%s218 + $0xf8] sm:$0xff] %v281
                $region52: #{recurrent_gconv_lstm_forward.4} parent=46 // loop_footer
                  %s216 = sadd.s32 1, %s212
                $region53: #{recurrent_gconv_lstm_forward.4} parent=46 // loop_footer_branch
                  %211 = sbr.rel target = $region49
                $region54: #{recurrent_gconv_lstm_forward.4} parent=46 // loop_exit
                  _
              $region47: #{recurrent_gconv_lstm_forward.4} parent=31 // pred_fallthru
                _
              // Predicated region
              $region55: #{recurrent_gconv_lstm_forward.4} parent=31 // pred_check
                _
              $region56: #{recurrent_gconv_lstm_forward.4} parent=31 // pred_check_branch
                %284 = sbr.rel target = $region58
              $region57: #{recurrent_gconv_lstm_forward.4} parent=31 // pred_region
                _
              $region58: #{recurrent_gconv_lstm_forward.4} parent=31 // pred_fallthru
                _
            $region32: #{recurrent_gconv_lstm_forward.4} parent=27 // pred_fallthru
              _
            // Predicated region
            $region33: #{recurrent_gconv_lstm_forward.4} parent=27 // pred_check
              _
            $region34: #{recurrent_gconv_lstm_forward.4} parent=27 // pred_check_branch
              %135 = sbr.rel target = $region36
            $region35: #{recurrent_gconv_lstm_forward.4} parent=27 // pred_region
              loop: start=0, step=1, limit=1
              $region37: #{recurrent_gconv_lstm_forward.4} parent=35 // loop_pre_header
                _
              $region38: #{recurrent_gconv_lstm_forward.4} parent=35 // loop_header
                %s138 = sphi 0, %s142
                %p139 = scmp.ge.s32.totalorder %s138, 1
                %s143 = sphi %s129, %s129
                %s144 = sphi %s123, %s123
              $region39: #{recurrent_gconv_lstm_forward.4} parent=35 // loop_header_branch
                %141 = sbr.rel (%p139) target = $region43
              $region40: #{recurrent_gconv_lstm_forward.4} parent=35 // loop_body
                %v145 = vld [vmem:[%s143] sm:$0xff]
                %146 = vst [vmem:[%s144] sm:$0xff] %v145
                %v147 = vld [vmem:[%s143 + $0x18] sm:$0xff]
                %148 = vst [vmem:[%s144 + $0x8] sm:$0xff] %v147
                %v149 = vld [vmem:[%s143 + $0x30] sm:$0xff]
                %150 = vst [vmem:[%s144 + $0x10] sm:$0xff] %v149
                %v151 = vld [vmem:[%s143 + $0x48] sm:$0xff]
                %152 = vst [vmem:[%s144 + $0x18] sm:$0xff] %v151
                %v153 = vld [vmem:[%s143 + $0x60] sm:$0xff]
                %154 = vst [vmem:[%s144 + $0x20] sm:$0xff] %v153
                %v155 = vld [vmem:[%s143 + $0x78] sm:$0xff]
                %156 = vst [vmem:[%s144 + $0x28] sm:$0xff] %v155
                %v157 = vld [vmem:[%s143 + $0x90] sm:$0xff]
                %158 = vst [vmem:[%s144 + $0x30] sm:$0xff] %v157
                %v159 = vld [vmem:[%s143 + $0xa8] sm:$0xff]
                %160 = vst [vmem:[%s144 + $0x38] sm:$0xff] %v159
                %v161 = vld [vmem:[%s143 + $0xc0] sm:$0xff]
                %162 = vst [vmem:[%s144 + $0x40] sm:$0xff] %v161
                %v163 = vld [vmem:[%s143 + $0xd8] sm:$0xff]
                %164 = vst [vmem:[%s144 + $0x48] sm:$0xff] %v163
                %v165 = vld [vmem:[%s143 + $0xf0] sm:$0xff]
                %166 = vst [vmem:[%s144 + $0x50] sm:$0xff] %v165
                %v167 = vld [vmem:[%s143 + $0x108] sm:$0xff]
                %168 = vst [vmem:[%s144 + $0x58] sm:$0xff] %v167
                %v169 = vld [vmem:[%s143 + $0x120] sm:$0xff]
                %170 = vst [vmem:[%s144 + $0x60] sm:$0xff] %v169
                %v171 = vld [vmem:[%s143 + $0x138] sm:$0xff]
                %172 = vst [vmem:[%s144 + $0x68] sm:$0xff] %v171
                %v173 = vld [vmem:[%s143 + $0x150] sm:$0xff]
                %174 = vst [vmem:[%s144 + $0x70] sm:$0xff] %v173
                %v175 = vld [vmem:[%s143 + $0x168] sm:$0xff]
                %176 = vst [vmem:[%s144 + $0x78] sm:$0xff] %v175
                %v177 = vld [vmem:[%s143 + $0x180] sm:$0xff]
                %178 = vst [vmem:[%s144 + $0x80] sm:$0xff] %v177
                %v179 = vld [vmem:[%s143 + $0x198] sm:$0xff]
                %180 = vst [vmem:[%s144 + $0x88] sm:$0xff] %v179
                %v181 = vld [vmem:[%s143 + $0x1b0] sm:$0xff]
                %182 = vst [vmem:[%s144 + $0x90] sm:$0xff] %v181
                %v183 = vld [vmem:[%s143 + $0x1c8] sm:$0xff]
                %184 = vst [vmem:[%s144 + $0x98] sm:$0xff] %v183
                %v185 = vld [vmem:[%s143 + $0x1e0] sm:$0xff]
                %186 = vst [vmem:[%s144 + $0xa0] sm:$0xff] %v185
                %v187 = vld [vmem:[%s143 + $0x1f8] sm:$0xff]
                %188 = vst [vmem:[%s144 + $0xa8] sm:$0xff] %v187
                %v189 = vld [vmem:[%s143 + $0x210] sm:$0xff]
                %190 = vst [vmem:[%s144 + $0xb0] sm:$0xff] %v189
                %v191 = vld [vmem:[%s143 + $0x228] sm:$0xff]
                %192 = vst [vmem:[%s144 + $0xb8] sm:$0xff] %v191
                %v193 = vld [vmem:[%s143 + $0x240] sm:$0xff]
                %194 = vst [vmem:[%s144 + $0xc0] sm:$0xff] %v193
                %v195 = vld [vmem:[%s143 + $0x258] sm:$0xff]
                %196 = vst [vmem:[%s144 + $0xc8] sm:$0xff] %v195
                %v197 = vld [vmem:[%s143 + $0x270] sm:$0xff]
                %198 = vst [vmem:[%s144 + $0xd0] sm:$0xff] %v197
                %v199 = vld [vmem:[%s143 + $0x288] sm:$0xff]
                %200 = vst [vmem:[%s144 + $0xd8] sm:$0xff] %v199
                %v201 = vld [vmem:[%s143 + $0x2a0] sm:$0xff]
                %202 = vst [vmem:[%s144 + $0xe0] sm:$0xff] %v201
                %v203 = vld [vmem:[%s143 + $0x2b8] sm:$0xff]
                %204 = vst [vmem:[%s144 + $0xe8] sm:$0xff] %v203
                %v205 = vld [vmem:[%s143 + $0x2d0] sm:$0xff]
                %206 = vst [vmem:[%s144 + $0xf0] sm:$0xff] %v205
                %v207 = vld [vmem:[%s143 + $0x2e8] sm:$0xff]
                %208 = vst [vmem:[%s144 + $0xf8] sm:$0xff] %v207
              $region41: #{recurrent_gconv_lstm_forward.4} parent=35 // loop_footer
                %s142 = sadd.s32 1, %s138
              $region42: #{recurrent_gconv_lstm_forward.4} parent=35 // loop_footer_branch
                %137 = sbr.rel target = $region38
              $region43: #{recurrent_gconv_lstm_forward.4} parent=35 // loop_exit
                _
            $region36: #{recurrent_gconv_lstm_forward.4} parent=27 // pred_fallthru
              _
          $region28: #{recurrent_gconv_lstm_forward.4} parent=23 // pred_fallthru
            _
          %285 = vnop
        $region24: #{recurrent_gconv_lstm_forward.4} parent=19 // pred_fallthru
          _
      $region20: #{recurrent_gconv_lstm_forward.4} parent=5 // pred_fallthru
        _
      %p286 = scmp.le.s32.totalorder 1, %s8
      %p287 = scmp.lt.s32.totalorder %s8, 10
      %p288 = pnand %p286, %p287
      %p289 = pneg %p288
      // Predicated region
      $region59: #{recurrent_gconv_lstm_forward.4} parent=5 // pred_check
        _
      $region60: #{recurrent_gconv_lstm_forward.4} parent=5 // pred_check_branch
        %291 = sbr.rel (%p288) target = $region62
      $region61: #{recurrent_gconv_lstm_forward.4} parent=5 // pred_region
        %s292 = ssub.s32 %s8, 1
        %s293 = sand.u32 %s35, 1
        %s294 = sand.u32 %s35, 1
        %s295 = smul.addr %s294, 256
        %s296 = scalar_lea.vmem [#allocation3], %s295
        // Predicated region
        $region63: #{recurrent_gconv_lstm_forward.4} parent=61 // pred_check
          %p297 = pneg %p48
        $region64: #{recurrent_gconv_lstm_forward.4} parent=61 // pred_check_branch
          %299 = sbr.rel (%p297) target = $region66
        $region65: #{recurrent_gconv_lstm_forward.4} parent=61 // pred_region
          _
        $region66: #{recurrent_gconv_lstm_forward.4} parent=61 // pred_fallthru
          _
        %s300 = sand.u32 %s35, 1
        %s301 = sand.u32 %s35, 1
        %s302 = smul.addr %s301, 256
        %s303 = scalar_lea.vmem [#allocation3], %s302
        %p304 = pneg %p48
        %p305 = pneg %p45
        %p306 = pneg %p69
        %p307 = pneg %p66
        %p308 = pneg %p95
        %p309 = pneg %p92
        %s310 = smul.u32 32, %s17
        %p311 = scmp.lt.s32.totalorder %s310, 95
        %s312 = scalar_select %p311, %s310, 95
        %s313 = smul.addr %s312, 8
        %s314 = scalar_lea.vmem %s2, %s313
        %s315 = smul.u32 32, %s17
        %s316 = smul.u32 2, %s18
        %s317 = smul.u32 32, %s17
        %p318 = scmp.lt.s32.totalorder %s317, 95
        %s319 = scalar_select %p318, %s317, 95
        %s320 = smul.addr %s319, 8
        %s321 = scalar_lea.vmem %s2, %s320
        %s322 = smul.u32 32, %s17
        %p324 = scmp.eq.s32.totalorder %s18, 0
        // Predicated region
        $region67: #{recurrent_gconv_lstm_forward.4} parent=61 // pred_check
          %p325 = pneg %p324
        $region68: #{recurrent_gconv_lstm_forward.4} parent=61 // pred_check_branch
          %327 = sbr.rel (%p325) target = $region70
        $region69: #{recurrent_gconv_lstm_forward.4} parent=61 // pred_region
          %328 = vst [vmem:[#allocation2] sm:$0xff] 0.0
          %329 = vst [vmem:[#allocation2 + $0x8] sm:$0xff] 0.0
          %330 = vst [vmem:[#allocation2 + $0x10] sm:$0xff] 0.0
          %331 = vst [vmem:[#allocation2 + $0x18] sm:$0xff] 0.0
          %332 = vst [vmem:[#allocation2 + $0x20] sm:$0xff] 0.0
          %333 = vst [vmem:[#allocation2 + $0x28] sm:$0xff] 0.0
          %334 = vst [vmem:[#allocation2 + $0x30] sm:$0xff] 0.0
          %335 = vst [vmem:[#allocation2 + $0x38] sm:$0xff] 0.0
          %336 = vst [vmem:[#allocation2 + $0x40] sm:$0xff] 0.0
          %337 = vst [vmem:[#allocation2 + $0x48] sm:$0xff] 0.0
          %338 = vst [vmem:[#allocation2 + $0x50] sm:$0xff] 0.0
          %339 = vst [vmem:[#allocation2 + $0x58] sm:$0xff] 0.0
          %340 = vst [vmem:[#allocation2 + $0x60] sm:$0xff] 0.0
          %341 = vst [vmem:[#allocation2 + $0x68] sm:$0xff] 0.0
          %342 = vst [vmem:[#allocation2 + $0x70] sm:$0xff] 0.0
          %343 = vst [vmem:[#allocation2 + $0x78] sm:$0xff] 0.0
          %344 = vst [vmem:[#allocation2 + $0x80] sm:$0xff] 0.0
          %345 = vst [vmem:[#allocation2 + $0x88] sm:$0xff] 0.0
          %346 = vst [vmem:[#allocation2 + $0x90] sm:$0xff] 0.0
          %347 = vst [vmem:[#allocation2 + $0x98] sm:$0xff] 0.0
          %348 = vst [vmem:[#allocation2 + $0xa0] sm:$0xff] 0.0
          %349 = vst [vmem:[#allocation2 + $0xa8] sm:$0xff] 0.0
          %350 = vst [vmem:[#allocation2 + $0xb0] sm:$0xff] 0.0
          %351 = vst [vmem:[#allocation2 + $0xb8] sm:$0xff] 0.0
          %352 = vst [vmem:[#allocation2 + $0xc0] sm:$0xff] 0.0
          %353 = vst [vmem:[#allocation2 + $0xc8] sm:$0xff] 0.0
          %354 = vst [vmem:[#allocation2 + $0xd0] sm:$0xff] 0.0
          %355 = vst [vmem:[#allocation2 + $0xd8] sm:$0xff] 0.0
          %356 = vst [vmem:[#allocation2 + $0xe0] sm:$0xff] 0.0
          %357 = vst [vmem:[#allocation2 + $0xe8] sm:$0xff] 0.0
          %358 = vst [vmem:[#allocation2 + $0xf0] sm:$0xff] 0.0
          %359 = vst [vmem:[#allocation2 + $0xf8] sm:$0xff] 0.0
        $region70: #{recurrent_gconv_lstm_forward.4} parent=61 // pred_fallthru
          _
        %s360 = smul.u32 %s18, 256
        %s361 = scalar_lea.vmem %s1, %s360
        %v362 = vld [vmem:[%s361] sm:$0xff]
        %v363 = vld [vmem:[%s361 + $0x8] sm:$0xff]
        %v364 = vld [vmem:[%s361 + $0x10] sm:$0xff]
        %v365 = vld [vmem:[%s361 + $0x18] sm:$0xff]
        %v366 = vld [vmem:[%s361 + $0x20] sm:$0xff]
        %v367 = vld [vmem:[%s361 + $0x28] sm:$0xff]
        %v368 = vld [vmem:[%s361 + $0x30] sm:$0xff]
        %v369 = vld [vmem:[%s361 + $0x38] sm:$0xff]
        %v370 = vld [vmem:[%s361 + $0x40] sm:$0xff]
        %v371 = vld [vmem:[%s361 + $0x48] sm:$0xff]
        %v372 = vld [vmem:[%s361 + $0x50] sm:$0xff]
        %v373 = vld [vmem:[%s361 + $0x58] sm:$0xff]
        %v374 = vld [vmem:[%s361 + $0x60] sm:$0xff]
        %v375 = vld [vmem:[%s361 + $0x68] sm:$0xff]
        %v376 = vld [vmem:[%s361 + $0x70] sm:$0xff]
        %v377 = vld [vmem:[%s361 + $0x78] sm:$0xff]
        %v378 = vld [vmem:[%s361 + $0x80] sm:$0xff]
        %v379 = vld [vmem:[%s361 + $0x88] sm:$0xff]
        %v380 = vld [vmem:[%s361 + $0x90] sm:$0xff]
        %v381 = vld [vmem:[%s361 + $0x98] sm:$0xff]
        %v382 = vld [vmem:[%s361 + $0xa0] sm:$0xff]
        %v383 = vld [vmem:[%s361 + $0xa8] sm:$0xff]
        %v384 = vld [vmem:[%s361 + $0xb0] sm:$0xff]
        %v385 = vld [vmem:[%s361 + $0xb8] sm:$0xff]
        %v386 = vld [vmem:[%s361 + $0xc0] sm:$0xff]
        %v387 = vld [vmem:[%s361 + $0xc8] sm:$0xff]
        %v388 = vld [vmem:[%s361 + $0xd0] sm:$0xff]
        %v389 = vld [vmem:[%s361 + $0xd8] sm:$0xff]
        %v390 = vld [vmem:[%s361 + $0xe0] sm:$0xff]
        %v391 = vld [vmem:[%s361 + $0xe8] sm:$0xff]
        %v392 = vld [vmem:[%s361 + $0xf0] sm:$0xff]
        %v393 = vld [vmem:[%s361 + $0xf8] sm:$0xff]
        %v394 = vld [vmem:[#allocation2] sm:$0xff]
        %v395 = vld [vmem:[#allocation2 + $0x8] sm:$0xff]
        %v396 = vld [vmem:[#allocation2 + $0x10] sm:$0xff]
        %v397 = vld [vmem:[#allocation2 + $0x18] sm:$0xff]
        %v398 = vld [vmem:[#allocation2 + $0x20] sm:$0xff]
        %v399 = vld [vmem:[#allocation2 + $0x28] sm:$0xff]
        %v400 = vld [vmem:[#allocation2 + $0x30] sm:$0xff]
        %v401 = vld [vmem:[#allocation2 + $0x38] sm:$0xff]
        %v402 = vld [vmem:[#allocation2 + $0x40] sm:$0xff]
        %v403 = vld [vmem:[#allocation2 + $0x48] sm:$0xff]
        %v404 = vld [vmem:[#allocation2 + $0x50] sm:$0xff]
        %v405 = vld [vmem:[#allocation2 + $0x58] sm:$0xff]
        %v406 = vld [vmem:[#allocation2 + $0x60] sm:$0xff]
        %v407 = vld [vmem:[#allocation2 + $0x68] sm:$0xff]
        %v408 = vld [vmem:[#allocation2 + $0x70] sm:$0xff]
        %v409 = vld [vmem:[#allocation2 + $0x78] sm:$0xff]
        %v410 = vld [vmem:[#allocation2 + $0x80] sm:$0xff]
        %v411 = vld [vmem:[#allocation2 + $0x88] sm:$0xff]
        %v412 = vld [vmem:[#allocation2 + $0x90] sm:$0xff]
        %v413 = vld [vmem:[#allocation2 + $0x98] sm:$0xff]
        %v414 = vld [vmem:[#allocation2 + $0xa0] sm:$0xff]
        %v415 = vld [vmem:[#allocation2 + $0xa8] sm:$0xff]
        %v416 = vld [vmem:[#allocation2 + $0xb0] sm:$0xff]
        %v417 = vld [vmem:[#allocation2 + $0xb8] sm:$0xff]
        %v418 = vld [vmem:[#allocation2 + $0xc0] sm:$0xff]
        %v419 = vld [vmem:[#allocation2 + $0xc8] sm:$0xff]
        %v420 = vld [vmem:[#allocation2 + $0xd0] sm:$0xff]
        %v421 = vld [vmem:[#allocation2 + $0xd8] sm:$0xff]
        %v422 = vld [vmem:[#allocation2 + $0xe0] sm:$0xff]
        %v423 = vld [vmem:[#allocation2 + $0xe8] sm:$0xff]
        %v424 = vld [vmem:[#allocation2 + $0xf0] sm:$0xff]
        %v425 = vld [vmem:[#allocation2 + $0xf8] sm:$0xff]
        %v426 = vld [vmem:[%s296] sm:$0xff]
        %v427 = vld [vmem:[%s296 + $0x8] sm:$0xff]
        %v428 = vld [vmem:[%s296 + $0x10] sm:$0xff]
        %v429 = vld [vmem:[%s296 + $0x18] sm:$0xff]
        %v430 = vld [vmem:[%s296 + $0x20] sm:$0xff]
        %v431 = vld [vmem:[%s296 + $0x28] sm:$0xff]
        %v432 = vld [vmem:[%s296 + $0x30] sm:$0xff]
        %v433 = vld [vmem:[%s296 + $0x38] sm:$0xff]
        %v434 = vld [vmem:[%s296 + $0x40] sm:$0xff]
        %v435 = vld [vmem:[%s296 + $0x48] sm:$0xff]
        %v436 = vld [vmem:[%s296 + $0x50] sm:$0xff]
        %v437 = vld [vmem:[%s296 + $0x58] sm:$0xff]
        %v438 = vld [vmem:[%s296 + $0x60] sm:$0xff]
        %v439 = vld [vmem:[%s296 + $0x68] sm:$0xff]
        %v440 = vld [vmem:[%s296 + $0x70] sm:$0xff]
        %v441 = vld [vmem:[%s296 + $0x78] sm:$0xff]
        %v442 = vld [vmem:[%s296 + $0x80] sm:$0xff]
        %v443 = vld [vmem:[%s296 + $0x88] sm:$0xff]
        %v444 = vld [vmem:[%s296 + $0x90] sm:$0xff]
        %v445 = vld [vmem:[%s296 + $0x98] sm:$0xff]
        %v446 = vld [vmem:[%s296 + $0xa0] sm:$0xff]
        %v447 = vld [vmem:[%s296 + $0xa8] sm:$0xff]
        %v448 = vld [vmem:[%s296 + $0xb0] sm:$0xff]
        %v449 = vld [vmem:[%s296 + $0xb8] sm:$0xff]
        %v450 = vld [vmem:[%s296 + $0xc0] sm:$0xff]
        %v451 = vld [vmem:[%s296 + $0xc8] sm:$0xff]
        %v452 = vld [vmem:[%s296 + $0xd0] sm:$0xff]
        %v453 = vld [vmem:[%s296 + $0xd8] sm:$0xff]
        %v454 = vld [vmem:[%s296 + $0xe0] sm:$0xff]
        %v455 = vld [vmem:[%s296 + $0xe8] sm:$0xff]
        %v456 = vld [vmem:[%s296 + $0xf0] sm:$0xff]
        %v457 = vld [vmem:[%s296 + $0xf8] sm:$0xff]
        %v458 = vpack.c.bf16 %v363, %v362
        %v459 = vpack.c.bf16 %v365, %v364
        %v460 = vpack.c.bf16 %v367, %v366
        %v461 = vpack.c.bf16 %v369, %v368
        %v462 = vpack.c.bf16 %v371, %v370
        %v463 = vpack.c.bf16 %v373, %v372
        %v464 = vpack.c.bf16 %v375, %v374
        %v465 = vpack.c.bf16 %v377, %v376
        %v466 = vpack.c.bf16 %v379, %v378
        %v467 = vpack.c.bf16 %v381, %v380
        %v468 = vpack.c.bf16 %v383, %v382
        %v469 = vpack.c.bf16 %v385, %v384
        %v470 = vpack.c.bf16 %v387, %v386
        %v471 = vpack.c.bf16 %v389, %v388
        %v472 = vpack.c.bf16 %v391, %v390
        %v473 = vpack.c.bf16 %v393, %v392
        %v506 = vunpack.c.l.b16 %v426
        %v507 = vunpack.c.h.b16 %v426
        %v508 = vunpack.c.l.b16 %v427
        %v509 = vunpack.c.h.b16 %v427
        %v510 = vunpack.c.l.b16 %v428
        %v511 = vunpack.c.h.b16 %v428
        %v512 = vunpack.c.l.b16 %v429
        %v513 = vunpack.c.h.b16 %v429
        %v514 = vunpack.c.l.b16 %v430
        %v515 = vunpack.c.h.b16 %v430
        %v516 = vunpack.c.l.b16 %v431
        %v517 = vunpack.c.h.b16 %v431
        %v518 = vunpack.c.l.b16 %v432
        %v519 = vunpack.c.h.b16 %v432
        %v520 = vunpack.c.l.b16 %v433
        %v521 = vunpack.c.h.b16 %v433
        %v522 = vunpack.c.l.b16 %v434
        %v523 = vunpack.c.h.b16 %v434
        %v524 = vunpack.c.l.b16 %v435
        %v525 = vunpack.c.h.b16 %v435
        %v526 = vunpack.c.l.b16 %v436
        %v527 = vunpack.c.h.b16 %v436
        %v528 = vunpack.c.l.b16 %v437
        %v529 = vunpack.c.h.b16 %v437
        %v530 = vunpack.c.l.b16 %v438
        %v531 = vunpack.c.h.b16 %v438
        %v532 = vunpack.c.l.b16 %v439
        %v533 = vunpack.c.h.b16 %v439
        %v534 = vunpack.c.l.b16 %v440
        %v535 = vunpack.c.h.b16 %v440
        %v536 = vunpack.c.l.b16 %v441
        %v537 = vunpack.c.h.b16 %v441
        %v538 = vunpack.c.l.b16 %v442
        %v539 = vunpack.c.h.b16 %v442
        %v540 = vunpack.c.l.b16 %v443
        %v541 = vunpack.c.h.b16 %v443
        %v542 = vunpack.c.l.b16 %v444
        %v543 = vunpack.c.h.b16 %v444
        %v544 = vunpack.c.l.b16 %v445
        %v545 = vunpack.c.h.b16 %v445
        %v546 = vunpack.c.l.b16 %v446
        %v547 = vunpack.c.h.b16 %v446
        %v548 = vunpack.c.l.b16 %v447
        %v549 = vunpack.c.h.b16 %v447
        %v550 = vunpack.c.l.b16 %v448
        %v551 = vunpack.c.h.b16 %v448
        %v552 = vunpack.c.l.b16 %v449
        %v553 = vunpack.c.h.b16 %v449
        %v554 = vunpack.c.l.b16 %v450
        %v555 = vunpack.c.h.b16 %v450
        %v556 = vunpack.c.l.b16 %v451
        %v557 = vunpack.c.h.b16 %v451
        %v558 = vunpack.c.l.b16 %v452
        %v559 = vunpack.c.h.b16 %v452
        %v560 = vunpack.c.l.b16 %v453
        %v561 = vunpack.c.h.b16 %v453
        %v562 = vunpack.c.l.b16 %v454
        %v563 = vunpack.c.h.b16 %v454
        %v564 = vunpack.c.l.b16 %v455
        %v565 = vunpack.c.h.b16 %v455
        %v566 = vunpack.c.l.b16 %v456
        %v567 = vunpack.c.h.b16 %v456
        %v568 = vunpack.c.l.b16 %v457
        %v569 = vunpack.c.h.b16 %v457
        %v570 = vpack.c.b16 %v508, %v506
        %v571 = vpack.c.b16 %v509, %v507
        %v572 = vpack.c.b16 %v512, %v510
        %v573 = vpack.c.b16 %v513, %v511
        %v574 = vpack.c.b16 %v516, %v514
        %v575 = vpack.c.b16 %v517, %v515
        %v576 = vpack.c.b16 %v520, %v518
        %v577 = vpack.c.b16 %v521, %v519
        %v578 = vpack.c.b16 %v524, %v522
        %v579 = vpack.c.b16 %v525, %v523
        %v580 = vpack.c.b16 %v528, %v526
        %v581 = vpack.c.b16 %v529, %v527
        %v582 = vpack.c.b16 %v532, %v530
        %v583 = vpack.c.b16 %v533, %v531
        %v584 = vpack.c.b16 %v536, %v534
        %v585 = vpack.c.b16 %v537, %v535
        %v586 = vpack.c.b16 %v540, %v538
        %v587 = vpack.c.b16 %v541, %v539
        %v588 = vpack.c.b16 %v544, %v542
        %v589 = vpack.c.b16 %v545, %v543
        %v590 = vpack.c.b16 %v548, %v546
        %v591 = vpack.c.b16 %v549, %v547
        %v592 = vpack.c.b16 %v552, %v550
        %v593 = vpack.c.b16 %v553, %v551
        %v594 = vpack.c.b16 %v556, %v554
        %v595 = vpack.c.b16 %v557, %v555
        %v596 = vpack.c.b16 %v560, %v558
        %v597 = vpack.c.b16 %v561, %v559
        %v598 = vpack.c.b16 %v564, %v562
        %v599 = vpack.c.b16 %v565, %v563
        %v600 = vpack.c.b16 %v568, %v566
        %v601 = vpack.c.b16 %v569, %v567
        %634 = vmatprep.subr.bf16.mxu0 0
        %635 = vmatpush1.bf16.msra.mxu0 %v458
        %636 = vmatprep.subr.bf16.mxu0 0
        %637 = vmatpush1.bf16.msra.mxu0 %v459
        %638 = vmatprep.subr.bf16.mxu0 0
        %639 = vmatpush1.bf16.msra.mxu0 %v460
        %640 = vmatprep.subr.bf16.mxu0 0
        %641 = vmatpush1.bf16.msra.mxu0 %v461
        %642 = vmatprep.subr.bf16.mxu0 0
        %643 = vmatpush1.bf16.msra.mxu0 %v462
        %644 = vmatprep.subr.bf16.mxu0 0
        %645 = vmatpush1.bf16.msra.mxu0 %v463
        %646 = vmatprep.subr.bf16.mxu0 0
        %647 = vmatpush1.bf16.msra.mxu0 %v464
        %648 = vmatprep.subr.bf16.mxu0 0
        %649 = vmatpush1.bf16.msra.mxu0 %v465
        %650 = vmatprep.subr.bf16.mxu0 0
        %651 = vmatpush1.bf16.msra.mxu0 %v466
        %652 = vmatprep.subr.bf16.mxu0 0
        %653 = vmatpush1.bf16.msra.mxu0 %v467
        %654 = vmatprep.subr.bf16.mxu0 0
        %655 = vmatpush1.bf16.msra.mxu0 %v468
        %656 = vmatprep.subr.bf16.mxu0 0
        %657 = vmatpush1.bf16.msra.mxu0 %v469
        %658 = vmatprep.subr.bf16.mxu0 0
        %659 = vmatpush1.bf16.msra.mxu0 %v470
        %660 = vmatprep.subr.bf16.mxu0 0
        %661 = vmatpush1.bf16.msra.mxu0 %v471
        %662 = vmatprep.subr.bf16.mxu0 0
        %663 = vmatpush1.bf16.msra.mxu0 %v472
        %664 = vmatprep.subr.bf16.mxu0 0
        %665 = vmatpush1.bf16.msra.mxu0 %v473
        %666 = vmatprep.mubr.bf16.mxu0 %v571
        %667 = vmatmul.mubr.bf16.gmra.mrb[0].mxu0 %v570
        %v668 = vpop.f32.mrb[0].mxu0
        %v669 = vadd.f32 0.0, %v668
        %v670 = vpop.f32.mrb[0].mxu0
        %v671 = vpop.f32.mrb[0].mxu0
        %v672 = vadd.f32 0.0, %v671
        %v673 = vpop.f32.mrb[0].mxu0
        %674 = vmatprep.mubr.bf16.mxu0 %v573
        %675 = vmatmul.mubr.bf16.gmra.mrb[0].mxu0 %v572
        %v676 = vpop.f32.mrb[0].mxu0
        %v677 = vadd.f32 0.0, %v676
        %v678 = vpop.f32.mrb[0].mxu0
        %v679 = vpop.f32.mrb[0].mxu0
        %v680 = vadd.f32 0.0, %v679
        %v681 = vpop.f32.mrb[0].mxu0
        %682 = vmatprep.mubr.bf16.mxu0 %v575
        %683 = vmatmul.mubr.bf16.gmra.mrb[0].mxu0 %v574
        %v684 = vpop.f32.mrb[0].mxu0
        %v685 = vadd.f32 0.0, %v684
        %v686 = vpop.f32.mrb[0].mxu0
        %v687 = vpop.f32.mrb[0].mxu0
        %v688 = vadd.f32 0.0, %v687
        %v689 = vpop.f32.mrb[0].mxu0
        %690 = vmatprep.mubr.bf16.mxu0 %v577
        %691 = vmatmul.mubr.bf16.gmra.mrb[0].mxu0 %v576
        %v692 = vpop.f32.mrb[0].mxu0
        %v693 = vadd.f32 0.0, %v692
        %v694 = vpop.f32.mrb[0].mxu0
        %v695 = vpop.f32.mrb[0].mxu0
        %v696 = vadd.f32 0.0, %v695
        %v697 = vpop.f32.mrb[0].mxu0
        %698 = vmatprep.mubr.bf16.mxu0 %v579
        %699 = vmatmul.mubr.bf16.gmra.mrb[0].mxu0 %v578
        %v700 = vpop.f32.mrb[0].mxu0
        %v701 = vadd.f32 0.0, %v700
        %v702 = vpop.f32.mrb[0].mxu0
        %v703 = vpop.f32.mrb[0].mxu0
        %v704 = vadd.f32 0.0, %v703
        %v705 = vpop.f32.mrb[0].mxu0
        %706 = vmatprep.mubr.bf16.mxu0 %v581
        %707 = vmatmul.mubr.bf16.gmra.mrb[0].mxu0 %v580
        %v708 = vpop.f32.mrb[0].mxu0
        %v709 = vadd.f32 0.0, %v708
        %v710 = vpop.f32.mrb[0].mxu0
        %v711 = vpop.f32.mrb[0].mxu0
        %v712 = vadd.f32 0.0, %v711
        %v713 = vpop.f32.mrb[0].mxu0
        %714 = vmatprep.mubr.bf16.mxu0 %v583
        %715 = vmatmul.mubr.bf16.gmra.mrb[0].mxu0 %v582
        %v716 = vpop.f32.mrb[0].mxu0
        %v717 = vadd.f32 0.0, %v716
        %v718 = vpop.f32.mrb[0].mxu0
        %v719 = vpop.f32.mrb[0].mxu0
        %v720 = vadd.f32 0.0, %v719
        %v721 = vpop.f32.mrb[0].mxu0
        %722 = vmatprep.mubr.bf16.mxu0 %v585
        %723 = vmatmul.mubr.bf16.gmra.mrb[0].mxu0 %v584
        %v724 = vpop.f32.mrb[0].mxu0
        %v725 = vadd.f32 0.0, %v724
        %v726 = vpop.f32.mrb[0].mxu0
        %v727 = vpop.f32.mrb[0].mxu0
        %v728 = vadd.f32 0.0, %v727
        %v729 = vpop.f32.mrb[0].mxu0
        %730 = vmatprep.mubr.bf16.mxu0 %v587
        %731 = vmatmul.mubr.bf16.gmra.mrb[0].mxu0 %v586
        %v732 = vpop.f32.mrb[0].mxu0
        %v733 = vadd.f32 0.0, %v732
        %v734 = vpop.f32.mrb[0].mxu0
        %v735 = vpop.f32.mrb[0].mxu0
        %v736 = vadd.f32 0.0, %v735
        %v737 = vpop.f32.mrb[0].mxu0
        %738 = vmatprep.mubr.bf16.mxu0 %v589
        %739 = vmatmul.mubr.bf16.gmra.mrb[0].mxu0 %v588
        %v740 = vpop.f32.mrb[0].mxu0
        %v741 = vadd.f32 0.0, %v740
        %v742 = vpop.f32.mrb[0].mxu0
        %v743 = vpop.f32.mrb[0].mxu0
        %v744 = vadd.f32 0.0, %v743
        %v745 = vpop.f32.mrb[0].mxu0
        %746 = vmatprep.mubr.bf16.mxu0 %v591
        %747 = vmatmul.mubr.bf16.gmra.mrb[0].mxu0 %v590
        %v748 = vpop.f32.mrb[0].mxu0
        %v749 = vadd.f32 0.0, %v748
        %v750 = vpop.f32.mrb[0].mxu0
        %v751 = vpop.f32.mrb[0].mxu0
        %v752 = vadd.f32 0.0, %v751
        %v753 = vpop.f32.mrb[0].mxu0
        %754 = vmatprep.mubr.bf16.mxu0 %v593
        %755 = vmatmul.mubr.bf16.gmra.mrb[0].mxu0 %v592
        %v756 = vpop.f32.mrb[0].mxu0
        %v757 = vadd.f32 0.0, %v756
        %v758 = vpop.f32.mrb[0].mxu0
        %v759 = vpop.f32.mrb[0].mxu0
        %v760 = vadd.f32 0.0, %v759
        %v761 = vpop.f32.mrb[0].mxu0
        %762 = vmatprep.mubr.bf16.mxu0 %v595
        %763 = vmatmul.mubr.bf16.gmra.mrb[0].mxu0 %v594
        %v764 = vpop.f32.mrb[0].mxu0
        %v765 = vadd.f32 0.0, %v764
        %v766 = vpop.f32.mrb[0].mxu0
        %v767 = vpop.f32.mrb[0].mxu0
        %v768 = vadd.f32 0.0, %v767
        %v769 = vpop.f32.mrb[0].mxu0
        %770 = vmatprep.mubr.bf16.mxu0 %v597
        %771 = vmatmul.mubr.bf16.gmra.mrb[0].mxu0 %v596
        %v772 = vpop.f32.mrb[0].mxu0
        %v773 = vadd.f32 0.0, %v772
        %v774 = vpop.f32.mrb[0].mxu0
        %v775 = vpop.f32.mrb[0].mxu0
        %v776 = vadd.f32 0.0, %v775
        %v777 = vpop.f32.mrb[0].mxu0
        %778 = vmatprep.mubr.bf16.mxu0 %v599
        %779 = vmatmul.mubr.bf16.gmra.mrb[0].mxu0 %v598
        %v780 = vpop.f32.mrb[0].mxu0
        %v781 = vadd.f32 0.0, %v780
        %v782 = vpop.f32.mrb[0].mxu0
        %v783 = vpop.f32.mrb[0].mxu0
        %v784 = vadd.f32 0.0, %v783
        %v785 = vpop.f32.mrb[0].mxu0
        %786 = vmatprep.mubr.bf16.mxu0 %v601
        %787 = vmatmul.mubr.bf16.gmra.mrb[0].mxu0 %v600
        %v788 = vpop.f32.mrb[0].mxu0
        %v789 = vadd.f32 0.0, %v788
        %v790 = vpop.f32.mrb[0].mxu0
        %v791 = vpop.f32.mrb[0].mxu0
        %v792 = vadd.f32 0.0, %v791
        %v793 = vpop.f32.mrb[0].mxu0
        %794 = vdwg.mxu0
        %v795 = vadd.f32 %v394, %v669
        %v796 = vadd.f32 %v395, %v672
        %v797 = vadd.f32 %v396, %v677
        %v798 = vadd.f32 %v397, %v680
        %v799 = vadd.f32 %v398, %v685
        %v800 = vadd.f32 %v399, %v688
        %v801 = vadd.f32 %v400, %v693
        %v802 = vadd.f32 %v401, %v696
        %v803 = vadd.f32 %v402, %v701
        %v804 = vadd.f32 %v403, %v704
        %v805 = vadd.f32 %v404, %v709
        %v806 = vadd.f32 %v405, %v712
        %v807 = vadd.f32 %v406, %v717
        %v808 = vadd.f32 %v407, %v720
        %v809 = vadd.f32 %v408, %v725
        %v810 = vadd.f32 %v409, %v728
        %v811 = vadd.f32 %v410, %v733
        %v812 = vadd.f32 %v411, %v736
        %v813 = vadd.f32 %v412, %v741
        %v814 = vadd.f32 %v413, %v744
        %v815 = vadd.f32 %v414, %v749
        %v816 = vadd.f32 %v415, %v752
        %v817 = vadd.f32 %v416, %v757
        %v818 = vadd.f32 %v417, %v760
        %v819 = vadd.f32 %v418, %v765
        %v820 = vadd.f32 %v419, %v768
        %v821 = vadd.f32 %v420, %v773
        %v822 = vadd.f32 %v421, %v776
        %v823 = vadd.f32 %v422, %v781
        %v824 = vadd.f32 %v423, %v784
        %v825 = vadd.f32 %v424, %v789
        %v826 = vadd.f32 %v425, %v792
        %827 = vst [vmem:[#allocation2] sm:$0xff] %v795
        %828 = vst [vmem:[#allocation2 + $0x8] sm:$0xff] %v796
        %829 = vst [vmem:[#allocation2 + $0x10] sm:$0xff] %v797
        %830 = vst [vmem:[#allocation2 + $0x18] sm:$0xff] %v798
        %831 = vst [vmem:[#allocation2 + $0x20] sm:$0xff] %v799
        %832 = vst [vmem:[#allocation2 + $0x28] sm:$0xff] %v800
        %833 = vst [vmem:[#allocation2 + $0x30] sm:$0xff] %v801
        %834 = vst [vmem:[#allocation2 + $0x38] sm:$0xff] %v802
        %835 = vst [vmem:[#allocation2 + $0x40] sm:$0xff] %v803
        %836 = vst [vmem:[#allocation2 + $0x48] sm:$0xff] %v804
        %837 = vst [vmem:[#allocation2 + $0x50] sm:$0xff] %v805
        %838 = vst [vmem:[#allocation2 + $0x58] sm:$0xff] %v806
        %839 = vst [vmem:[#allocation2 + $0x60] sm:$0xff] %v807
        %840 = vst [vmem:[#allocation2 + $0x68] sm:$0xff] %v808
        %841 = vst [vmem:[#allocation2 + $0x70] sm:$0xff] %v809
        %842 = vst [vmem:[#allocation2 + $0x78] sm:$0xff] %v810
        %843 = vst [vmem:[#allocation2 + $0x80] sm:$0xff] %v811
        %844 = vst [vmem:[#allocation2 + $0x88] sm:$0xff] %v812
        %845 = vst [vmem:[#allocation2 + $0x90] sm:$0xff] %v813
        %846 = vst [vmem:[#allocation2 + $0x98] sm:$0xff] %v814
        %847 = vst [vmem:[#allocation2 + $0xa0] sm:$0xff] %v815
        %848 = vst [vmem:[#allocation2 + $0xa8] sm:$0xff] %v816
        %849 = vst [vmem:[#allocation2 + $0xb0] sm:$0xff] %v817
        %850 = vst [vmem:[#allocation2 + $0xb8] sm:$0xff] %v818
        %851 = vst [vmem:[#allocation2 + $0xc0] sm:$0xff] %v819
        %852 = vst [vmem:[#allocation2 + $0xc8] sm:$0xff] %v820
        %853 = vst [vmem:[#allocation2 + $0xd0] sm:$0xff] %v821
        %854 = vst [vmem:[#allocation2 + $0xd8] sm:$0xff] %v822
        %855 = vst [vmem:[#allocation2 + $0xe0] sm:$0xff] %v823
        %856 = vst [vmem:[#allocation2 + $0xe8] sm:$0xff] %v824
        %857 = vst [vmem:[#allocation2 + $0xf0] sm:$0xff] %v825
        %858 = vst [vmem:[#allocation2 + $0xf8] sm:$0xff] %v826
        %p859 = scmp.eq.s32.totalorder %s18, 2
        // Predicated region
        $region71: #{recurrent_gconv_lstm_forward.4} parent=61 // pred_check
          %p860 = pneg %p859
        $region72: #{recurrent_gconv_lstm_forward.4} parent=61 // pred_check_branch
          %862 = sbr.rel (%p860) target = $region74
        $region73: #{recurrent_gconv_lstm_forward.4} parent=61 // pred_region
          %v863 = vld [vmem:[#allocation2] sm:$0xff]
          %v864 = vld [vmem:[#allocation2 + $0x8] sm:$0xff]
          %v865 = vld [vmem:[#allocation2 + $0x10] sm:$0xff]
          %v866 = vld [vmem:[#allocation2 + $0x18] sm:$0xff]
          %v867 = vld [vmem:[#allocation2 + $0x20] sm:$0xff]
          %v868 = vld [vmem:[#allocation2 + $0x28] sm:$0xff]
          %v869 = vld [vmem:[#allocation2 + $0x30] sm:$0xff]
          %v870 = vld [vmem:[#allocation2 + $0x38] sm:$0xff]
          %v871 = vld [vmem:[#allocation2 + $0x40] sm:$0xff]
          %v872 = vld [vmem:[#allocation2 + $0x48] sm:$0xff]
          %v873 = vld [vmem:[#allocation2 + $0x50] sm:$0xff]
          %v874 = vld [vmem:[#allocation2 + $0x58] sm:$0xff]
          %v875 = vld [vmem:[#allocation2 + $0x60] sm:$0xff]
          %v876 = vld [vmem:[#allocation2 + $0x68] sm:$0xff]
          %v877 = vld [vmem:[#allocation2 + $0x70] sm:$0xff]
          %v878 = vld [vmem:[#allocation2 + $0x78] sm:$0xff]
          %v879 = vld [vmem:[#allocation2 + $0x80] sm:$0xff]
          %v880 = vld [vmem:[#allocation2 + $0x88] sm:$0xff]
          %v881 = vld [vmem:[#allocation2 + $0x90] sm:$0xff]
          %v882 = vld [vmem:[#allocation2 + $0x98] sm:$0xff]
          %v883 = vld [vmem:[#allocation2 + $0xa0] sm:$0xff]
          %v884 = vld [vmem:[#allocation2 + $0xa8] sm:$0xff]
          %v885 = vld [vmem:[#allocation2 + $0xb0] sm:$0xff]
          %v886 = vld [vmem:[#allocation2 + $0xb8] sm:$0xff]
          %v887 = vld [vmem:[#allocation2 + $0xc0] sm:$0xff]
          %v888 = vld [vmem:[#allocation2 + $0xc8] sm:$0xff]
          %v889 = vld [vmem:[#allocation2 + $0xd0] sm:$0xff]
          %v890 = vld [vmem:[#allocation2 + $0xd8] sm:$0xff]
          %v891 = vld [vmem:[#allocation2 + $0xe0] sm:$0xff]
          %v892 = vld [vmem:[#allocation2 + $0xe8] sm:$0xff]
          %v893 = vld [vmem:[#allocation2 + $0xf0] sm:$0xff]
          %v894 = vld [vmem:[#allocation2 + $0xf8] sm:$0xff]
          %895 = vst [vmem:[%s321] sm:$0xff] %v863
          %896 = vst [vmem:[%s321 + $0x8] sm:$0xff] %v864
          %897 = vst [vmem:[%s321 + $0x10] sm:$0xff] %v865
          %898 = vst [vmem:[%s321 + $0x18] sm:$0xff] %v866
          %899 = vst [vmem:[%s321 + $0x20] sm:$0xff] %v867
          %900 = vst [vmem:[%s321 + $0x28] sm:$0xff] %v868
          %901 = vst [vmem:[%s321 + $0x30] sm:$0xff] %v869
          %902 = vst [vmem:[%s321 + $0x38] sm:$0xff] %v870
          %903 = vst [vmem:[%s321 + $0x40] sm:$0xff] %v871
          %904 = vst [vmem:[%s321 + $0x48] sm:$0xff] %v872
          %905 = vst [vmem:[%s321 + $0x50] sm:$0xff] %v873
          %906 = vst [vmem:[%s321 + $0x58] sm:$0xff] %v874
          %907 = vst [vmem:[%s321 + $0x60] sm:$0xff] %v875
          %908 = vst [vmem:[%s321 + $0x68] sm:$0xff] %v876
          %909 = vst [vmem:[%s321 + $0x70] sm:$0xff] %v877
          %910 = vst [vmem:[%s321 + $0x78] sm:$0xff] %v878
          %911 = vst [vmem:[%s321 + $0x80] sm:$0xff] %v879
          %912 = vst [vmem:[%s321 + $0x88] sm:$0xff] %v880
          %913 = vst [vmem:[%s321 + $0x90] sm:$0xff] %v881
          %914 = vst [vmem:[%s321 + $0x98] sm:$0xff] %v882
          %915 = vst [vmem:[%s321 + $0xa0] sm:$0xff] %v883
          %916 = vst [vmem:[%s321 + $0xa8] sm:$0xff] %v884
          %917 = vst [vmem:[%s321 + $0xb0] sm:$0xff] %v885
          %918 = vst [vmem:[%s321 + $0xb8] sm:$0xff] %v886
          %919 = vst [vmem:[%s321 + $0xc0] sm:$0xff] %v887
          %920 = vst [vmem:[%s321 + $0xc8] sm:$0xff] %v888
          %921 = vst [vmem:[%s321 + $0xd0] sm:$0xff] %v889
          %922 = vst [vmem:[%s321 + $0xd8] sm:$0xff] %v890
          %923 = vst [vmem:[%s321 + $0xe0] sm:$0xff] %v891
          %924 = vst [vmem:[%s321 + $0xe8] sm:$0xff] %v892
          %925 = vst [vmem:[%s321 + $0xf0] sm:$0xff] %v893
          %926 = vst [vmem:[%s321 + $0xf8] sm:$0xff] %v894
        $region74: #{recurrent_gconv_lstm_forward.4} parent=61 // pred_fallthru
          _
        %s927 = smul.u32 32, %s17
        %p928 = scmp.lt.s32.totalorder %s927, 95
        %s929 = scalar_select %p928, %s927, 95
        %s930 = smul.addr %s929, 8
        %s931 = scalar_lea.vmem %s2, %s930
        // Predicated region
        $region75: #{recurrent_gconv_lstm_forward.4} parent=61 // pred_check
          %p932 = pneg %p92
        $region76: #{recurrent_gconv_lstm_forward.4} parent=61 // pred_check_branch
          %934 = sbr.rel (%p932) target = $region78
        $region77: #{recurrent_gconv_lstm_forward.4} parent=61 // pred_region
          %s935 = smul.u32 32, %s17
        $region78: #{recurrent_gconv_lstm_forward.4} parent=61 // pred_fallthru
          _
      $region62: #{recurrent_gconv_lstm_forward.4} parent=5 // pred_fallthru
        _
      %p936 = scmp.le.s32.totalorder 2, %s8
      // Predicated region
      $region79: #{recurrent_gconv_lstm_forward.4} parent=5 // pred_check
        %p937 = pneg %p936
      $region80: #{recurrent_gconv_lstm_forward.4} parent=5 // pred_check_branch
        %939 = sbr.rel (%p937) target = $region82
      $region81: #{recurrent_gconv_lstm_forward.4} parent=5 // pred_region
        %s940 = ssub.s32 %s8, 2
        // Predicated region
        $region83: #{recurrent_gconv_lstm_forward.4} parent=81 // pred_check
          %p941 = pneg %p98
        $region84: #{recurrent_gconv_lstm_forward.4} parent=81 // pred_check_branch
          %943 = sbr.rel (%p941) target = $region86
        $region85: #{recurrent_gconv_lstm_forward.4} parent=81 // pred_region
          %s944 = smul.u32 32, %s19
          %p945 = scmp.lt.s32.totalorder %s944, 95
          %s946 = scalar_select %p945, %s944, 95
          %s947 = smul.addr %s946, 8
          %s948 = scalar_lea.vmem %s2, %s947
        $region86: #{recurrent_gconv_lstm_forward.4} parent=81 // pred_fallthru
          _
      $region82: #{recurrent_gconv_lstm_forward.4} parent=5 // pred_fallthru
        _
    $region6: #{recurrent_gconv_lstm_forward.4} parent=1 // loop_footer
      %s12 = sadd.s32 1, %s8
    $region7: #{recurrent_gconv_lstm_forward.4} parent=1 // loop_footer_branch
      %7 = sbr.rel target = $region3
    $region8: #{recurrent_gconv_lstm_forward.4} parent=1 // loop_exit
      _

// kernel: recurrent_gconv_lstm_forward.5
$region0: #{recurrent_gconv_lstm_forward.5}
  #allocation0 [shape = 'u32[]', space=smem, size = 0x4, offset = 0x4, fixed_abs, tag = 'smem constant byte address 0x4 - core index']
  #allocation1 [shape = 'u32[144,128]{1,0:T(1,128)}', space=vmem, size = 0x12000, scoped, tag = 'internal scratch']
  #allocation2 [shape = 'f32[256,128]{1,0:T(8,128)}', space=vmem, size = 0x20000, scoped, tag = 'scratch operand']
  %s0 = inlined_call_operand.vmem [shape: bf16[768,768], index: 0, kind: input, shape index: {}]
  %s1 = inlined_call_operand.vmem [shape: f32[768,128], index: 1, kind: input, shape index: {}]
  %s2 = inlined_call_operand.vmem [shape: f32[768,128], index: 2, kind: input, shape index: {}]
  %s3 = inlined_call_operand.vmem [shape: f32[768,128], index: 3, kind: output, shape index: {}]
  %s4 = sld [smem:[#allocation0]]
  $region91: #{recurrent_gconv_lstm_forward.5} parent=0
    _
  %s6 = ssub.s32 1, %s4
  %s7 = scalar_select 0, %s6, %s4
  $region1: #{recurrent_gconv_lstm_forward.5} parent=0
    #allocation3 [shape = 'u8[262144]{0}', space=vmem, size = 0x40000, scoped, tag = 'input window, operand 0']
    loop: start=0, step=1, limit=11
    $region2: #{recurrent_gconv_lstm_forward.5} parent=1 // loop_pre_header
      _
    $region3: #{recurrent_gconv_lstm_forward.5} parent=1 // loop_header
      %s9 = sphi 0, %s13
      %p10 = scmp.ge.s32.totalorder %s9, 11
      %s16 = sphi 0, %s28
      %s17 = sphi 0, %s24
      %s18 = sphi 0, %s16
      %s19 = sphi 0, %s17
      %s20 = sphi 0, %s18
      %s21 = sphi 0, %s19
      %s33 = sphi 0, %s35
      %s36 = sphi 0, %s33
      %s37 = sphi 0, %s36
      %s53 = sphi 0, %s37
      %s57 = sphi 0, %s57
      %s59 = sphi 0, %s57
      %s60 = sphi 0, %s59
      %s74 = sphi 0, %s60
      %s80 = sphi 0, %s82
      %s83 = sphi 0, %s80
      %s84 = sphi 0, %s83
      %s100 = sphi 0, %s84
      %s106 = sphi 0, %s108
      %s109 = sphi 0, %s106
      %s110 = sphi 0, %s109
      %s126 = sphi 0, %s110
    $region4: #{recurrent_gconv_lstm_forward.5} parent=1 // loop_header_branch
      %12 = sbr.rel (%p10) target = $region8
    $region5: #{recurrent_gconv_lstm_forward.5} parent=1 // loop_body
      %s14 = ssub.s32 %s9, 1
      %s15 = ssub.s32 %s9, 2
      %s22 = sadd.s32 1, %s17
      %p23 = scmp.ge.s32.totalorder %s22, 3
      %s24 = scalar_select %p23, 0, %s22
      %s25 = sadd.s32 1, %s16
      %s26 = scalar_select %p23, %s25, %s16
      %p27 = scmp.ge.s32.totalorder %s26, 3
      %s28 = scalar_select %p27, 0, %s26
      %s29 = ssub.s32 %s16, %s28
      %s30 = ssub.s32 %s17, %s24
      %s31 = sor.u32 %s29, %s30
      %p32 = scmp.eq.s32.totalorder %s31, 0
      %s34 = sadd.s32 %s33, 1
      %s35 = scalar_select %p32, %s33, %s34
      %p38 = pneg %p32
      %p39 = scmp.eq.s32.totalorder %s9, 8
      %p40 = por %p38, %p39
      %p41 = scmp.ne.s32.totalorder %s33, %s36
      %p42 = scmp.eq.s32.totalorder %s9, 0
      %p43 = por %p41, %p42
      %p44 = scmp.ne.s32.totalorder %s33, %s36
      %p45 = scmp.eq.s32.totalorder %s14, 8
      %p46 = por %p44, %p45
      %p47 = scmp.ne.s32.totalorder %s36, %s37
      %p48 = scmp.eq.s32.totalorder %s14, 0
      %p49 = por %p47, %p48
      %p50 = scmp.ne.s32.totalorder %s36, %s37
      %p51 = scmp.eq.s32.totalorder %s15, 8
      %p52 = por %p50, %p51
      %p54 = scmp.ne.s32.totalorder %s37, %s53
      %p55 = scmp.eq.s32.totalorder %s15, 0
      %p56 = por %p54, %p55
      %s58 = sadd.s32 %s57, 1
      %p61 = scmp.eq.s32.totalorder %s9, 8
      %p62 = scmp.ne.s32.totalorder %s57, %s59
      %p63 = scmp.eq.s32.totalorder %s9, 0
      %p64 = por %p62, %p63
      %p65 = scmp.ne.s32.totalorder %s57, %s59
      %p66 = scmp.eq.s32.totalorder %s14, 8
      %p67 = por %p65, %p66
      %p68 = scmp.ne.s32.totalorder %s59, %s60
      %p69 = scmp.eq.s32.totalorder %s14, 0
      %p70 = por %p68, %p69
      %p71 = scmp.ne.s32.totalorder %s59, %s60
      %p72 = scmp.eq.s32.totalorder %s15, 8
      %p73 = por %p71, %p72
      %p75 = scmp.ne.s32.totalorder %s60, %s74
      %p76 = scmp.eq.s32.totalorder %s15, 0
      %p77 = por %p75, %p76
      %s78 = ssub.s32 %s16, %s28
      %p79 = scmp.eq.s32.totalorder %s78, 0
      %s81 = sadd.s32 %s80, 1
      %s82 = scalar_select %p79, %s80, %s81
      %p85 = pneg %p79
      %p86 = scmp.eq.s32.totalorder %s9, 8
      %p87 = por %p85, %p86
      %p88 = scmp.ne.s32.totalorder %s80, %s83
      %p89 = scmp.eq.s32.totalorder %s9, 0
      %p90 = por %p88, %p89
      %p91 = scmp.ne.s32.totalorder %s80, %s83
      %p92 = scmp.eq.s32.totalorder %s14, 8
      %p93 = por %p91, %p92
      %p94 = scmp.ne.s32.totalorder %s83, %s84
      %p95 = scmp.eq.s32.totalorder %s14, 0
      %p96 = por %p94, %p95
      %p97 = scmp.ne.s32.totalorder %s83, %s84
      %p98 = scmp.eq.s32.totalorder %s15, 8
      %p99 = por %p97, %p98
      %p101 = scmp.ne.s32.totalorder %s84, %s100
      %p102 = scmp.eq.s32.totalorder %s15, 0
      %p103 = por %p101, %p102
      %s104 = ssub.s32 %s16, %s28
      %p105 = scmp.eq.s32.totalorder %s104, 0
      %s107 = sadd.s32 %s106, 1
      %s108 = scalar_select %p105, %s106, %s107
      %p111 = pneg %p105
      %p112 = scmp.eq.s32.totalorder %s9, 8
      %p113 = por %p111, %p112
      %p114 = scmp.ne.s32.totalorder %s106, %s109
      %p115 = scmp.eq.s32.totalorder %s9, 0
      %p116 = por %p114, %p115
      %p117 = scmp.ne.s32.totalorder %s106, %s109
      %p118 = scmp.eq.s32.totalorder %s14, 8
      %p119 = por %p117, %p118
      %p120 = scmp.ne.s32.totalorder %s109, %s110
      %p121 = scmp.eq.s32.totalorder %s14, 0
      %p122 = por %p120, %p121
      %p123 = scmp.ne.s32.totalorder %s109, %s110
      %p124 = scmp.eq.s32.totalorder %s15, 8
      %p125 = por %p123, %p124
      %p127 = scmp.ne.s32.totalorder %s110, %s126
      %p128 = scmp.eq.s32.totalorder %s15, 0
      %p129 = por %p127, %p128
      %p130 = scmp.le.s32.totalorder 1, %s9
      %p131 = scmp.lt.s32.totalorder %s9, 10
      %p132 = pnand %p130, %p131
      %p133 = pneg %p132
      // Predicated region
      $region9: #{recurrent_gconv_lstm_forward.5} parent=5 // pred_check
        _
      $region10: #{recurrent_gconv_lstm_forward.5} parent=5 // pred_check_branch
        %135 = sbr.rel (%p132) target = $region12
      $region11: #{recurrent_gconv_lstm_forward.5} parent=5 // pred_region
        %s136 = ssub.s32 %s9, 1
        // Predicated region
        $region13: #{recurrent_gconv_lstm_forward.5} parent=11 // pred_check
          %p137 = pneg %p70
        $region14: #{recurrent_gconv_lstm_forward.5} parent=11 // pred_check_branch
          %139 = sbr.rel (%p137) target = $region16
        $region15: #{recurrent_gconv_lstm_forward.5} parent=11 // pred_region
          _
        $region16: #{recurrent_gconv_lstm_forward.5} parent=11 // pred_fallthru
          _
      $region12: #{recurrent_gconv_lstm_forward.5} parent=5 // pred_fallthru
        _
      %p140 = scmp.lt.s32.totalorder %s9, 9
      // Predicated region
      $region17: #{recurrent_gconv_lstm_forward.5} parent=5 // pred_check
        %p141 = pneg %p140
      $region18: #{recurrent_gconv_lstm_forward.5} parent=5 // pred_check_branch
        %143 = sbr.rel (%p141) target = $region20
      $region19: #{recurrent_gconv_lstm_forward.5} parent=5 // pred_region
        // Predicated region
        $region21: #{recurrent_gconv_lstm_forward.5} parent=19 // pred_check
          %p144 = pneg %p43
        $region22: #{recurrent_gconv_lstm_forward.5} parent=19 // pred_check_branch
          %146 = sbr.rel (%p144) target = $region24
        $region23: #{recurrent_gconv_lstm_forward.5} parent=19 // pred_region
          %s147 = sand.u32 %s33, 1
          %s148 = sand.u32 %s33, 1
          %s149 = smul.addr %s148, 256
          %s150 = scalar_lea.vmem [#allocation3], %s149
          %s151 = smul.u32 32, %s16
          %s152 = smul.u32 2, %s17
          %s153 = smul.addr %s151, 6
          %s154 = sadd.s32 %s152, %s153
          %s155 = smul.addr %s154, 4
          %s156 = scalar_lea.vmem %s0, %s155
          // Predicated region
          $region25: #{recurrent_gconv_lstm_forward.5} parent=23 // pred_check
            _
          $region26: #{recurrent_gconv_lstm_forward.5} parent=23 // pred_check_branch
            %158 = sbr.rel (0) target = $region28
          $region27: #{recurrent_gconv_lstm_forward.5} parent=23 // pred_region
            // Predicated region
            $region29: #{recurrent_gconv_lstm_forward.5} parent=27 // pred_check
              _
            $region30: #{recurrent_gconv_lstm_forward.5} parent=27 // pred_check_branch
              %160 = sbr.rel (0) target = $region32
            $region31: #{recurrent_gconv_lstm_forward.5} parent=27 // pred_region
              // Predicated region
              $region44: #{recurrent_gconv_lstm_forward.5} parent=31 // pred_check
                _
              $region45: #{recurrent_gconv_lstm_forward.5} parent=31 // pred_check_branch
                %237 = sbr.rel (0) target = $region47
              $region46: #{recurrent_gconv_lstm_forward.5} parent=31 // pred_region
                loop: start=0, step=1, limit=1
                $region48: #{recurrent_gconv_lstm_forward.5} parent=46 // loop_pre_header
                  _
                $region49: #{recurrent_gconv_lstm_forward.5} parent=46 // loop_header
                  %s239 = sphi 0, %s243
                  %p240 = scmp.ge.s32.totalorder %s239, 1
                  %s244 = sphi %s156, %s156
                  %s245 = sphi %s150, %s150
                $region50: #{recurrent_gconv_lstm_forward.5} parent=46 // loop_header_branch
                  %242 = sbr.rel (%p240) target = $region54
                $region51: #{recurrent_gconv_lstm_forward.5} parent=46 // loop_body
                  %v246 = vld [vmem:[%s244] sm:$0xff]
                  %247 = vst [vmem:[%s245] sm:$0xff] %v246
                  %v248 = vld [vmem:[%s244 + $0x18] sm:$0xff]
                  %249 = vst [vmem:[%s245 + $0x8] sm:$0xff] %v248
                  %v250 = vld [vmem:[%s244 + $0x30] sm:$0xff]
                  %251 = vst [vmem:[%s245 + $0x10] sm:$0xff] %v250
                  %v252 = vld [vmem:[%s244 + $0x48] sm:$0xff]
                  %253 = vst [vmem:[%s245 + $0x18] sm:$0xff] %v252
                  %v254 = vld [vmem:[%s244 + $0x60] sm:$0xff]
                  %255 = vst [vmem:[%s245 + $0x20] sm:$0xff] %v254
                  %v256 = vld [vmem:[%s244 + $0x78] sm:$0xff]
                  %257 = vst [vmem:[%s245 + $0x28] sm:$0xff] %v256
                  %v258 = vld [vmem:[%s244 + $0x90] sm:$0xff]
                  %259 = vst [vmem:[%s245 + $0x30] sm:$0xff] %v258
                  %v260 = vld [vmem:[%s244 + $0xa8] sm:$0xff]
                  %261 = vst [vmem:[%s245 + $0x38] sm:$0xff] %v260
                  %v262 = vld [vmem:[%s244 + $0xc0] sm:$0xff]
                  %263 = vst [vmem:[%s245 + $0x40] sm:$0xff] %v262
                  %v264 = vld [vmem:[%s244 + $0xd8] sm:$0xff]
                  %265 = vst [vmem:[%s245 + $0x48] sm:$0xff] %v264
                  %v266 = vld [vmem:[%s244 + $0xf0] sm:$0xff]
                  %267 = vst [vmem:[%s245 + $0x50] sm:$0xff] %v266
                  %v268 = vld [vmem:[%s244 + $0x108] sm:$0xff]
                  %269 = vst [vmem:[%s245 + $0x58] sm:$0xff] %v268
                  %v270 = vld [vmem:[%s244 + $0x120] sm:$0xff]
                  %271 = vst [vmem:[%s245 + $0x60] sm:$0xff] %v270
                  %v272 = vld [vmem:[%s244 + $0x138] sm:$0xff]
                  %273 = vst [vmem:[%s245 + $0x68] sm:$0xff] %v272
                  %v274 = vld [vmem:[%s244 + $0x150] sm:$0xff]
                  %275 = vst [vmem:[%s245 + $0x70] sm:$0xff] %v274
                  %v276 = vld [vmem:[%s244 + $0x168] sm:$0xff]
                  %277 = vst [vmem:[%s245 + $0x78] sm:$0xff] %v276
                  %v278 = vld [vmem:[%s244 + $0x180] sm:$0xff]
                  %279 = vst [vmem:[%s245 + $0x80] sm:$0xff] %v278
                  %v280 = vld [vmem:[%s244 + $0x198] sm:$0xff]
                  %281 = vst [vmem:[%s245 + $0x88] sm:$0xff] %v280
                  %v282 = vld [vmem:[%s244 + $0x1b0] sm:$0xff]
                  %283 = vst [vmem:[%s245 + $0x90] sm:$0xff] %v282
                  %v284 = vld [vmem:[%s244 + $0x1c8] sm:$0xff]
                  %285 = vst [vmem:[%s245 + $0x98] sm:$0xff] %v284
                  %v286 = vld [vmem:[%s244 + $0x1e0] sm:$0xff]
                  %287 = vst [vmem:[%s245 + $0xa0] sm:$0xff] %v286
                  %v288 = vld [vmem:[%s244 + $0x1f8] sm:$0xff]
                  %289 = vst [vmem:[%s245 + $0xa8] sm:$0xff] %v288
                  %v290 = vld [vmem:[%s244 + $0x210] sm:$0xff]
                  %291 = vst [vmem:[%s245 + $0xb0] sm:$0xff] %v290
                  %v292 = vld [vmem:[%s244 + $0x228] sm:$0xff]
                  %293 = vst [vmem:[%s245 + $0xb8] sm:$0xff] %v292
                  %v294 = vld [vmem:[%s244 + $0x240] sm:$0xff]
                  %295 = vst [vmem:[%s245 + $0xc0] sm:$0xff] %v294
                  %v296 = vld [vmem:[%s244 + $0x258] sm:$0xff]
                  %297 = vst [vmem:[%s245 + $0xc8] sm:$0xff] %v296
                  %v298 = vld [vmem:[%s244 + $0x270] sm:$0xff]
                  %299 = vst [vmem:[%s245 + $0xd0] sm:$0xff] %v298
                  %v300 = vld [vmem:[%s244 + $0x288] sm:$0xff]
                  %301 = vst [vmem:[%s245 + $0xd8] sm:$0xff] %v300
                  %v302 = vld [vmem:[%s244 + $0x2a0] sm:$0xff]
                  %303 = vst [vmem:[%s245 + $0xe0] sm:$0xff] %v302
                  %v304 = vld [vmem:[%s244 + $0x2b8] sm:$0xff]
                  %305 = vst [vmem:[%s245 + $0xe8] sm:$0xff] %v304
                  %v306 = vld [vmem:[%s244 + $0x2d0] sm:$0xff]
                  %307 = vst [vmem:[%s245 + $0xf0] sm:$0xff] %v306
                  %v308 = vld [vmem:[%s244 + $0x2e8] sm:$0xff]
                  %309 = vst [vmem:[%s245 + $0xf8] sm:$0xff] %v308
                $region52: #{recurrent_gconv_lstm_forward.5} parent=46 // loop_footer
                  %s243 = sadd.s32 1, %s239
                $region53: #{recurrent_gconv_lstm_forward.5} parent=46 // loop_footer_branch
                  %238 = sbr.rel target = $region49
                $region54: #{recurrent_gconv_lstm_forward.5} parent=46 // loop_exit
                  _
              $region47: #{recurrent_gconv_lstm_forward.5} parent=31 // pred_fallthru
                _
              // Predicated region
              $region55: #{recurrent_gconv_lstm_forward.5} parent=31 // pred_check
                _
              $region56: #{recurrent_gconv_lstm_forward.5} parent=31 // pred_check_branch
                %311 = sbr.rel target = $region58
              $region57: #{recurrent_gconv_lstm_forward.5} parent=31 // pred_region
                _
              $region58: #{recurrent_gconv_lstm_forward.5} parent=31 // pred_fallthru
                _
            $region32: #{recurrent_gconv_lstm_forward.5} parent=27 // pred_fallthru
              _
            // Predicated region
            $region33: #{recurrent_gconv_lstm_forward.5} parent=27 // pred_check
              _
            $region34: #{recurrent_gconv_lstm_forward.5} parent=27 // pred_check_branch
              %162 = sbr.rel target = $region36
            $region35: #{recurrent_gconv_lstm_forward.5} parent=27 // pred_region
              loop: start=0, step=1, limit=1
              $region37: #{recurrent_gconv_lstm_forward.5} parent=35 // loop_pre_header
                _
              $region38: #{recurrent_gconv_lstm_forward.5} parent=35 // loop_header
                %s165 = sphi 0, %s169
                %p166 = scmp.ge.s32.totalorder %s165, 1
                %s170 = sphi %s156, %s156
                %s171 = sphi %s150, %s150
              $region39: #{recurrent_gconv_lstm_forward.5} parent=35 // loop_header_branch
                %168 = sbr.rel (%p166) target = $region43
              $region40: #{recurrent_gconv_lstm_forward.5} parent=35 // loop_body
                %v172 = vld [vmem:[%s170] sm:$0xff]
                %173 = vst [vmem:[%s171] sm:$0xff] %v172
                %v174 = vld [vmem:[%s170 + $0x18] sm:$0xff]
                %175 = vst [vmem:[%s171 + $0x8] sm:$0xff] %v174
                %v176 = vld [vmem:[%s170 + $0x30] sm:$0xff]
                %177 = vst [vmem:[%s171 + $0x10] sm:$0xff] %v176
                %v178 = vld [vmem:[%s170 + $0x48] sm:$0xff]
                %179 = vst [vmem:[%s171 + $0x18] sm:$0xff] %v178
                %v180 = vld [vmem:[%s170 + $0x60] sm:$0xff]
                %181 = vst [vmem:[%s171 + $0x20] sm:$0xff] %v180
                %v182 = vld [vmem:[%s170 + $0x78] sm:$0xff]
                %183 = vst [vmem:[%s171 + $0x28] sm:$0xff] %v182
                %v184 = vld [vmem:[%s170 + $0x90] sm:$0xff]
                %185 = vst [vmem:[%s171 + $0x30] sm:$0xff] %v184
                %v186 = vld [vmem:[%s170 + $0xa8] sm:$0xff]
                %187 = vst [vmem:[%s171 + $0x38] sm:$0xff] %v186
                %v188 = vld [vmem:[%s170 + $0xc0] sm:$0xff]
                %189 = vst [vmem:[%s171 + $0x40] sm:$0xff] %v188
                %v190 = vld [vmem:[%s170 + $0xd8] sm:$0xff]
                %191 = vst [vmem:[%s171 + $0x48] sm:$0xff] %v190
                %v192 = vld [vmem:[%s170 + $0xf0] sm:$0xff]
                %193 = vst [vmem:[%s171 + $0x50] sm:$0xff] %v192
                %v194 = vld [vmem:[%s170 + $0x108] sm:$0xff]
                %195 = vst [vmem:[%s171 + $0x58] sm:$0xff] %v194
                %v196 = vld [vmem:[%s170 + $0x120] sm:$0xff]
                %197 = vst [vmem:[%s171 + $0x60] sm:$0xff] %v196
                %v198 = vld [vmem:[%s170 + $0x138] sm:$0xff]
                %199 = vst [vmem:[%s171 + $0x68] sm:$0xff] %v198
                %v200 = vld [vmem:[%s170 + $0x150] sm:$0xff]
                %201 = vst [vmem:[%s171 + $0x70] sm:$0xff] %v200
                %v202 = vld [vmem:[%s170 + $0x168] sm:$0xff]
                %203 = vst [vmem:[%s171 + $0x78] sm:$0xff] %v202
                %v204 = vld [vmem:[%s170 + $0x180] sm:$0xff]
                %205 = vst [vmem:[%s171 + $0x80] sm:$0xff] %v204
                %v206 = vld [vmem:[%s170 + $0x198] sm:$0xff]
                %207 = vst [vmem:[%s171 + $0x88] sm:$0xff] %v206
                %v208 = vld [vmem:[%s170 + $0x1b0] sm:$0xff]
                %209 = vst [vmem:[%s171 + $0x90] sm:$0xff] %v208
                %v210 = vld [vmem:[%s170 + $0x1c8] sm:$0xff]
                %211 = vst [vmem:[%s171 + $0x98] sm:$0xff] %v210
                %v212 = vld [vmem:[%s170 + $0x1e0] sm:$0xff]
                %213 = vst [vmem:[%s171 + $0xa0] sm:$0xff] %v212
                %v214 = vld [vmem:[%s170 + $0x1f8] sm:$0xff]
                %215 = vst [vmem:[%s171 + $0xa8] sm:$0xff] %v214
                %v216 = vld [vmem:[%s170 + $0x210] sm:$0xff]
                %217 = vst [vmem:[%s171 + $0xb0] sm:$0xff] %v216
                %v218 = vld [vmem:[%s170 + $0x228] sm:$0xff]
                %219 = vst [vmem:[%s171 + $0xb8] sm:$0xff] %v218
                %v220 = vld [vmem:[%s170 + $0x240] sm:$0xff]
                %221 = vst [vmem:[%s171 + $0xc0] sm:$0xff] %v220
                %v222 = vld [vmem:[%s170 + $0x258] sm:$0xff]
                %223 = vst [vmem:[%s171 + $0xc8] sm:$0xff] %v222
                %v224 = vld [vmem:[%s170 + $0x270] sm:$0xff]
                %225 = vst [vmem:[%s171 + $0xd0] sm:$0xff] %v224
                %v226 = vld [vmem:[%s170 + $0x288] sm:$0xff]
                %227 = vst [vmem:[%s171 + $0xd8] sm:$0xff] %v226
                %v228 = vld [vmem:[%s170 + $0x2a0] sm:$0xff]
                %229 = vst [vmem:[%s171 + $0xe0] sm:$0xff] %v228
                %v230 = vld [vmem:[%s170 + $0x2b8] sm:$0xff]
                %231 = vst [vmem:[%s171 + $0xe8] sm:$0xff] %v230
                %v232 = vld [vmem:[%s170 + $0x2d0] sm:$0xff]
                %233 = vst [vmem:[%s171 + $0xf0] sm:$0xff] %v232
                %v234 = vld [vmem:[%s170 + $0x2e8] sm:$0xff]
                %235 = vst [vmem:[%s171 + $0xf8] sm:$0xff] %v234
              $region41: #{recurrent_gconv_lstm_forward.5} parent=35 // loop_footer
                %s169 = sadd.s32 1, %s165
              $region42: #{recurrent_gconv_lstm_forward.5} parent=35 // loop_footer_branch
                %164 = sbr.rel target = $region38
              $region43: #{recurrent_gconv_lstm_forward.5} parent=35 // loop_exit
                _
            $region36: #{recurrent_gconv_lstm_forward.5} parent=27 // pred_fallthru
              _
          $region28: #{recurrent_gconv_lstm_forward.5} parent=23 // pred_fallthru
            _
          %312 = vnop
        $region24: #{recurrent_gconv_lstm_forward.5} parent=19 // pred_fallthru
          _
        // Predicated region
        $region59: #{recurrent_gconv_lstm_forward.5} parent=19 // pred_check
          %p313 = pneg %p90
        $region60: #{recurrent_gconv_lstm_forward.5} parent=19 // pred_check_branch
          %315 = sbr.rel (%p313) target = $region62
        $region61: #{recurrent_gconv_lstm_forward.5} parent=19 // pred_region
          %s316 = smul.u32 32, %s16
          %p317 = scmp.lt.s32.totalorder %s316, 95
          %s318 = scalar_select %p317, %s316, 95
          %s319 = smul.addr %s318, 8
          %s320 = scalar_lea.vmem %s2, %s319
          %s321 = smul.u32 32, %s16
        $region62: #{recurrent_gconv_lstm_forward.5} parent=19 // pred_fallthru
          _
      $region20: #{recurrent_gconv_lstm_forward.5} parent=5 // pred_fallthru
        _
      %p322 = scmp.le.s32.totalorder 1, %s9
      %p323 = scmp.lt.s32.totalorder %s9, 10
      %p324 = pnand %p322, %p323
      %p325 = pneg %p324
      // Predicated region
      $region63: #{recurrent_gconv_lstm_forward.5} parent=5 // pred_check
        _
      $region64: #{recurrent_gconv_lstm_forward.5} parent=5 // pred_check_branch
        %327 = sbr.rel (%p324) target = $region66
      $region65: #{recurrent_gconv_lstm_forward.5} parent=5 // pred_region
        %s328 = ssub.s32 %s9, 1
        %s329 = sand.u32 %s36, 1
        %s330 = sand.u32 %s36, 1
        %s331 = smul.addr %s330, 256
        %s332 = scalar_lea.vmem [#allocation3], %s331
        // Predicated region
        $region67: #{recurrent_gconv_lstm_forward.5} parent=65 // pred_check
          %p333 = pneg %p49
        $region68: #{recurrent_gconv_lstm_forward.5} parent=65 // pred_check_branch
          %335 = sbr.rel (%p333) target = $region70
        $region69: #{recurrent_gconv_lstm_forward.5} parent=65 // pred_region
          _
        $region70: #{recurrent_gconv_lstm_forward.5} parent=65 // pred_fallthru
          _
        %s336 = sand.u32 %s36, 1
        %s337 = sand.u32 %s36, 1
        %s338 = smul.addr %s337, 256
        %s339 = scalar_lea.vmem [#allocation3], %s338
        %p340 = pneg %p49
        %p341 = pneg %p46
        %p342 = pneg %p70
        %p343 = pneg %p67
        %s344 = smul.u32 32, %s18
        %p345 = scmp.lt.s32.totalorder %s344, 95
        %s346 = scalar_select %p345, %s344, 95
        %s347 = smul.addr %s346, 8
        %s348 = scalar_lea.vmem %s2, %s347
        %p349 = pneg %p96
        %p350 = pneg %p93
        %p351 = pneg %p122
        %p352 = pneg %p119
        %s353 = smul.u32 32, %s18
        %p354 = scmp.lt.s32.totalorder %s353, 95
        %s355 = scalar_select %p354, %s353, 95
        %s356 = smul.addr %s355, 8
        %s357 = scalar_lea.vmem %s3, %s356
        %s358 = smul.u32 32, %s18
        %s359 = smul.u32 2, %s19
        %s360 = smul.u32 32, %s18
        %p361 = scmp.lt.s32.totalorder %s360, 95
        %s362 = scalar_select %p361, %s360, 95
        %s363 = smul.addr %s362, 8
        %s364 = scalar_lea.vmem %s2, %s363
        %s365 = smul.u32 32, %s18
        %s366 = smul.u32 32, %s18
        %p367 = scmp.lt.s32.totalorder %s366, 95
        %s368 = scalar_select %p367, %s366, 95
        %s369 = smul.addr %s368, 8
        %s370 = scalar_lea.vmem %s3, %s369
        %s371 = smul.u32 32, %s18
        %p373 = scmp.eq.s32.totalorder %s19, 0
        // Predicated region
        $region71: #{recurrent_gconv_lstm_forward.5} parent=65 // pred_check
          %p374 = pneg %p373
        $region72: #{recurrent_gconv_lstm_forward.5} parent=65 // pred_check_branch
          %376 = sbr.rel (%p374) target = $region74
        $region73: #{recurrent_gconv_lstm_forward.5} parent=65 // pred_region
          %377 = vst [vmem:[#allocation2] sm:$0xff] 0.0
          %378 = vst [vmem:[#allocation2 + $0x8] sm:$0xff] 0.0
          %379 = vst [vmem:[#allocation2 + $0x10] sm:$0xff] 0.0
          %380 = vst [vmem:[#allocation2 + $0x18] sm:$0xff] 0.0
          %381 = vst [vmem:[#allocation2 + $0x20] sm:$0xff] 0.0
          %382 = vst [vmem:[#allocation2 + $0x28] sm:$0xff] 0.0
          %383 = vst [vmem:[#allocation2 + $0x30] sm:$0xff] 0.0
          %384 = vst [vmem:[#allocation2 + $0x38] sm:$0xff] 0.0
          %385 = vst [vmem:[#allocation2 + $0x40] sm:$0xff] 0.0
          %386 = vst [vmem:[#allocation2 + $0x48] sm:$0xff] 0.0
          %387 = vst [vmem:[#allocation2 + $0x50] sm:$0xff] 0.0
          %388 = vst [vmem:[#allocation2 + $0x58] sm:$0xff] 0.0
          %389 = vst [vmem:[#allocation2 + $0x60] sm:$0xff] 0.0
          %390 = vst [vmem:[#allocation2 + $0x68] sm:$0xff] 0.0
          %391 = vst [vmem:[#allocation2 + $0x70] sm:$0xff] 0.0
          %392 = vst [vmem:[#allocation2 + $0x78] sm:$0xff] 0.0
          %393 = vst [vmem:[#allocation2 + $0x80] sm:$0xff] 0.0
          %394 = vst [vmem:[#allocation2 + $0x88] sm:$0xff] 0.0
          %395 = vst [vmem:[#allocation2 + $0x90] sm:$0xff] 0.0
          %396 = vst [vmem:[#allocation2 + $0x98] sm:$0xff] 0.0
          %397 = vst [vmem:[#allocation2 + $0xa0] sm:$0xff] 0.0
          %398 = vst [vmem:[#allocation2 + $0xa8] sm:$0xff] 0.0
          %399 = vst [vmem:[#allocation2 + $0xb0] sm:$0xff] 0.0
          %400 = vst [vmem:[#allocation2 + $0xb8] sm:$0xff] 0.0
          %401 = vst [vmem:[#allocation2 + $0xc0] sm:$0xff] 0.0
          %402 = vst [vmem:[#allocation2 + $0xc8] sm:$0xff] 0.0
          %403 = vst [vmem:[#allocation2 + $0xd0] sm:$0xff] 0.0
          %404 = vst [vmem:[#allocation2 + $0xd8] sm:$0xff] 0.0
          %405 = vst [vmem:[#allocation2 + $0xe0] sm:$0xff] 0.0
          %406 = vst [vmem:[#allocation2 + $0xe8] sm:$0xff] 0.0
          %407 = vst [vmem:[#allocation2 + $0xf0] sm:$0xff] 0.0
          %408 = vst [vmem:[#allocation2 + $0xf8] sm:$0xff] 0.0
        $region74: #{recurrent_gconv_lstm_forward.5} parent=65 // pred_fallthru
          _
        %s409 = smul.u32 %s19, 256
        %s410 = scalar_lea.vmem %s1, %s409
        %v411 = vld [vmem:[%s410] sm:$0xff]
        %v412 = vld [vmem:[%s410 + $0x8] sm:$0xff]
        %v413 = vld [vmem:[%s410 + $0x10] sm:$0xff]
        %v414 = vld [vmem:[%s410 + $0x18] sm:$0xff]
        %v415 = vld [vmem:[%s410 + $0x20] sm:$0xff]
        %v416 = vld [vmem:[%s410 + $0x28] sm:$0xff]
        %v417 = vld [vmem:[%s410 + $0x30] sm:$0xff]
        %v418 = vld [vmem:[%s410 + $0x38] sm:$0xff]
        %v419 = vld [vmem:[%s410 + $0x40] sm:$0xff]
        %v420 = vld [vmem:[%s410 + $0x48] sm:$0xff]
        %v421 = vld [vmem:[%s410 + $0x50] sm:$0xff]
        %v422 = vld [vmem:[%s410 + $0x58] sm:$0xff]
        %v423 = vld [vmem:[%s410 + $0x60] sm:$0xff]
        %v424 = vld [vmem:[%s410 + $0x68] sm:$0xff]
        %v425 = vld [vmem:[%s410 + $0x70] sm:$0xff]
        %v426 = vld [vmem:[%s410 + $0x78] sm:$0xff]
        %v427 = vld [vmem:[%s410 + $0x80] sm:$0xff]
        %v428 = vld [vmem:[%s410 + $0x88] sm:$0xff]
        %v429 = vld [vmem:[%s410 + $0x90] sm:$0xff]
        %v430 = vld [vmem:[%s410 + $0x98] sm:$0xff]
        %v431 = vld [vmem:[%s410 + $0xa0] sm:$0xff]
        %v432 = vld [vmem:[%s410 + $0xa8] sm:$0xff]
        %v433 = vld [vmem:[%s410 + $0xb0] sm:$0xff]
        %v434 = vld [vmem:[%s410 + $0xb8] sm:$0xff]
        %v435 = vld [vmem:[%s410 + $0xc0] sm:$0xff]
        %v436 = vld [vmem:[%s410 + $0xc8] sm:$0xff]
        %v437 = vld [vmem:[%s410 + $0xd0] sm:$0xff]
        %v438 = vld [vmem:[%s410 + $0xd8] sm:$0xff]
        %v439 = vld [vmem:[%s410 + $0xe0] sm:$0xff]
        %v440 = vld [vmem:[%s410 + $0xe8] sm:$0xff]
        %v441 = vld [vmem:[%s410 + $0xf0] sm:$0xff]
        %v442 = vld [vmem:[%s410 + $0xf8] sm:$0xff]
        %v443 = vld [vmem:[#allocation2] sm:$0xff]
        %v444 = vld [vmem:[#allocation2 + $0x8] sm:$0xff]
        %v445 = vld [vmem:[#allocation2 + $0x10] sm:$0xff]
        %v446 = vld [vmem:[#allocation2 + $0x18] sm:$0xff]
        %v447 = vld [vmem:[#allocation2 + $0x20] sm:$0xff]
        %v448 = vld [vmem:[#allocation2 + $0x28] sm:$0xff]
        %v449 = vld [vmem:[#allocation2 + $0x30] sm:$0xff]
        %v450 = vld [vmem:[#allocation2 + $0x38] sm:$0xff]
        %v451 = vld [vmem:[#allocation2 + $0x40] sm:$0xff]
        %v452 = vld [vmem:[#allocation2 + $0x48] sm:$0xff]
        %v453 = vld [vmem:[#allocation2 + $0x50] sm:$0xff]
        %v454 = vld [vmem:[#allocation2 + $0x58] sm:$0xff]
        %v455 = vld [vmem:[#allocation2 + $0x60] sm:$0xff]
        %v456 = vld [vmem:[#allocation2 + $0x68] sm:$0xff]
        %v457 = vld [vmem:[#allocation2 + $0x70] sm:$0xff]
        %v458 = vld [vmem:[#allocation2 + $0x78] sm:$0xff]
        %v459 = vld [vmem:[#allocation2 + $0x80] sm:$0xff]
        %v460 = vld [vmem:[#allocation2 + $0x88] sm:$0xff]
        %v461 = vld [vmem:[#allocation2 + $0x90] sm:$0xff]
        %v462 = vld [vmem:[#allocation2 + $0x98] sm:$0xff]
        %v463 = vld [vmem:[#allocation2 + $0xa0] sm:$0xff]
        %v464 = vld [vmem:[#allocation2 + $0xa8] sm:$0xff]
        %v465 = vld [vmem:[#allocation2 + $0xb0] sm:$0xff]
        %v466 = vld [vmem:[#allocation2 + $0xb8] sm:$0xff]
        %v467 = vld [vmem:[#allocation2 + $0xc0] sm:$0xff]
        %v468 = vld [vmem:[#allocation2 + $0xc8] sm:$0xff]
        %v469 = vld [vmem:[#allocation2 + $0xd0] sm:$0xff]
        %v470 = vld [vmem:[#allocation2 + $0xd8] sm:$0xff]
        %v471 = vld [vmem:[#allocation2 + $0xe0] sm:$0xff]
        %v472 = vld [vmem:[#allocation2 + $0xe8] sm:$0xff]
        %v473 = vld [vmem:[#allocation2 + $0xf0] sm:$0xff]
        %v474 = vld [vmem:[#allocation2 + $0xf8] sm:$0xff]
        %v475 = vld [vmem:[%s332] sm:$0xff]
        %v476 = vld [vmem:[%s332 + $0x8] sm:$0xff]
        %v477 = vld [vmem:[%s332 + $0x10] sm:$0xff]
        %v478 = vld [vmem:[%s332 + $0x18] sm:$0xff]
        %v479 = vld [vmem:[%s332 + $0x20] sm:$0xff]
        %v480 = vld [vmem:[%s332 + $0x28] sm:$0xff]
        %v481 = vld [vmem:[%s332 + $0x30] sm:$0xff]
        %v482 = vld [vmem:[%s332 + $0x38] sm:$0xff]
        %v483 = vld [vmem:[%s332 + $0x40] sm:$0xff]
        %v484 = vld [vmem:[%s332 + $0x48] sm:$0xff]
        %v485 = vld [vmem:[%s332 + $0x50] sm:$0xff]
        %v486 = vld [vmem:[%s332 + $0x58] sm:$0xff]
        %v487 = vld [vmem:[%s332 + $0x60] sm:$0xff]
        %v488 = vld [vmem:[%s332 + $0x68] sm:$0xff]
        %v489 = vld [vmem:[%s332 + $0x70] sm:$0xff]
        %v490 = vld [vmem:[%s332 + $0x78] sm:$0xff]
        %v491 = vld [vmem:[%s332 + $0x80] sm:$0xff]
        %v492 = vld [vmem:[%s332 + $0x88] sm:$0xff]
        %v493 = vld [vmem:[%s332 + $0x90] sm:$0xff]
        %v494 = vld [vmem:[%s332 + $0x98] sm:$0xff]
        %v495 = vld [vmem:[%s332 + $0xa0] sm:$0xff]
        %v496 = vld [vmem:[%s332 + $0xa8] sm:$0xff]
        %v497 = vld [vmem:[%s332 + $0xb0] sm:$0xff]
        %v498 = vld [vmem:[%s332 + $0xb8] sm:$0xff]
        %v499 = vld [vmem:[%s332 + $0xc0] sm:$0xff]
        %v500 = vld [vmem:[%s332 + $0xc8] sm:$0xff]
        %v501 = vld [vmem:[%s332 + $0xd0] sm:$0xff]
        %v502 = vld [vmem:[%s332 + $0xd8] sm:$0xff]
        %v503 = vld [vmem:[%s332 + $0xe0] sm:$0xff]
        %v504 = vld [vmem:[%s332 + $0xe8] sm:$0xff]
        %v505 = vld [vmem:[%s332 + $0xf0] sm:$0xff]
        %v506 = vld [vmem:[%s332 + $0xf8] sm:$0xff]
        %v507 = vpack.c.bf16 %v412, %v411
        %v508 = vpack.c.bf16 %v414, %v413
        %v509 = vpack.c.bf16 %v416, %v415
        %v510 = vpack.c.bf16 %v418, %v417
        %v511 = vpack.c.bf16 %v420, %v419
        %v512 = vpack.c.bf16 %v422, %v421
        %v513 = vpack.c.bf16 %v424, %v423
        %v514 = vpack.c.bf16 %v426, %v425
        %v515 = vpack.c.bf16 %v428, %v427
        %v516 = vpack.c.bf16 %v430, %v429
        %v517 = vpack.c.bf16 %v432, %v431
        %v518 = vpack.c.bf16 %v434, %v433
        %v519 = vpack.c.bf16 %v436, %v435
        %v520 = vpack.c.bf16 %v438, %v437
        %v521 = vpack.c.bf16 %v440, %v439
        %v522 = vpack.c.bf16 %v442, %v441
        %v555 = vunpack.c.l.b16 %v475
        %v556 = vunpack.c.h.b16 %v475
        %v557 = vunpack.c.l.b16 %v476
        %v558 = vunpack.c.h.b16 %v476
        %v559 = vunpack.c.l.b16 %v477
        %v560 = vunpack.c.h.b16 %v477
        %v561 = vunpack.c.l.b16 %v478
        %v562 = vunpack.c.h.b16 %v478
        %v563 = vunpack.c.l.b16 %v479
        %v564 = vunpack.c.h.b16 %v479
        %v565 = vunpack.c.l.b16 %v480
        %v566 = vunpack.c.h.b16 %v480
        %v567 = vunpack.c.l.b16 %v481
        %v568 = vunpack.c.h.b16 %v481
        %v569 = vunpack.c.l.b16 %v482
        %v570 = vunpack.c.h.b16 %v482
        %v571 = vunpack.c.l.b16 %v483
        %v572 = vunpack.c.h.b16 %v483
        %v573 = vunpack.c.l.b16 %v484
        %v574 = vunpack.c.h.b16 %v484
        %v575 = vunpack.c.l.b16 %v485
        %v576 = vunpack.c.h.b16 %v485
        %v577 = vunpack.c.l.b16 %v486
        %v578 = vunpack.c.h.b16 %v486
        %v579 = vunpack.c.l.b16 %v487
        %v580 = vunpack.c.h.b16 %v487
        %v581 = vunpack.c.l.b16 %v488
        %v582 = vunpack.c.h.b16 %v488
        %v583 = vunpack.c.l.b16 %v489
        %v584 = vunpack.c.h.b16 %v489
        %v585 = vunpack.c.l.b16 %v490
        %v586 = vunpack.c.h.b16 %v490
        %v587 = vunpack.c.l.b16 %v491
        %v588 = vunpack.c.h.b16 %v491
        %v589 = vunpack.c.l.b16 %v492
        %v590 = vunpack.c.h.b16 %v492
        %v591 = vunpack.c.l.b16 %v493
        %v592 = vunpack.c.h.b16 %v493
        %v593 = vunpack.c.l.b16 %v494
        %v594 = vunpack.c.h.b16 %v494
        %v595 = vunpack.c.l.b16 %v495
        %v596 = vunpack.c.h.b16 %v495
        %v597 = vunpack.c.l.b16 %v496
        %v598 = vunpack.c.h.b16 %v496
        %v599 = vunpack.c.l.b16 %v497
        %v600 = vunpack.c.h.b16 %v497
        %v601 = vunpack.c.l.b16 %v498
        %v602 = vunpack.c.h.b16 %v498
        %v603 = vunpack.c.l.b16 %v499
        %v604 = vunpack.c.h.b16 %v499
        %v605 = vunpack.c.l.b16 %v500
        %v606 = vunpack.c.h.b16 %v500
        %v607 = vunpack.c.l.b16 %v501
        %v608 = vunpack.c.h.b16 %v501
        %v609 = vunpack.c.l.b16 %v502
        %v610 = vunpack.c.h.b16 %v502
        %v611 = vunpack.c.l.b16 %v503
        %v612 = vunpack.c.h.b16 %v503
        %v613 = vunpack.c.l.b16 %v504
        %v614 = vunpack.c.h.b16 %v504
        %v615 = vunpack.c.l.b16 %v505
        %v616 = vunpack.c.h.b16 %v505
        %v617 = vunpack.c.l.b16 %v506
        %v618 = vunpack.c.h.b16 %v506
        %v619 = vpack.c.b16 %v557, %v555
        %v620 = vpack.c.b16 %v558, %v556
        %v621 = vpack.c.b16 %v561, %v559
        %v622 = vpack.c.b16 %v562, %v560
        %v623 = vpack.c.b16 %v565, %v563
        %v624 = vpack.c.b16 %v566, %v564
        %v625 = vpack.c.b16 %v569, %v567
        %v626 = vpack.c.b16 %v570, %v568
        %v627 = vpack.c.b16 %v573, %v571
        %v628 = vpack.c.b16 %v574, %v572
        %v629 = vpack.c.b16 %v577, %v575
        %v630 = vpack.c.b16 %v578, %v576
        %v631 = vpack.c.b16 %v581, %v579
        %v632 = vpack.c.b16 %v582, %v580
        %v633 = vpack.c.b16 %v585, %v583
        %v634 = vpack.c.b16 %v586, %v584
        %v635 = vpack.c.b16 %v589, %v587
        %v636 = vpack.c.b16 %v590, %v588
        %v637 = vpack.c.b16 %v593, %v591
        %v638 = vpack.c.b16 %v594, %v592
        %v639 = vpack.c.b16 %v597, %v595
        %v640 = vpack.c.b16 %v598, %v596
        %v641 = vpack.c.b16 %v601, %v599
        %v642 = vpack.c.b16 %v602, %v600
        %v643 = vpack.c.b16 %v605, %v603
        %v644 = vpack.c.b16 %v606, %v604
        %v645 = vpack.c.b16 %v609, %v607
        %v646 = vpack.c.b16 %v610, %v608
        %v647 = vpack.c.b16 %v613, %v611
        %v648 = vpack.c.b16 %v614, %v612
        %v649 = vpack.c.b16 %v617, %v615
        %v650 = vpack.c.b16 %v618, %v616
        %683 = vmatprep.subr.bf16.mxu0 0
        %684 = vmatpush1.bf16.msra.mxu0 %v507
        %685 = vmatprep.subr.bf16.mxu0 0
        %686 = vmatpush1.bf16.msra.mxu0 %v508
        %687 = vmatprep.subr.bf16.mxu0 0
        %688 = vmatpush1.bf16.msra.mxu0 %v509
        %689 = vmatprep.subr.bf16.mxu0 0
        %690 = vmatpush1.bf16.msra.mxu0 %v510
        %691 = vmatprep.subr.bf16.mxu0 0
        %692 = vmatpush1.bf16.msra.mxu0 %v511
        %693 = vmatprep.subr.bf16.mxu0 0
        %694 = vmatpush1.bf16.msra.mxu0 %v512
        %695 = vmatprep.subr.bf16.mxu0 0
        %696 = vmatpush1.bf16.msra.mxu0 %v513
        %697 = vmatprep.subr.bf16.mxu0 0
        %698 = vmatpush1.bf16.msra.mxu0 %v514
        %699 = vmatprep.subr.bf16.mxu0 0
        %700 = vmatpush1.bf16.msra.mxu0 %v515
        %701 = vmatprep.subr.bf16.mxu0 0
        %702 = vmatpush1.bf16.msra.mxu0 %v516
        %703 = vmatprep.subr.bf16.mxu0 0
        %704 = vmatpush1.bf16.msra.mxu0 %v517
        %705 = vmatprep.subr.bf16.mxu0 0
        %706 = vmatpush1.bf16.msra.mxu0 %v518
        %707 = vmatprep.subr.bf16.mxu0 0
        %708 = vmatpush1.bf16.msra.mxu0 %v519
        %709 = vmatprep.subr.bf16.mxu0 0
        %710 = vmatpush1.bf16.msra.mxu0 %v520
        %711 = vmatprep.subr.bf16.mxu0 0
        %712 = vmatpush1.bf16.msra.mxu0 %v521
        %713 = vmatprep.subr.bf16.mxu0 0
        %714 = vmatpush1.bf16.msra.mxu0 %v522
        %715 = vmatprep.mubr.bf16.mxu0 %v620
        %716 = vmatmul.mubr.bf16.gmra.mrb[0].mxu0 %v619
        %v717 = vpop.f32.mrb[0].mxu0
        %v718 = vadd.f32 0.0, %v717
        %v719 = vpop.f32.mrb[0].mxu0
        %v720 = vpop.f32.mrb[0].mxu0
        %v721 = vadd.f32 0.0, %v720
        %v722 = vpop.f32.mrb[0].mxu0
        %723 = vmatprep.mubr.bf16.mxu0 %v622
        %724 = vmatmul.mubr.bf16.gmra.mrb[0].mxu0 %v621
        %v725 = vpop.f32.mrb[0].mxu0
        %v726 = vadd.f32 0.0, %v725
        %v727 = vpop.f32.mrb[0].mxu0
        %v728 = vpop.f32.mrb[0].mxu0
        %v729 = vadd.f32 0.0, %v728
        %v730 = vpop.f32.mrb[0].mxu0
        %731 = vmatprep.mubr.bf16.mxu0 %v624
        %732 = vmatmul.mubr.bf16.gmra.mrb[0].mxu0 %v623
        %v733 = vpop.f32.mrb[0].mxu0
        %v734 = vadd.f32 0.0, %v733
        %v735 = vpop.f32.mrb[0].mxu0
        %v736 = vpop.f32.mrb[0].mxu0
        %v737 = vadd.f32 0.0, %v736
        %v738 = vpop.f32.mrb[0].mxu0
        %739 = vmatprep.mubr.bf16.mxu0 %v626
        %740 = vmatmul.mubr.bf16.gmra.mrb[0].mxu0 %v625
        %v741 = vpop.f32.mrb[0].mxu0
        %v742 = vadd.f32 0.0, %v741
        %v743 = vpop.f32.mrb[0].mxu0
        %v744 = vpop.f32.mrb[0].mxu0
        %v745 = vadd.f32 0.0, %v744
        %v746 = vpop.f32.mrb[0].mxu0
        %747 = vmatprep.mubr.bf16.mxu0 %v628
        %748 = vmatmul.mubr.bf16.gmra.mrb[0].mxu0 %v627
        %v749 = vpop.f32.mrb[0].mxu0
        %v750 = vadd.f32 0.0, %v749
        %v751 = vpop.f32.mrb[0].mxu0
        %v752 = vpop.f32.mrb[0].mxu0
        %v753 = vadd.f32 0.0, %v752
        %v754 = vpop.f32.mrb[0].mxu0
        %755 = vmatprep.mubr.bf16.mxu0 %v630
        %756 = vmatmul.mubr.bf16.gmra.mrb[0].mxu0 %v629
        %v757 = vpop.f32.mrb[0].mxu0
        %v758 = vadd.f32 0.0, %v757
        %v759 = vpop.f32.mrb[0].mxu0
        %v760 = vpop.f32.mrb[0].mxu0
        %v761 = vadd.f32 0.0, %v760
        %v762 = vpop.f32.mrb[0].mxu0
        %763 = vmatprep.mubr.bf16.mxu0 %v632
        %764 = vmatmul.mubr.bf16.gmra.mrb[0].mxu0 %v631
        %v765 = vpop.f32.mrb[0].mxu0
        %v766 = vadd.f32 0.0, %v765
        %v767 = vpop.f32.mrb[0].mxu0
        %v768 = vpop.f32.mrb[0].mxu0
        %v769 = vadd.f32 0.0, %v768
        %v770 = vpop.f32.mrb[0].mxu0
        %771 = vmatprep.mubr.bf16.mxu0 %v634
        %772 = vmatmul.mubr.bf16.gmra.mrb[0].mxu0 %v633
        %v773 = vpop.f32.mrb[0].mxu0
        %v774 = vadd.f32 0.0, %v773
        %v775 = vpop.f32.mrb[0].mxu0
        %v776 = vpop.f32.mrb[0].mxu0
        %v777 = vadd.f32 0.0, %v776
        %v778 = vpop.f32.mrb[0].mxu0
        %779 = vmatprep.mubr.bf16.mxu0 %v636
        %780 = vmatmul.mubr.bf16.gmra.mrb[0].mxu0 %v635
        %v781 = vpop.f32.mrb[0].mxu0
        %v782 = vadd.f32 0.0, %v781
        %v783 = vpop.f32.mrb[0].mxu0
        %v784 = vpop.f32.mrb[0].mxu0
        %v785 = vadd.f32 0.0, %v784
        %v786 = vpop.f32.mrb[0].mxu0
        %787 = vmatprep.mubr.bf16.mxu0 %v638
        %788 = vmatmul.mubr.bf16.gmra.mrb[0].mxu0 %v637
        %v789 = vpop.f32.mrb[0].mxu0
        %v790 = vadd.f32 0.0, %v789
        %v791 = vpop.f32.mrb[0].mxu0
        %v792 = vpop.f32.mrb[0].mxu0
        %v793 = vadd.f32 0.0, %v792
        %v794 = vpop.f32.mrb[0].mxu0
        %795 = vmatprep.mubr.bf16.mxu0 %v640
        %796 = vmatmul.mubr.bf16.gmra.mrb[0].mxu0 %v639
        %v797 = vpop.f32.mrb[0].mxu0
        %v798 = vadd.f32 0.0, %v797
        %v799 = vpop.f32.mrb[0].mxu0
        %v800 = vpop.f32.mrb[0].mxu0
        %v801 = vadd.f32 0.0, %v800
        %v802 = vpop.f32.mrb[0].mxu0
        %803 = vmatprep.mubr.bf16.mxu0 %v642
        %804 = vmatmul.mubr.bf16.gmra.mrb[0].mxu0 %v641
        %v805 = vpop.f32.mrb[0].mxu0
        %v806 = vadd.f32 0.0, %v805
        %v807 = vpop.f32.mrb[0].mxu0
        %v808 = vpop.f32.mrb[0].mxu0
        %v809 = vadd.f32 0.0, %v808
        %v810 = vpop.f32.mrb[0].mxu0
        %811 = vmatprep.mubr.bf16.mxu0 %v644
        %812 = vmatmul.mubr.bf16.gmra.mrb[0].mxu0 %v643
        %v813 = vpop.f32.mrb[0].mxu0
        %v814 = vadd.f32 0.0, %v813
        %v815 = vpop.f32.mrb[0].mxu0
        %v816 = vpop.f32.mrb[0].mxu0
        %v817 = vadd.f32 0.0, %v816
        %v818 = vpop.f32.mrb[0].mxu0
        %819 = vmatprep.mubr.bf16.mxu0 %v646
        %820 = vmatmul.mubr.bf16.gmra.mrb[0].mxu0 %v645
        %v821 = vpop.f32.mrb[0].mxu0
        %v822 = vadd.f32 0.0, %v821
        %v823 = vpop.f32.mrb[0].mxu0
        %v824 = vpop.f32.mrb[0].mxu0
        %v825 = vadd.f32 0.0, %v824
        %v826 = vpop.f32.mrb[0].mxu0
        %827 = vmatprep.mubr.bf16.mxu0 %v648
        %828 = vmatmul.mubr.bf16.gmra.mrb[0].mxu0 %v647
        %v829 = vpop.f32.mrb[0].mxu0
        %v830 = vadd.f32 0.0, %v829
        %v831 = vpop.f32.mrb[0].mxu0
        %v832 = vpop.f32.mrb[0].mxu0
        %v833 = vadd.f32 0.0, %v832
        %v834 = vpop.f32.mrb[0].mxu0
        %835 = vmatprep.mubr.bf16.mxu0 %v650
        %836 = vmatmul.mubr.bf16.gmra.mrb[0].mxu0 %v649
        %v837 = vpop.f32.mrb[0].mxu0
        %v838 = vadd.f32 0.0, %v837
        %v839 = vpop.f32.mrb[0].mxu0
        %v840 = vpop.f32.mrb[0].mxu0
        %v841 = vadd.f32 0.0, %v840
        %v842 = vpop.f32.mrb[0].mxu0
        %843 = vdwg.mxu0
        %v844 = vadd.f32 %v443, %v718
        %v845 = vadd.f32 %v444, %v721
        %v846 = vadd.f32 %v445, %v726
        %v847 = vadd.f32 %v446, %v729
        %v848 = vadd.f32 %v447, %v734
        %v849 = vadd.f32 %v448, %v737
        %v850 = vadd.f32 %v449, %v742
        %v851 = vadd.f32 %v450, %v745
        %v852 = vadd.f32 %v451, %v750
        %v853 = vadd.f32 %v452, %v753
        %v854 = vadd.f32 %v453, %v758
        %v855 = vadd.f32 %v454, %v761
        %v856 = vadd.f32 %v455, %v766
        %v857 = vadd.f32 %v456, %v769
        %v858 = vadd.f32 %v457, %v774
        %v859 = vadd.f32 %v458, %v777
        %v860 = vadd.f32 %v459, %v782
        %v861 = vadd.f32 %v460, %v785
        %v862 = vadd.f32 %v461, %v790
        %v863 = vadd.f32 %v462, %v793
        %v864 = vadd.f32 %v463, %v798
        %v865 = vadd.f32 %v464, %v801
        %v866 = vadd.f32 %v465, %v806
        %v867 = vadd.f32 %v466, %v809
        %v868 = vadd.f32 %v467, %v814
        %v869 = vadd.f32 %v468, %v817
        %v870 = vadd.f32 %v469, %v822
        %v871 = vadd.f32 %v470, %v825
        %v872 = vadd.f32 %v471, %v830
        %v873 = vadd.f32 %v472, %v833
        %v874 = vadd.f32 %v473, %v838
        %v875 = vadd.f32 %v474, %v841
        %876 = vst [vmem:[#allocation2] sm:$0xff] %v844
        %877 = vst [vmem:[#allocation2 + $0x8] sm:$0xff] %v845
        %878 = vst [vmem:[#allocation2 + $0x10] sm:$0xff] %v846
        %879 = vst [vmem:[#allocation2 + $0x18] sm:$0xff] %v847
        %880 = vst [vmem:[#allocation2 + $0x20] sm:$0xff] %v848
        %881 = vst [vmem:[#allocation2 + $0x28] sm:$0xff] %v849
        %882 = vst [vmem:[#allocation2 + $0x30] sm:$0xff] %v850
        %883 = vst [vmem:[#allocation2 + $0x38] sm:$0xff] %v851
        %884 = vst [vmem:[#allocation2 + $0x40] sm:$0xff] %v852
        %885 = vst [vmem:[#allocation2 + $0x48] sm:$0xff] %v853
        %886 = vst [vmem:[#allocation2 + $0x50] sm:$0xff] %v854
        %887 = vst [vmem:[#allocation2 + $0x58] sm:$0xff] %v855
        %888 = vst [vmem:[#allocation2 + $0x60] sm:$0xff] %v856
        %889 = vst [vmem:[#allocation2 + $0x68] sm:$0xff] %v857
        %890 = vst [vmem:[#allocation2 + $0x70] sm:$0xff] %v858
        %891 = vst [vmem:[#allocation2 + $0x78] sm:$0xff] %v859
        %892 = vst [vmem:[#allocation2 + $0x80] sm:$0xff] %v860
        %893 = vst [vmem:[#allocation2 + $0x88] sm:$0xff] %v861
        %894 = vst [vmem:[#allocation2 + $0x90] sm:$0xff] %v862
        %895 = vst [vmem:[#allocation2 + $0x98] sm:$0xff] %v863
        %896 = vst [vmem:[#allocation2 + $0xa0] sm:$0xff] %v864
        %897 = vst [vmem:[#allocation2 + $0xa8] sm:$0xff] %v865
        %898 = vst [vmem:[#allocation2 + $0xb0] sm:$0xff] %v866
        %899 = vst [vmem:[#allocation2 + $0xb8] sm:$0xff] %v867
        %900 = vst [vmem:[#allocation2 + $0xc0] sm:$0xff] %v868
        %901 = vst [vmem:[#allocation2 + $0xc8] sm:$0xff] %v869
        %902 = vst [vmem:[#allocation2 + $0xd0] sm:$0xff] %v870
        %903 = vst [vmem:[#allocation2 + $0xd8] sm:$0xff] %v871
        %904 = vst [vmem:[#allocation2 + $0xe0] sm:$0xff] %v872
        %905 = vst [vmem:[#allocation2 + $0xe8] sm:$0xff] %v873
        %906 = vst [vmem:[#allocation2 + $0xf0] sm:$0xff] %v874
        %907 = vst [vmem:[#allocation2 + $0xf8] sm:$0xff] %v875
        %p908 = scmp.eq.s32.totalorder %s19, 2
        // Predicated region
        $region75: #{recurrent_gconv_lstm_forward.5} parent=65 // pred_check
          %p909 = pneg %p908
        $region76: #{recurrent_gconv_lstm_forward.5} parent=65 // pred_check_branch
          %911 = sbr.rel (%p909) target = $region78
        $region77: #{recurrent_gconv_lstm_forward.5} parent=65 // pred_region
          %v912 = vld [vmem:[#allocation2] sm:$0xff]
          %v913 = vld [vmem:[#allocation2 + $0x8] sm:$0xff]
          %v914 = vld [vmem:[#allocation2 + $0x10] sm:$0xff]
          %v915 = vld [vmem:[#allocation2 + $0x18] sm:$0xff]
          %v916 = vld [vmem:[#allocation2 + $0x20] sm:$0xff]
          %v917 = vld [vmem:[#allocation2 + $0x28] sm:$0xff]
          %v918 = vld [vmem:[#allocation2 + $0x30] sm:$0xff]
          %v919 = vld [vmem:[#allocation2 + $0x38] sm:$0xff]
          %v920 = vld [vmem:[#allocation2 + $0x40] sm:$0xff]
          %v921 = vld [vmem:[#allocation2 + $0x48] sm:$0xff]
          %v922 = vld [vmem:[#allocation2 + $0x50] sm:$0xff]
          %v923 = vld [vmem:[#allocation2 + $0x58] sm:$0xff]
          %v924 = vld [vmem:[#allocation2 + $0x60] sm:$0xff]
          %v925 = vld [vmem:[#allocation2 + $0x68] sm:$0xff]
          %v926 = vld [vmem:[#allocation2 + $0x70] sm:$0xff]
          %v927 = vld [vmem:[#allocation2 + $0x78] sm:$0xff]
          %v928 = vld [vmem:[#allocation2 + $0x80] sm:$0xff]
          %v929 = vld [vmem:[#allocation2 + $0x88] sm:$0xff]
          %v930 = vld [vmem:[#allocation2 + $0x90] sm:$0xff]
          %v931 = vld [vmem:[#allocation2 + $0x98] sm:$0xff]
          %v932 = vld [vmem:[#allocation2 + $0xa0] sm:$0xff]
          %v933 = vld [vmem:[#allocation2 + $0xa8] sm:$0xff]
          %v934 = vld [vmem:[#allocation2 + $0xb0] sm:$0xff]
          %v935 = vld [vmem:[#allocation2 + $0xb8] sm:$0xff]
          %v936 = vld [vmem:[#allocation2 + $0xc0] sm:$0xff]
          %v937 = vld [vmem:[#allocation2 + $0xc8] sm:$0xff]
          %v938 = vld [vmem:[#allocation2 + $0xd0] sm:$0xff]
          %v939 = vld [vmem:[#allocation2 + $0xd8] sm:$0xff]
          %v940 = vld [vmem:[#allocation2 + $0xe0] sm:$0xff]
          %v941 = vld [vmem:[#allocation2 + $0xe8] sm:$0xff]
          %v942 = vld [vmem:[#allocation2 + $0xf0] sm:$0xff]
          %v943 = vld [vmem:[#allocation2 + $0xf8] sm:$0xff]
          %v944 = vmul.f32 %v912, 2.0
          %v945 = vmul.f32 %v913, 2.0
          %v946 = vmul.f32 %v914, 2.0
          %v947 = vmul.f32 %v915, 2.0
          %v948 = vmul.f32 %v916, 2.0
          %v949 = vmul.f32 %v917, 2.0
          %v950 = vmul.f32 %v918, 2.0
          %v951 = vmul.f32 %v919, 2.0
          %v952 = vmul.f32 %v920, 2.0
          %v953 = vmul.f32 %v921, 2.0
          %v954 = vmul.f32 %v922, 2.0
          %v955 = vmul.f32 %v923, 2.0
          %v956 = vmul.f32 %v924, 2.0
          %v957 = vmul.f32 %v925, 2.0
          %v958 = vmul.f32 %v926, 2.0
          %v959 = vmul.f32 %v927, 2.0
          %v960 = vmul.f32 %v928, 2.0
          %v961 = vmul.f32 %v929, 2.0
          %v962 = vmul.f32 %v930, 2.0
          %v963 = vmul.f32 %v931, 2.0
          %v964 = vmul.f32 %v932, 2.0
          %v965 = vmul.f32 %v933, 2.0
          %v966 = vmul.f32 %v934, 2.0
          %v967 = vmul.f32 %v935, 2.0
          %v968 = vmul.f32 %v936, 2.0
          %v969 = vmul.f32 %v937, 2.0
          %v970 = vmul.f32 %v938, 2.0
          %v971 = vmul.f32 %v939, 2.0
          %v972 = vmul.f32 %v940, 2.0
          %v973 = vmul.f32 %v941, 2.0
          %v974 = vmul.f32 %v942, 2.0
          %v975 = vmul.f32 %v943, 2.0
          %v976 = vld [vmem:[%s364] sm:$0xff]
          %v977 = vld [vmem:[%s364 + $0x8] sm:$0xff]
          %v978 = vld [vmem:[%s364 + $0x10] sm:$0xff]
          %v979 = vld [vmem:[%s364 + $0x18] sm:$0xff]
          %v980 = vld [vmem:[%s364 + $0x20] sm:$0xff]
          %v981 = vld [vmem:[%s364 + $0x28] sm:$0xff]
          %v982 = vld [vmem:[%s364 + $0x30] sm:$0xff]
          %v983 = vld [vmem:[%s364 + $0x38] sm:$0xff]
          %v984 = vld [vmem:[%s364 + $0x40] sm:$0xff]
          %v985 = vld [vmem:[%s364 + $0x48] sm:$0xff]
          %v986 = vld [vmem:[%s364 + $0x50] sm:$0xff]
          %v987 = vld [vmem:[%s364 + $0x58] sm:$0xff]
          %v988 = vld [vmem:[%s364 + $0x60] sm:$0xff]
          %v989 = vld [vmem:[%s364 + $0x68] sm:$0xff]
          %v990 = vld [vmem:[%s364 + $0x70] sm:$0xff]
          %v991 = vld [vmem:[%s364 + $0x78] sm:$0xff]
          %v992 = vld [vmem:[%s364 + $0x80] sm:$0xff]
          %v993 = vld [vmem:[%s364 + $0x88] sm:$0xff]
          %v994 = vld [vmem:[%s364 + $0x90] sm:$0xff]
          %v995 = vld [vmem:[%s364 + $0x98] sm:$0xff]
          %v996 = vld [vmem:[%s364 + $0xa0] sm:$0xff]
          %v997 = vld [vmem:[%s364 + $0xa8] sm:$0xff]
          %v998 = vld [vmem:[%s364 + $0xb0] sm:$0xff]
          %v999 = vld [vmem:[%s364 + $0xb8] sm:$0xff]
          %v1000 = vld [vmem:[%s364 + $0xc0] sm:$0xff]
          %v1001 = vld [vmem:[%s364 + $0xc8] sm:$0xff]
          %v1002 = vld [vmem:[%s364 + $0xd0] sm:$0xff]
          %v1003 = vld [vmem:[%s364 + $0xd8] sm:$0xff]
          %v1004 = vld [vmem:[%s364 + $0xe0] sm:$0xff]
          %v1005 = vld [vmem:[%s364 + $0xe8] sm:$0xff]
          %v1006 = vld [vmem:[%s364 + $0xf0] sm:$0xff]
          %v1007 = vld [vmem:[%s364 + $0xf8] sm:$0xff]
          %v1008 = vsub.f32 %v944, %v976
          %v1009 = vsub.f32 %v945, %v977
          %v1010 = vsub.f32 %v946, %v978
          %v1011 = vsub.f32 %v947, %v979
          %v1012 = vsub.f32 %v948, %v980
          %v1013 = vsub.f32 %v949, %v981
          %v1014 = vsub.f32 %v950, %v982
          %v1015 = vsub.f32 %v951, %v983
          %v1016 = vsub.f32 %v952, %v984
          %v1017 = vsub.f32 %v953, %v985
          %v1018 = vsub.f32 %v954, %v986
          %v1019 = vsub.f32 %v955, %v987
          %v1020 = vsub.f32 %v956, %v988
          %v1021 = vsub.f32 %v957, %v989
          %v1022 = vsub.f32 %v958, %v990
          %v1023 = vsub.f32 %v959, %v991
          %v1024 = vsub.f32 %v960, %v992
          %v1025 = vsub.f32 %v961, %v993
          %v1026 = vsub.f32 %v962, %v994
          %v1027 = vsub.f32 %v963, %v995
          %v1028 = vsub.f32 %v964, %v996
          %v1029 = vsub.f32 %v965, %v997
          %v1030 = vsub.f32 %v966, %v998
          %v1031 = vsub.f32 %v967, %v999
          %v1032 = vsub.f32 %v968, %v1000
          %v1033 = vsub.f32 %v969, %v1001
          %v1034 = vsub.f32 %v970, %v1002
          %v1035 = vsub.f32 %v971, %v1003
          %v1036 = vsub.f32 %v972, %v1004
          %v1037 = vsub.f32 %v973, %v1005
          %v1038 = vsub.f32 %v974, %v1006
          %v1039 = vsub.f32 %v975, %v1007
          %1040 = vst [vmem:[%s370] sm:$0xff] %v1008
          %1041 = vst [vmem:[%s370 + $0x8] sm:$0xff] %v1009
          %1042 = vst [vmem:[%s370 + $0x10] sm:$0xff] %v1010
          %1043 = vst [vmem:[%s370 + $0x18] sm:$0xff] %v1011
          %1044 = vst [vmem:[%s370 + $0x20] sm:$0xff] %v1012
          %1045 = vst [vmem:[%s370 + $0x28] sm:$0xff] %v1013
          %1046 = vst [vmem:[%s370 + $0x30] sm:$0xff] %v1014
          %1047 = vst [vmem:[%s370 + $0x38] sm:$0xff] %v1015
          %1048 = vst [vmem:[%s370 + $0x40] sm:$0xff] %v1016
          %1049 = vst [vmem:[%s370 + $0x48] sm:$0xff] %v1017
          %1050 = vst [vmem:[%s370 + $0x50] sm:$0xff] %v1018
          %1051 = vst [vmem:[%s370 + $0x58] sm:$0xff] %v1019
          %1052 = vst [vmem:[%s370 + $0x60] sm:$0xff] %v1020
          %1053 = vst [vmem:[%s370 + $0x68] sm:$0xff] %v1021
          %1054 = vst [vmem:[%s370 + $0x70] sm:$0xff] %v1022
          %1055 = vst [vmem:[%s370 + $0x78] sm:$0xff] %v1023
          %1056 = vst [vmem:[%s370 + $0x80] sm:$0xff] %v1024
          %1057 = vst [vmem:[%s370 + $0x88] sm:$0xff] %v1025
          %1058 = vst [vmem:[%s370 + $0x90] sm:$0xff] %v1026
          %1059 = vst [vmem:[%s370 + $0x98] sm:$0xff] %v1027
          %1060 = vst [vmem:[%s370 + $0xa0] sm:$0xff] %v1028
          %1061 = vst [vmem:[%s370 + $0xa8] sm:$0xff] %v1029
          %1062 = vst [vmem:[%s370 + $0xb0] sm:$0xff] %v1030
          %1063 = vst [vmem:[%s370 + $0xb8] sm:$0xff] %v1031
          %1064 = vst [vmem:[%s370 + $0xc0] sm:$0xff] %v1032
          %1065 = vst [vmem:[%s370 + $0xc8] sm:$0xff] %v1033
          %1066 = vst [vmem:[%s370 + $0xd0] sm:$0xff] %v1034
          %1067 = vst [vmem:[%s370 + $0xd8] sm:$0xff] %v1035
          %1068 = vst [vmem:[%s370 + $0xe0] sm:$0xff] %v1036
          %1069 = vst [vmem:[%s370 + $0xe8] sm:$0xff] %v1037
          %1070 = vst [vmem:[%s370 + $0xf0] sm:$0xff] %v1038
          %1071 = vst [vmem:[%s370 + $0xf8] sm:$0xff] %v1039
        $region78: #{recurrent_gconv_lstm_forward.5} parent=65 // pred_fallthru
          _
        %s1072 = smul.u32 32, %s18
        %p1073 = scmp.lt.s32.totalorder %s1072, 95
        %s1074 = scalar_select %p1073, %s1072, 95
        %s1075 = smul.addr %s1074, 8
        %s1076 = scalar_lea.vmem %s3, %s1075
        // Predicated region
        $region79: #{recurrent_gconv_lstm_forward.5} parent=65 // pred_check
          %p1077 = pneg %p119
        $region80: #{recurrent_gconv_lstm_forward.5} parent=65 // pred_check_branch
          %1079 = sbr.rel (%p1077) target = $region82
        $region81: #{recurrent_gconv_lstm_forward.5} parent=65 // pred_region
          %s1080 = smul.u32 32, %s18
        $region82: #{recurrent_gconv_lstm_forward.5} parent=65 // pred_fallthru
          _
      $region66: #{recurrent_gconv_lstm_forward.5} parent=5 // pred_fallthru
        _
      %p1081 = scmp.le.s32.totalorder 2, %s9
      // Predicated region
      $region83: #{recurrent_gconv_lstm_forward.5} parent=5 // pred_check
        %p1082 = pneg %p1081
      $region84: #{recurrent_gconv_lstm_forward.5} parent=5 // pred_check_branch
        %1084 = sbr.rel (%p1082) target = $region86
      $region85: #{recurrent_gconv_lstm_forward.5} parent=5 // pred_region
        %s1085 = ssub.s32 %s9, 2
        // Predicated region
        $region87: #{recurrent_gconv_lstm_forward.5} parent=85 // pred_check
          %p1086 = pneg %p125
        $region88: #{recurrent_gconv_lstm_forward.5} parent=85 // pred_check_branch
          %1088 = sbr.rel (%p1086) target = $region90
        $region89: #{recurrent_gconv_lstm_forward.5} parent=85 // pred_region
          %s1089 = smul.u32 32, %s20
          %p1090 = scmp.lt.s32.totalorder %s1089, 95
          %s1091 = scalar_select %p1090, %s1089, 95
          %s1092 = smul.addr %s1091, 8
          %s1093 = scalar_lea.vmem %s3, %s1092
        $region90: #{recurrent_gconv_lstm_forward.5} parent=85 // pred_fallthru
          _
      $region86: #{recurrent_gconv_lstm_forward.5} parent=5 // pred_fallthru
        _
    $region6: #{recurrent_gconv_lstm_forward.5} parent=1 // loop_footer
      %s13 = sadd.s32 1, %s9
    $region7: #{recurrent_gconv_lstm_forward.5} parent=1 // loop_footer_branch
      %8 = sbr.rel target = $region3
    $region8: #{recurrent_gconv_lstm_forward.5} parent=1 // loop_exit
      _

// kernel: recurrent_gconv_lstm_forward.7
$region0: #{recurrent_gconv_lstm_forward.7}
  #allocation0 [shape = 'u32[]', space=smem, size = 0x4, offset = 0x4, fixed_abs, tag = 'smem constant byte address 0x4 - core index']
  #allocation1 [shape = 'u32[144,128]{1,0:T(1,128)}', space=vmem, size = 0x12000, scoped, tag = 'internal scratch']
  %s0 = inlined_call_operand.vmem [shape: f32[768,512], index: 0, kind: input, shape index: {}]
  %s1 = inlined_call_operand.vmem [shape: f32[768,32], index: 1, kind: input, shape index: {}]
  %s2 = inlined_call_operand.vmem [shape: f32[512,128], index: 2, kind: input, shape index: {}]
  %s3 = inlined_call_operand.vmem [shape: f32[1,128], index: 3, kind: input, shape index: {}]
  %s4 = inlined_call_operand.vmem [shape: f32[3,32], index: 4, kind: input, shape index: {}]
  %s5 = inlined_call_operand.vmem [shape: f32[32,128], index: 5, kind: input, shape index: {}]
  %s6 = inlined_call_operand.vmem [shape: f32[1,128], index: 6, kind: input, shape index: {}]
  %s7 = inlined_call_operand.vmem [shape: f32[768,128], index: 7, kind: output, shape index: {0}]
  %s8 = inlined_call_operand.vmem [shape: f32[768,128], index: 8, kind: output, shape index: {1}]
  %9 = xla_tuple %s7, %s8
  %s10 = sld [smem:[#allocation0]]
  $region69: #{recurrent_gconv_lstm_forward.7} parent=0
    _
  %s12 = ssub.s32 1, %s10
  %s13 = scalar_select 0, %s12, %s10
  loop: start=0, step=1, limit=5
  $region2: #{recurrent_gconv_lstm_forward.7} parent=0 // loop_pre_header
    _
  $region3: #{recurrent_gconv_lstm_forward.7} parent=0 // loop_header
    %s15 = sphi 0, %s19
    %p16 = scmp.ge.s32.totalorder %s15, 5
    %s25 = sphi 0, %s27
    %s28 = sphi 0, %s25
    %s29 = sphi 0, %s28
    %s45 = sphi 0, %s29
    %s51 = sphi 0, %s53
    %s54 = sphi 0, %s51
    %s55 = sphi 0, %s54
    %s71 = sphi 0, %s55
    %s75 = sphi 0, %s75
    %s77 = sphi 0, %s75
    %s78 = sphi 0, %s77
    %s92 = sphi 0, %s78
    %s96 = sphi 0, %s96
    %s98 = sphi 0, %s96
    %s99 = sphi 0, %s98
    %s113 = sphi 0, %s99
    %s117 = sphi 0, %s117
    %s119 = sphi 0, %s117
    %s120 = sphi 0, %s119
    %s134 = sphi 0, %s120
    %s138 = sphi 0, %s138
    %s140 = sphi 0, %s138
    %s141 = sphi 0, %s140
    %s155 = sphi 0, %s141
    %s159 = sphi 0, %s159
    %s161 = sphi 0, %s159
    %s162 = sphi 0, %s161
    %s176 = sphi 0, %s162
    %s182 = sphi 0, %s184
    %s185 = sphi 0, %s182
    %s186 = sphi 0, %s185
    %s202 = sphi 0, %s186
    %s208 = sphi 0, %s210
    %s211 = sphi 0, %s208
    %s212 = sphi 0, %s211
    %s228 = sphi 0, %s212
  $region4: #{recurrent_gconv_lstm_forward.7} parent=0 // loop_header_branch
    %18 = sbr.rel (%p16) target = $region8
  $region5: #{recurrent_gconv_lstm_forward.7} parent=0 // loop_body
    %s20 = ssub.s32 %s15, 1
    %s21 = ssub.s32 %s15, 2
    %s22 = sadd.s32 %s15, 1
    %s23 = ssub.s32 %s15, %s22
    %p24 = scmp.eq.s32.totalorder %s23, 0
    %s26 = sadd.s32 %s25, 1
    %s27 = scalar_select %p24, %s25, %s26
    %p30 = pneg %p24
    %p31 = scmp.eq.s32.totalorder %s15, 2
    %p32 = por %p30, %p31
    %p33 = scmp.ne.s32.totalorder %s25, %s28
    %p34 = scmp.eq.s32.totalorder %s15, 0
    %p35 = por %p33, %p34
    %p36 = scmp.ne.s32.totalorder %s25, %s28
    %p37 = scmp.eq.s32.totalorder %s20, 2
    %p38 = por %p36, %p37
    %p39 = scmp.ne.s32.totalorder %s28, %s29
    %p40 = scmp.eq.s32.totalorder %s20, 0
    %p41 = por %p39, %p40
    %p42 = scmp.ne.s32.totalorder %s28, %s29
    %p43 = scmp.eq.s32.totalorder %s21, 2
    %p44 = por %p42, %p43
    %p46 = scmp.ne.s32.totalorder %s29, %s45
    %p47 = scmp.eq.s32.totalorder %s21, 0
    %p48 = por %p46, %p47
    %s49 = ssub.s32 %s15, %s22
    %p50 = scmp.eq.s32.totalorder %s49, 0
    %s52 = sadd.s32 %s51, 1
    %s53 = scalar_select %p50, %s51, %s52
    %p56 = pneg %p50
    %p57 = scmp.eq.s32.totalorder %s15, 2
    %p58 = por %p56, %p57
    %p59 = scmp.ne.s32.totalorder %s51, %s54
    %p60 = scmp.eq.s32.totalorder %s15, 0
    %p61 = por %p59, %p60
    %p62 = scmp.ne.s32.totalorder %s51, %s54
    %p63 = scmp.eq.s32.totalorder %s20, 2
    %p64 = por %p62, %p63
    %p65 = scmp.ne.s32.totalorder %s54, %s55
    %p66 = scmp.eq.s32.totalorder %s20, 0
    %p67 = por %p65, %p66
    %p68 = scmp.ne.s32.totalorder %s54, %s55
    %p69 = scmp.eq.s32.totalorder %s21, 2
    %p70 = por %p68, %p69
    %p72 = scmp.ne.s32.totalorder %s55, %s71
    %p73 = scmp.eq.s32.totalorder %s21, 0
    %p74 = por %p72, %p73
    %s76 = sadd.s32 %s75, 1
    %p79 = scmp.eq.s32.totalorder %s15, 2
    %p80 = scmp.ne.s32.totalorder %s75, %s77
    %p81 = scmp.eq.s32.totalorder %s15, 0
    %p82 = por %p80, %p81
    %p83 = scmp.ne.s32.totalorder %s75, %s77
    %p84 = scmp.eq.s32.totalorder %s20, 2
    %p85 = por %p83, %p84
    %p86 = scmp.ne.s32.totalorder %s77, %s78
    %p87 = scmp.eq.s32.totalorder %s20, 0
    %p88 = por %p86, %p87
    %p89 = scmp.ne.s32.totalorder %s77, %s78
    %p90 = scmp.eq.s32.totalorder %s21, 2
    %p91 = por %p89, %p90
    %p93 = scmp.ne.s32.totalorder %s78, %s92
    %p94 = scmp.eq.s32.totalorder %s21, 0
    %p95 = por %p93, %p94
    %s97 = sadd.s32 %s96, 1
    %p100 = scmp.eq.s32.totalorder %s15, 2
    %p101 = scmp.ne.s32.totalorder %s96, %s98
    %p102 = scmp.eq.s32.totalorder %s15, 0
    %p103 = por %p101, %p102
    %p104 = scmp.ne.s32.totalorder %s96, %s98
    %p105 = scmp.eq.s32.totalorder %s20, 2
    %p106 = por %p104, %p105
    %p107 = scmp.ne.s32.totalorder %s98, %s99
    %p108 = scmp.eq.s32.totalorder %s20, 0
    %p109 = por %p107, %p108
    %p110 = scmp.ne.s32.totalorder %s98, %s99
    %p111 = scmp.eq.s32.totalorder %s21, 2
    %p112 = por %p110, %p111
    %p114 = scmp.ne.s32.totalorder %s99, %s113
    %p115 = scmp.eq.s32.totalorder %s21, 0
    %p116 = por %p114, %p115
    %s118 = sadd.s32 %s117, 1
    %p121 = scmp.eq.s32.totalorder %s15, 2
    %p122 = scmp.ne.s32.totalorder %s117, %s119
    %p123 = scmp.eq.s32.totalorder %s15, 0
    %p124 = por %p122, %p123
    %p125 = scmp.ne.s32.totalorder %s117, %s119
    %p126 = scmp.eq.s32.totalorder %s20, 2
    %p127 = por %p125, %p126
    %p128 = scmp.ne.s32.totalorder %s119, %s120
    %p129 = scmp.eq.s32.totalorder %s20, 0
    %p130 = por %p128, %p129
    %p131 = scmp.ne.s32.totalorder %s119, %s120
    %p132 = scmp.eq.s32.totalorder %s21, 2
    %p133 = por %p131, %p132
    %p135 = scmp.ne.s32.totalorder %s120, %s134
    %p136 = scmp.eq.s32.totalorder %s21, 0
    %p137 = por %p135, %p136
    %s139 = sadd.s32 %s138, 1
    %p142 = scmp.eq.s32.totalorder %s15, 2
    %p143 = scmp.ne.s32.totalorder %s138, %s140
    %p144 = scmp.eq.s32.totalorder %s15, 0
    %p145 = por %p143, %p144
    %p146 = scmp.ne.s32.totalorder %s138, %s140
    %p147 = scmp.eq.s32.totalorder %s20, 2
    %p148 = por %p146, %p147
    %p149 = scmp.ne.s32.totalorder %s140, %s141
    %p150 = scmp.eq.s32.totalorder %s20, 0
    %p151 = por %p149, %p150
    %p152 = scmp.ne.s32.totalorder %s140, %s141
    %p153 = scmp.eq.s32.totalorder %s21, 2
    %p154 = por %p152, %p153
    %p156 = scmp.ne.s32.totalorder %s141, %s155
    %p157 = scmp.eq.s32.totalorder %s21, 0
    %p158 = por %p156, %p157
    %s160 = sadd.s32 %s159, 1
    %p163 = scmp.eq.s32.totalorder %s15, 2
    %p164 = scmp.ne.s32.totalorder %s159, %s161
    %p165 = scmp.eq.s32.totalorder %s15, 0
    %p166 = por %p164, %p165
    %p167 = scmp.ne.s32.totalorder %s159, %s161
    %p168 = scmp.eq.s32.totalorder %s20, 2
    %p169 = por %p167, %p168
    %p170 = scmp.ne.s32.totalorder %s161, %s162
    %p171 = scmp.eq.s32.totalorder %s20, 0
    %p172 = por %p170, %p171
    %p173 = scmp.ne.s32.totalorder %s161, %s162
    %p174 = scmp.eq.s32.totalorder %s21, 2
    %p175 = por %p173, %p174
    %p177 = scmp.ne.s32.totalorder %s162, %s176
    %p178 = scmp.eq.s32.totalorder %s21, 0
    %p179 = por %p177, %p178
    %s180 = ssub.s32 %s15, %s22
    %p181 = scmp.eq.s32.totalorder %s180, 0
    %s183 = sadd.s32 %s182, 1
    %s184 = scalar_select %p181, %s182, %s183
    %p187 = pneg %p181
    %p188 = scmp.eq.s32.totalorder %s15, 2
    %p189 = por %p187, %p188
    %p190 = scmp.ne.s32.totalorder %s182, %s185
    %p191 = scmp.eq.s32.totalorder %s15, 0
    %p192 = por %p190, %p191
    %p193 = scmp.ne.s32.totalorder %s182, %s185
    %p194 = scmp.eq.s32.totalorder %s20, 2
    %p195 = por %p193, %p194
    %p196 = scmp.ne.s32.totalorder %s185, %s186
    %p197 = scmp.eq.s32.totalorder %s20, 0
    %p198 = por %p196, %p197
    %p199 = scmp.ne.s32.totalorder %s185, %s186
    %p200 = scmp.eq.s32.totalorder %s21, 2
    %p201 = por %p199, %p200
    %p203 = scmp.ne.s32.totalorder %s186, %s202
    %p204 = scmp.eq.s32.totalorder %s21, 0
    %p205 = por %p203, %p204
    %s206 = ssub.s32 %s15, %s22
    %p207 = scmp.eq.s32.totalorder %s206, 0
    %s209 = sadd.s32 %s208, 1
    %s210 = scalar_select %p207, %s208, %s209
    %p213 = pneg %p207
    %p214 = scmp.eq.s32.totalorder %s15, 2
    %p215 = por %p213, %p214
    %p216 = scmp.ne.s32.totalorder %s208, %s211
    %p217 = scmp.eq.s32.totalorder %s15, 0
    %p218 = por %p216, %p217
    %p219 = scmp.ne.s32.totalorder %s208, %s211
    %p220 = scmp.eq.s32.totalorder %s20, 2
    %p221 = por %p219, %p220
    %p222 = scmp.ne.s32.totalorder %s211, %s212
    %p223 = scmp.eq.s32.totalorder %s20, 0
    %p224 = por %p222, %p223
    %p225 = scmp.ne.s32.totalorder %s211, %s212
    %p226 = scmp.eq.s32.totalorder %s21, 2
    %p227 = por %p225, %p226
    %p229 = scmp.ne.s32.totalorder %s212, %s228
    %p230 = scmp.eq.s32.totalorder %s21, 0
    %p231 = por %p229, %p230
    %p232 = scmp.le.s32.totalorder 1, %s15
    %p233 = scmp.lt.s32.totalorder %s15, 4
    %p234 = pnand %p232, %p233
    %p235 = pneg %p234
    // Predicated region
    $region9: #{recurrent_gconv_lstm_forward.7} parent=5 // pred_check
      _
    $region10: #{recurrent_gconv_lstm_forward.7} parent=5 // pred_check_branch
      %237 = sbr.rel (%p234) target = $region12
    $region11: #{recurrent_gconv_lstm_forward.7} parent=5 // pred_region
      %s238 = ssub.s32 %s15, 1
      // Predicated region
      $region13: #{recurrent_gconv_lstm_forward.7} parent=11 // pred_check
        %p239 = pneg %p88
      $region14: #{recurrent_gconv_lstm_forward.7} parent=11 // pred_check_branch
        %241 = sbr.rel (%p239) target = $region16
      $region15: #{recurrent_gconv_lstm_forward.7} parent=11 // pred_region
        _
      $region16: #{recurrent_gconv_lstm_forward.7} parent=11 // pred_fallthru
        _
      // Predicated region
      $region17: #{recurrent_gconv_lstm_forward.7} parent=11 // pred_check
        %p242 = pneg %p109
      $region18: #{recurrent_gconv_lstm_forward.7} parent=11 // pred_check_branch
        %244 = sbr.rel (%p242) target = $region20
      $region19: #{recurrent_gconv_lstm_forward.7} parent=11 // pred_region
        _
      $region20: #{recurrent_gconv_lstm_forward.7} parent=11 // pred_fallthru
        _
      // Predicated region
      $region21: #{recurrent_gconv_lstm_forward.7} parent=11 // pred_check
        %p245 = pneg %p130
      $region22: #{recurrent_gconv_lstm_forward.7} parent=11 // pred_check_branch
        %247 = sbr.rel (%p245) target = $region24
      $region23: #{recurrent_gconv_lstm_forward.7} parent=11 // pred_region
        _
      $region24: #{recurrent_gconv_lstm_forward.7} parent=11 // pred_fallthru
        _
      // Predicated region
      $region25: #{recurrent_gconv_lstm_forward.7} parent=11 // pred_check
        %p248 = pneg %p151
      $region26: #{recurrent_gconv_lstm_forward.7} parent=11 // pred_check_branch
        %250 = sbr.rel (%p248) target = $region28
      $region27: #{recurrent_gconv_lstm_forward.7} parent=11 // pred_region
        _
      $region28: #{recurrent_gconv_lstm_forward.7} parent=11 // pred_fallthru
        _
      // Predicated region
      $region29: #{recurrent_gconv_lstm_forward.7} parent=11 // pred_check
        %p251 = pneg %p172
      $region30: #{recurrent_gconv_lstm_forward.7} parent=11 // pred_check_branch
        %253 = sbr.rel (%p251) target = $region32
      $region31: #{recurrent_gconv_lstm_forward.7} parent=11 // pred_region
        _
      $region32: #{recurrent_gconv_lstm_forward.7} parent=11 // pred_fallthru
        _
    $region12: #{recurrent_gconv_lstm_forward.7} parent=5 // pred_fallthru
      _
    %p254 = scmp.lt.s32.totalorder %s15, 3
    // Predicated region
    $region33: #{recurrent_gconv_lstm_forward.7} parent=5 // pred_check
      %p255 = pneg %p254
    $region34: #{recurrent_gconv_lstm_forward.7} parent=5 // pred_check_branch
      %257 = sbr.rel (%p255) target = $region36
    $region35: #{recurrent_gconv_lstm_forward.7} parent=5 // pred_region
      // Predicated region
      $region37: #{recurrent_gconv_lstm_forward.7} parent=35 // pred_check
        %p258 = pneg %p35
      $region38: #{recurrent_gconv_lstm_forward.7} parent=35 // pred_check_branch
        %260 = sbr.rel (%p258) target = $region40
      $region39: #{recurrent_gconv_lstm_forward.7} parent=35 // pred_region
        %s261 = smul.u32 32, %s15
        %p262 = scmp.lt.s32.totalorder %s261, 95
        %s263 = scalar_select %p262, %s261, 95
        %s264 = smul.addr %s263, 4
        %s265 = smul.addr %s264, 8
        %s266 = scalar_lea.vmem %s0, %s265
        %s267 = smul.u32 32, %s15
      $region40: #{recurrent_gconv_lstm_forward.7} parent=35 // pred_fallthru
        _
      // Predicated region
      $region41: #{recurrent_gconv_lstm_forward.7} parent=35 // pred_check
        %p268 = pneg %p61
      $region42: #{recurrent_gconv_lstm_forward.7} parent=35 // pred_check_branch
        %270 = sbr.rel (%p268) target = $region44
      $region43: #{recurrent_gconv_lstm_forward.7} parent=35 // pred_region
        %s271 = smul.u32 32, %s15
        %p272 = scmp.lt.s32.totalorder %s271, 95
        %s273 = scalar_select %p272, %s271, 95
        %s274 = smul.addr %s273, 8
        %s275 = scalar_lea.vmem %s1, %s274
        %s276 = smul.u32 32, %s15
      $region44: #{recurrent_gconv_lstm_forward.7} parent=35 // pred_fallthru
        _
    $region36: #{recurrent_gconv_lstm_forward.7} parent=5 // pred_fallthru
      _
    %p277 = scmp.le.s32.totalorder 1, %s15
    %p278 = scmp.lt.s32.totalorder %s15, 4
    %p279 = pnand %p277, %p278
    %p280 = pneg %p279
    // Predicated region
    $region45: #{recurrent_gconv_lstm_forward.7} parent=5 // pred_check
      _
    $region46: #{recurrent_gconv_lstm_forward.7} parent=5 // pred_check_branch
      %282 = sbr.rel (%p279) target = $region48
    $region47: #{recurrent_gconv_lstm_forward.7} parent=5 // pred_region
      %s283 = ssub.s32 %s15, 1
      %s284 = smul.u32 32, %s20
      %p285 = scmp.lt.s32.totalorder %s284, 95
      %s286 = scalar_select %p285, %s284, 95
      %s287 = smul.addr %s286, 4
      %s288 = smul.addr %s287, 8
      %s289 = scalar_lea.vmem %s0, %s288
      %p290 = pneg %p41
      %p291 = pneg %p38
      %s292 = smul.u32 32, %s20
      %p293 = scmp.lt.s32.totalorder %s292, 95
      %s294 = scalar_select %p293, %s292, 95
      %s295 = smul.addr %s294, 8
      %s296 = scalar_lea.vmem %s1, %s295
      %p297 = pneg %p67
      %p298 = pneg %p64
      %p299 = pneg %p88
      %p300 = pneg %p85
      %p301 = pneg %p109
      %p302 = pneg %p106
      %p303 = pneg %p130
      %p304 = pneg %p127
      %p305 = pneg %p151
      %p306 = pneg %p148
      %p307 = pneg %p172
      %p308 = pneg %p169
      %p309 = pneg %p198
      %p310 = pneg %p195
      %s311 = smul.u32 32, %s20
      %p312 = scmp.lt.s32.totalorder %s311, 95
      %s313 = scalar_select %p312, %s311, 95
      %s314 = smul.addr %s313, 8
      %s315 = scalar_lea.vmem %s7, %s314
      %p316 = pneg %p224
      %p317 = pneg %p221
      %s318 = smul.u32 32, %s20
      %p319 = scmp.lt.s32.totalorder %s318, 95
      %s320 = scalar_select %p319, %s318, 95
      %s321 = smul.addr %s320, 8
      %s322 = scalar_lea.vmem %s8, %s321
      %s323 = smul.u32 32, %s20
      %p324 = scmp.lt.s32.totalorder %s323, 95
      %s325 = scalar_select %p324, %s323, 95
      %s326 = smul.addr %s325, 4
      %s327 = smul.addr %s326, 8
      %s328 = scalar_lea.vmem %s0, %s327
      %s329 = smul.u32 32, %s20
      %s330 = smul.u32 32, %s20
      %p331 = scmp.lt.s32.totalorder %s330, 95
      %s332 = scalar_select %p331, %s330, 95
      %s333 = smul.addr %s332, 8
      %s334 = scalar_lea.vmem %s1, %s333
      %s335 = smul.u32 32, %s20
      %s336 = smul.u32 32, %s20
      %p337 = scmp.lt.s32.totalorder %s336, 95
      %s338 = scalar_select %p337, %s336, 95
      %s339 = smul.addr %s338, 8
      %s340 = scalar_lea.vmem %s7, %s339
      %s341 = smul.u32 32, %s20
      %s342 = smul.u32 32, %s20
      %p343 = scmp.lt.s32.totalorder %s342, 95
      %s344 = scalar_select %p343, %s342, 95
      %s345 = smul.addr %s344, 8
      %s346 = scalar_lea.vmem %s8, %s345
      %s347 = smul.u32 32, %s20
      %v348 = vld [vmem:[%s328] sm:$0xff]
      %v349 = vld [vmem:[%s328 + $0x8] sm:$0xff]
      %v350 = vld [vmem:[%s328 + $0x10] sm:$0xff]
      %v351 = vld [vmem:[%s328 + $0x18] sm:$0xff]
      %v352 = vld [vmem:[%s328 + $0x20] sm:$0xff]
      %v353 = vld [vmem:[%s328 + $0x28] sm:$0xff]
      %v354 = vld [vmem:[%s328 + $0x30] sm:$0xff]
      %v355 = vld [vmem:[%s328 + $0x38] sm:$0xff]
      %v356 = vld [vmem:[%s328 + $0x40] sm:$0xff]
      %v357 = vld [vmem:[%s328 + $0x48] sm:$0xff]
      %v358 = vld [vmem:[%s328 + $0x50] sm:$0xff]
      %v359 = vld [vmem:[%s328 + $0x58] sm:$0xff]
      %v360 = vld [vmem:[%s328 + $0x60] sm:$0xff]
      %v361 = vld [vmem:[%s328 + $0x68] sm:$0xff]
      %v362 = vld [vmem:[%s328 + $0x70] sm:$0xff]
      %v363 = vld [vmem:[%s328 + $0x78] sm:$0xff]
      %v364 = vld [vmem:[%s328 + $0x80] sm:$0xff]
      %v365 = vld [vmem:[%s328 + $0x88] sm:$0xff]
      %v366 = vld [vmem:[%s328 + $0x90] sm:$0xff]
      %v367 = vld [vmem:[%s328 + $0x98] sm:$0xff]
      %v368 = vld [vmem:[%s328 + $0xa0] sm:$0xff]
      %v369 = vld [vmem:[%s328 + $0xa8] sm:$0xff]
      %v370 = vld [vmem:[%s328 + $0xb0] sm:$0xff]
      %v371 = vld [vmem:[%s328 + $0xb8] sm:$0xff]
      %v372 = vld [vmem:[%s328 + $0xc0] sm:$0xff]
      %v373 = vld [vmem:[%s328 + $0xc8] sm:$0xff]
      %v374 = vld [vmem:[%s328 + $0xd0] sm:$0xff]
      %v375 = vld [vmem:[%s328 + $0xd8] sm:$0xff]
      %v376 = vld [vmem:[%s328 + $0xe0] sm:$0xff]
      %v377 = vld [vmem:[%s328 + $0xe8] sm:$0xff]
      %v378 = vld [vmem:[%s328 + $0xf0] sm:$0xff]
      %v379 = vld [vmem:[%s328 + $0xf8] sm:$0xff]
      %v380 = vld [vmem:[%s328 + $0x100] sm:$0xff]
      %v381 = vld [vmem:[%s328 + $0x108] sm:$0xff]
      %v382 = vld [vmem:[%s328 + $0x110] sm:$0xff]
      %v383 = vld [vmem:[%s328 + $0x118] sm:$0xff]
      %v384 = vld [vmem:[%s328 + $0x120] sm:$0xff]
      %v385 = vld [vmem:[%s328 + $0x128] sm:$0xff]
      %v386 = vld [vmem:[%s328 + $0x130] sm:$0xff]
      %v387 = vld [vmem:[%s328 + $0x138] sm:$0xff]
      %v388 = vld [vmem:[%s328 + $0x140] sm:$0xff]
      %v389 = vld [vmem:[%s328 + $0x148] sm:$0xff]
      %v390 = vld [vmem:[%s328 + $0x150] sm:$0xff]
      %v391 = vld [vmem:[%s328 + $0x158] sm:$0xff]
      %v392 = vld [vmem:[%s328 + $0x160] sm:$0xff]
      %v393 = vld [vmem:[%s328 + $0x168] sm:$0xff]
      %v394 = vld [vmem:[%s328 + $0x170] sm:$0xff]
      %v395 = vld [vmem:[%s328 + $0x178] sm:$0xff]
      %v396 = vld [vmem:[%s328 + $0x180] sm:$0xff]
      %v397 = vld [vmem:[%s328 + $0x188] sm:$0xff]
      %v398 = vld [vmem:[%s328 + $0x190] sm:$0xff]
      %v399 = vld [vmem:[%s328 + $0x198] sm:$0xff]
      %v400 = vld [vmem:[%s328 + $0x1a0] sm:$0xff]
      %v401 = vld [vmem:[%s328 + $0x1a8] sm:$0xff]
      %v402 = vld [vmem:[%s328 + $0x1b0] sm:$0xff]
      %v403 = vld [vmem:[%s328 + $0x1b8] sm:$0xff]
      %v404 = vld [vmem:[%s328 + $0x1c0] sm:$0xff]
      %v405 = vld [vmem:[%s328 + $0x1c8] sm:$0xff]
      %v406 = vld [vmem:[%s328 + $0x1d0] sm:$0xff]
      %v407 = vld [vmem:[%s328 + $0x1d8] sm:$0xff]
      %v408 = vld [vmem:[%s328 + $0x1e0] sm:$0xff]
      %v409 = vld [vmem:[%s328 + $0x1e8] sm:$0xff]
      %v410 = vld [vmem:[%s328 + $0x1f0] sm:$0xff]
      %v411 = vld [vmem:[%s328 + $0x1f8] sm:$0xff]
      %v412 = vld [vmem:[%s328 + $0x200] sm:$0xff]
      %v413 = vld [vmem:[%s328 + $0x208] sm:$0xff]
      %v414 = vld [vmem:[%s328 + $0x210] sm:$0xff]
      %v415 = vld [vmem:[%s328 + $0x218] sm:$0xff]
      %v416 = vld [vmem:[%s328 + $0x220] sm:$0xff]
      %v417 = vld [vmem:[%s328 + $0x228] sm:$0xff]
      %v418 = vld [vmem:[%s328 + $0x230] sm:$0xff]
      %v419 = vld [vmem:[%s328 + $0x238] sm:$0xff]
      %v420 = vld [vmem:[%s328 + $0x240] sm:$0xff]
      %v421 = vld [vmem:[%s328 + $0x248] sm:$0xff]
      %v422 = vld [vmem:[%s328 + $0x250] sm:$0xff]
      %v423 = vld [vmem:[%s328 + $0x258] sm:$0xff]
      %v424 = vld [vmem:[%s328 + $0x260] sm:$0xff]
      %v425 = vld [vmem:[%s328 + $0x268] sm:$0xff]
      %v426 = vld [vmem:[%s328 + $0x270] sm:$0xff]
      %v427 = vld [vmem:[%s328 + $0x278] sm:$0xff]
      %v428 = vld [vmem:[%s328 + $0x280] sm:$0xff]
      %v429 = vld [vmem:[%s328 + $0x288] sm:$0xff]
      %v430 = vld [vmem:[%s328 + $0x290] sm:$0xff]
      %v431 = vld [vmem:[%s328 + $0x298] sm:$0xff]
      %v432 = vld [vmem:[%s328 + $0x2a0] sm:$0xff]
      %v433 = vld [vmem:[%s328 + $0x2a8] sm:$0xff]
      %v434 = vld [vmem:[%s328 + $0x2b0] sm:$0xff]
      %v435 = vld [vmem:[%s328 + $0x2b8] sm:$0xff]
      %v436 = vld [vmem:[%s328 + $0x2c0] sm:$0xff]
      %v437 = vld [vmem:[%s328 + $0x2c8] sm:$0xff]
      %v438 = vld [vmem:[%s328 + $0x2d0] sm:$0xff]
      %v439 = vld [vmem:[%s328 + $0x2d8] sm:$0xff]
      %v440 = vld [vmem:[%s328 + $0x2e0] sm:$0xff]
      %v441 = vld [vmem:[%s328 + $0x2e8] sm:$0xff]
      %v442 = vld [vmem:[%s328 + $0x2f0] sm:$0xff]
      %v443 = vld [vmem:[%s328 + $0x2f8] sm:$0xff]
      %v444 = vld [vmem:[%s328 + $0x300] sm:$0xff]
      %v445 = vld [vmem:[%s328 + $0x308] sm:$0xff]
      %v446 = vld [vmem:[%s328 + $0x310] sm:$0xff]
      %v447 = vld [vmem:[%s328 + $0x318] sm:$0xff]
      %v448 = vld [vmem:[%s328 + $0x320] sm:$0xff]
      %v449 = vld [vmem:[%s328 + $0x328] sm:$0xff]
      %v450 = vld [vmem:[%s328 + $0x330] sm:$0xff]
      %v451 = vld [vmem:[%s328 + $0x338] sm:$0xff]
      %v452 = vld [vmem:[%s328 + $0x340] sm:$0xff]
      %v453 = vld [vmem:[%s328 + $0x348] sm:$0xff]
      %v454 = vld [vmem:[%s328 + $0x350] sm:$0xff]
      %v455 = vld [vmem:[%s328 + $0x358] sm:$0xff]
      %v456 = vld [vmem:[%s328 + $0x360] sm:$0xff]
      %v457 = vld [vmem:[%s328 + $0x368] sm:$0xff]
      %v458 = vld [vmem:[%s328 + $0x370] sm:$0xff]
      %v459 = vld [vmem:[%s328 + $0x378] sm:$0xff]
      %v460 = vld [vmem:[%s328 + $0x380] sm:$0xff]
      %v461 = vld [vmem:[%s328 + $0x388] sm:$0xff]
      %v462 = vld [vmem:[%s328 + $0x390] sm:$0xff]
      %v463 = vld [vmem:[%s328 + $0x398] sm:$0xff]
      %v464 = vld [vmem:[%s328 + $0x3a0] sm:$0xff]
      %v465 = vld [vmem:[%s328 + $0x3a8] sm:$0xff]
      %v466 = vld [vmem:[%s328 + $0x3b0] sm:$0xff]
      %v467 = vld [vmem:[%s328 + $0x3b8] sm:$0xff]
      %v468 = vld [vmem:[%s328 + $0x3c0] sm:$0xff]
      %v469 = vld [vmem:[%s328 + $0x3c8] sm:$0xff]
      %v470 = vld [vmem:[%s328 + $0x3d0] sm:$0xff]
      %v471 = vld [vmem:[%s328 + $0x3d8] sm:$0xff]
      %v472 = vld [vmem:[%s328 + $0x3e0] sm:$0xff]
      %v473 = vld [vmem:[%s328 + $0x3e8] sm:$0xff]
      %v474 = vld [vmem:[%s328 + $0x3f0] sm:$0xff]
      %v475 = vld [vmem:[%s328 + $0x3f8] sm:$0xff]
      %v476 = vld [vmem:[%s2] sm:$0xff]
      %v477 = vld [vmem:[%s2 + $0x8] sm:$0xff]
      %v478 = vld [vmem:[%s2 + $0x10] sm:$0xff]
      %v479 = vld [vmem:[%s2 + $0x18] sm:$0xff]
      %v480 = vld [vmem:[%s2 + $0x20] sm:$0xff]
      %v481 = vld [vmem:[%s2 + $0x28] sm:$0xff]
      %v482 = vld [vmem:[%s2 + $0x30] sm:$0xff]
      %v483 = vld [vmem:[%s2 + $0x38] sm:$0xff]
      %v484 = vld [vmem:[%s2 + $0x40] sm:$0xff]
      %v485 = vld [vmem:[%s2 + $0x48] sm:$0xff]
      %v486 = vld [vmem:[%s2 + $0x50] sm:$0xff]
      %v487 = vld [vmem:[%s2 + $0x58] sm:$0xff]
      %v488 = vld [vmem:[%s2 + $0x60] sm:$0xff]
      %v489 = vld [vmem:[%s2 + $0x68] sm:$0xff]
      %v490 = vld [vmem:[%s2 + $0x70] sm:$0xff]
      %v491 = vld [vmem:[%s2 + $0x78] sm:$0xff]
      %v492 = vld [vmem:[%s2 + $0x80] sm:$0xff]
      %v493 = vld [vmem:[%s2 + $0x88] sm:$0xff]
      %v494 = vld [vmem:[%s2 + $0x90] sm:$0xff]
      %v495 = vld [vmem:[%s2 + $0x98] sm:$0xff]
      %v496 = vld [vmem:[%s2 + $0xa0] sm:$0xff]
      %v497 = vld [vmem:[%s2 + $0xa8] sm:$0xff]
      %v498 = vld [vmem:[%s2 + $0xb0] sm:$0xff]
      %v499 = vld [vmem:[%s2 + $0xb8] sm:$0xff]
      %v500 = vld [vmem:[%s2 + $0xc0] sm:$0xff]
      %v501 = vld [vmem:[%s2 + $0xc8] sm:$0xff]
      %v502 = vld [vmem:[%s2 + $0xd0] sm:$0xff]
      %v503 = vld [vmem:[%s2 + $0xd8] sm:$0xff]
      %v504 = vld [vmem:[%s2 + $0xe0] sm:$0xff]
      %v505 = vld [vmem:[%s2 + $0xe8] sm:$0xff]
      %v506 = vld [vmem:[%s2 + $0xf0] sm:$0xff]
      %v507 = vld [vmem:[%s2 + $0xf8] sm:$0xff]
      %v508 = vld [vmem:[%s2 + $0x100] sm:$0xff]
      %v509 = vld [vmem:[%s2 + $0x108] sm:$0xff]
      %v510 = vld [vmem:[%s2 + $0x110] sm:$0xff]
      %v511 = vld [vmem:[%s2 + $0x118] sm:$0xff]
      %v512 = vld [vmem:[%s2 + $0x120] sm:$0xff]
      %v513 = vld [vmem:[%s2 + $0x128] sm:$0xff]
      %v514 = vld [vmem:[%s2 + $0x130] sm:$0xff]
      %v515 = vld [vmem:[%s2 + $0x138] sm:$0xff]
      %v516 = vld [vmem:[%s2 + $0x140] sm:$0xff]
      %v517 = vld [vmem:[%s2 + $0x148] sm:$0xff]
      %v518 = vld [vmem:[%s2 + $0x150] sm:$0xff]
      %v519 = vld [vmem:[%s2 + $0x158] sm:$0xff]
      %v520 = vld [vmem:[%s2 + $0x160] sm:$0xff]
      %v521 = vld [vmem:[%s2 + $0x168] sm:$0xff]
      %v522 = vld [vmem:[%s2 + $0x170] sm:$0xff]
      %v523 = vld [vmem:[%s2 + $0x178] sm:$0xff]
      %v524 = vld [vmem:[%s2 + $0x180] sm:$0xff]
      %v525 = vld [vmem:[%s2 + $0x188] sm:$0xff]
      %v526 = vld [vmem:[%s2 + $0x190] sm:$0xff]
      %v527 = vld [vmem:[%s2 + $0x198] sm:$0xff]
      %v528 = vld [vmem:[%s2 + $0x1a0] sm:$0xff]
      %v529 = vld [vmem:[%s2 + $0x1a8] sm:$0xff]
      %v530 = vld [vmem:[%s2 + $0x1b0] sm:$0xff]
      %v531 = vld [vmem:[%s2 + $0x1b8] sm:$0xff]
      %v532 = vld [vmem:[%s2 + $0x1c0] sm:$0xff]
      %v533 = vld [vmem:[%s2 + $0x1c8] sm:$0xff]
      %v534 = vld [vmem:[%s2 + $0x1d0] sm:$0xff]
      %v535 = vld [vmem:[%s2 + $0x1d8] sm:$0xff]
      %v536 = vld [vmem:[%s2 + $0x1e0] sm:$0xff]
      %v537 = vld [vmem:[%s2 + $0x1e8] sm:$0xff]
      %v538 = vld [vmem:[%s2 + $0x1f0] sm:$0xff]
      %v539 = vld [vmem:[%s2 + $0x1f8] sm:$0xff]
      %v540 = vld [vmem:[%s3] sm:$0x1]
      %v542 = vlaneseq
      %v543 = vshrl.u32 %v542, 7
      %v544 = vsub.s32 0, %v543
      %v545 = vrot.slane %v540, %v544
      %547 = vmatprep.subr.mxu0 0.0
      %548 = vmatpush1.msra.mxu0 %v476
      %549 = vmatprep.subr.mxu0 0.0
      %550 = vmatpush1.msra.mxu0 %v477
      %551 = vmatprep.subr.mxu0 0.0
      %552 = vmatpush1.msra.mxu0 %v478
      %553 = vmatprep.subr.mxu0 0.0
      %554 = vmatpush1.msra.mxu0 %v479
      %555 = vmatprep.subr.mxu0 0.0
      %556 = vmatpush1.msra.mxu0 %v480
      %557 = vmatprep.subr.mxu0 0.0
      %558 = vmatpush1.msra.mxu0 %v481
      %559 = vmatprep.subr.mxu0 0.0
      %560 = vmatpush1.msra.mxu0 %v482
      %561 = vmatprep.subr.mxu0 0.0
      %562 = vmatpush1.msra.mxu0 %v483
      %563 = vmatprep.subr.mxu0 0.0
      %564 = vmatpush1.msra.mxu0 %v484
      %565 = vmatprep.subr.mxu0 0.0
      %566 = vmatpush1.msra.mxu0 %v485
      %567 = vmatprep.subr.mxu0 0.0
      %568 = vmatpush1.msra.mxu0 %v486
      %569 = vmatprep.subr.mxu0 0.0
      %570 = vmatpush1.msra.mxu0 %v487
      %571 = vmatprep.subr.mxu0 0.0
      %572 = vmatpush1.msra.mxu0 %v488
      %573 = vmatprep.subr.mxu0 0.0
      %574 = vmatpush1.msra.mxu0 %v489
      %575 = vmatprep.subr.mxu0 0.0
      %576 = vmatpush1.msra.mxu0 %v490
      %577 = vmatprep.subr.mxu0 0.0
      %578 = vmatpush1.msra.mxu0 %v491
      %579 = vmatprep.subr.mxu0 0.0
      %580 = vmatpush1.msra.mxu0 %v492
      %581 = vmatprep.subr.mxu0 0.0
      %582 = vmatpush1.msra.mxu0 %v493
      %583 = vmatprep.subr.mxu0 0.0
      %584 = vmatpush1.msra.mxu0 %v494
      %585 = vmatprep.subr.mxu0 0.0
      %586 = vmatpush1.msra.mxu0 %v495
      %587 = vmatprep.subr.mxu0 0.0
      %588 = vmatpush1.msra.mxu0 %v496
      %589 = vmatprep.subr.mxu0 0.0
      %590 = vmatpush1.msra.mxu0 %v497
      %591 = vmatprep.subr.mxu0 0.0
      %592 = vmatpush1.msra.mxu0 %v498
      %593 = vmatprep.subr.mxu0 0.0
      %594 = vmatpush1.msra.mxu0 %v499
      %595 = vmatprep.subr.mxu0 0.0
      %596 = vmatpush1.msra.mxu0 %v500
      %597 = vmatprep.subr.mxu0 0.0
      %598 = vmatpush1.msra.mxu0 %v501
      %599 = vmatprep.subr.mxu0 0.0
      %600 = vmatpush1.msra.mxu0 %v502
      %601 = vmatprep.subr.mxu0 0.0
      %602 = vmatpush1.msra.mxu0 %v503
      %603 = vmatprep.subr.mxu0 0.0
      %604 = vmatpush1.msra.mxu0 %v504
      %605 = vmatprep.subr.mxu0 0.0
      %606 = vmatpush1.msra.mxu0 %v505
      %607 = vmatprep.subr.mxu0 0.0
      %608 = vmatpush1.msra.mxu0 %v506
      %609 = vmatprep.subr.mxu0 0.0
      %610 = vmatpush1.msra.mxu0 %v507
      %611 = vmatprep.mubr.f32.mxu0 %v349
      %612 = vmatmul.mubr.f32.gmra.mrb[0].mxu0 %v348
      %v613 = vpop.f32.mrb[0].mxu0
      %v614 = vadd.f32 %v545, %v613
      %v615 = vpop.f32.mrb[0].mxu0
      %616 = vmatprep.mubr.f32.mxu0 %v353
      %617 = vmatmul.mubr.f32.gmra.mrb[0].mxu0 %v352
      %v618 = vpop.f32.mrb[0].mxu0
      %v619 = vadd.f32 %v545, %v618
      %v620 = vpop.f32.mrb[0].mxu0
      %621 = vmatprep.mubr.f32.mxu0 %v357
      %622 = vmatmul.mubr.f32.gmra.mrb[0].mxu0 %v356
      %v623 = vpop.f32.mrb[0].mxu0
      %v624 = vadd.f32 %v545, %v623
      %v625 = vpop.f32.mrb[0].mxu0
      %626 = vmatprep.mubr.f32.mxu0 %v361
      %627 = vmatmul.mubr.f32.gmra.mrb[0].mxu0 %v360
      %v628 = vpop.f32.mrb[0].mxu0
      %v629 = vadd.f32 %v545, %v628
      %v630 = vpop.f32.mrb[0].mxu0
      %631 = vmatprep.mubr.f32.mxu0 %v365
      %632 = vmatmul.mubr.f32.gmra.mrb[0].mxu0 %v364
      %v633 = vpop.f32.mrb[0].mxu0
      %v634 = vadd.f32 %v545, %v633
      %v635 = vpop.f32.mrb[0].mxu0
      %636 = vmatprep.mubr.f32.mxu0 %v369
      %637 = vmatmul.mubr.f32.gmra.mrb[0].mxu0 %v368
      %v638 = vpop.f32.mrb[0].mxu0
      %v639 = vadd.f32 %v545, %v638
      %v640 = vpop.f32.mrb[0].mxu0
      %641 = vmatprep.mubr.f32.mxu0 %v373
      %642 = vmatmul.mubr.f32.gmra.mrb[0].mxu0 %v372
      %v643 = vpop.f32.mrb[0].mxu0
      %v644 = vadd.f32 %v545, %v643
      %v645 = vpop.f32.mrb[0].mxu0
      %646 = vmatprep.mubr.f32.mxu0 %v377
      %647 = vmatmul.mubr.f32.gmra.mrb[0].mxu0 %v376
      %v648 = vpop.f32.mrb[0].mxu0
      %v649 = vadd.f32 %v545, %v648
      %v650 = vpop.f32.mrb[0].mxu0
      %651 = vmatprep.mubr.f32.mxu0 %v381
      %652 = vmatmul.mubr.f32.gmra.mrb[0].mxu0 %v380
      %v653 = vpop.f32.mrb[0].mxu0
      %v654 = vadd.f32 %v545, %v653
      %v655 = vpop.f32.mrb[0].mxu0
      %656 = vmatprep.mubr.f32.mxu0 %v385
      %657 = vmatmul.mubr.f32.gmra.mrb[0].mxu0 %v384
      %v658 = vpop.f32.mrb[0].mxu0
      %v659 = vadd.f32 %v545, %v658
      %v660 = vpop.f32.mrb[0].mxu0
      %661 = vmatprep.mubr.f32.mxu0 %v389
      %662 = vmatmul.mubr.f32.gmra.mrb[0].mxu0 %v388
      %v663 = vpop.f32.mrb[0].mxu0
      %v664 = vadd.f32 %v545, %v663
      %v665 = vpop.f32.mrb[0].mxu0
      %666 = vmatprep.mubr.f32.mxu0 %v393
      %667 = vmatmul.mubr.f32.gmra.mrb[0].mxu0 %v392
      %v668 = vpop.f32.mrb[0].mxu0
      %v669 = vadd.f32 %v545, %v668
      %v670 = vpop.f32.mrb[0].mxu0
      %671 = vmatprep.mubr.f32.mxu0 %v397
      %672 = vmatmul.mubr.f32.gmra.mrb[0].mxu0 %v396
      %v673 = vpop.f32.mrb[0].mxu0
      %v674 = vadd.f32 %v545, %v673
      %v675 = vpop.f32.mrb[0].mxu0
      %676 = vmatprep.mubr.f32.mxu0 %v401
      %677 = vmatmul.mubr.f32.gmra.mrb[0].mxu0 %v400
      %v678 = vpop.f32.mrb[0].mxu0
      %v679 = vadd.f32 %v545, %v678
      %v680 = vpop.f32.mrb[0].mxu0
      %681 = vmatprep.mubr.f32.mxu0 %v405
      %682 = vmatmul.mubr.f32.gmra.mrb[0].mxu0 %v404
      %v683 = vpop.f32.mrb[0].mxu0
      %v684 = vadd.f32 %v545, %v683
      %v685 = vpop.f32.mrb[0].mxu0
      %686 = vmatprep.mubr.f32.mxu0 %v409
      %687 = vmatmul.mubr.f32.gmra.mrb[0].mxu0 %v408
      %v688 = vpop.f32.mrb[0].mxu0
      %v689 = vadd.f32 %v545, %v688
      %v690 = vpop.f32.mrb[0].mxu0
      %691 = vmatprep.mubr.f32.mxu0 %v413
      %692 = vmatmul.mubr.f32.gmra.mrb[0].mxu0 %v412
      %v693 = vpop.f32.mrb[0].mxu0
      %v694 = vadd.f32 %v545, %v693
      %v695 = vpop.f32.mrb[0].mxu0
      %696 = vmatprep.mubr.f32.mxu0 %v417
      %697 = vmatmul.mubr.f32.gmra.mrb[0].mxu0 %v416
      %v698 = vpop.f32.mrb[0].mxu0
      %v699 = vadd.f32 %v545, %v698
      %v700 = vpop.f32.mrb[0].mxu0
      %701 = vmatprep.mubr.f32.mxu0 %v421
      %702 = vmatmul.mubr.f32.gmra.mrb[0].mxu0 %v420
      %v703 = vpop.f32.mrb[0].mxu0
      %v704 = vadd.f32 %v545, %v703
      %v705 = vpop.f32.mrb[0].mxu0
      %706 = vmatprep.mubr.f32.mxu0 %v425
      %707 = vmatmul.mubr.f32.gmra.mrb[0].mxu0 %v424
      %v708 = vpop.f32.mrb[0].mxu0
      %v709 = vadd.f32 %v545, %v708
      %v710 = vpop.f32.mrb[0].mxu0
      %711 = vmatprep.mubr.f32.mxu0 %v429
      %712 = vmatmul.mubr.f32.gmra.mrb[0].mxu0 %v428
      %v713 = vpop.f32.mrb[0].mxu0
      %v714 = vadd.f32 %v545, %v713
      %v715 = vpop.f32.mrb[0].mxu0
      %716 = vmatprep.mubr.f32.mxu0 %v433
      %717 = vmatmul.mubr.f32.gmra.mrb[0].mxu0 %v432
      %v718 = vpop.f32.mrb[0].mxu0
      %v719 = vadd.f32 %v545, %v718
      %v720 = vpop.f32.mrb[0].mxu0
      %721 = vmatprep.mubr.f32.mxu0 %v437
      %722 = vmatmul.mubr.f32.gmra.mrb[0].mxu0 %v436
      %v723 = vpop.f32.mrb[0].mxu0
      %v724 = vadd.f32 %v545, %v723
      %v725 = vpop.f32.mrb[0].mxu0
      %726 = vmatprep.mubr.f32.mxu0 %v441
      %727 = vmatmul.mubr.f32.gmra.mrb[0].mxu0 %v440
      %v728 = vpop.f32.mrb[0].mxu0
      %v729 = vadd.f32 %v545, %v728
      %v730 = vpop.f32.mrb[0].mxu0
      %731 = vmatprep.mubr.f32.mxu0 %v445
      %732 = vmatmul.mubr.f32.gmra.mrb[0].mxu0 %v444
      %v733 = vpop.f32.mrb[0].mxu0
      %v734 = vadd.f32 %v545, %v733
      %v735 = vpop.f32.mrb[0].mxu0
      %736 = vmatprep.mubr.f32.mxu0 %v449
      %737 = vmatmul.mubr.f32.gmra.mrb[0].mxu0 %v448
      %v738 = vpop.f32.mrb[0].mxu0
      %v739 = vadd.f32 %v545, %v738
      %v740 = vpop.f32.mrb[0].mxu0
      %741 = vmatprep.mubr.f32.mxu0 %v453
      %742 = vmatmul.mubr.f32.gmra.mrb[0].mxu0 %v452
      %v743 = vpop.f32.mrb[0].mxu0
      %v744 = vadd.f32 %v545, %v743
      %v745 = vpop.f32.mrb[0].mxu0
      %746 = vmatprep.mubr.f32.mxu0 %v457
      %747 = vmatmul.mubr.f32.gmra.mrb[0].mxu0 %v456
      %v748 = vpop.f32.mrb[0].mxu0
      %v749 = vadd.f32 %v545, %v748
      %v750 = vpop.f32.mrb[0].mxu0
      %751 = vmatprep.mubr.f32.mxu0 %v461
      %752 = vmatmul.mubr.f32.gmra.mrb[0].mxu0 %v460
      %v753 = vpop.f32.mrb[0].mxu0
      %v754 = vadd.f32 %v545, %v753
      %v755 = vpop.f32.mrb[0].mxu0
      %756 = vmatprep.mubr.f32.mxu0 %v465
      %757 = vmatmul.mubr.f32.gmra.mrb[0].mxu0 %v464
      %v758 = vpop.f32.mrb[0].mxu0
      %v759 = vadd.f32 %v545, %v758
      %v760 = vpop.f32.mrb[0].mxu0
      %761 = vmatprep.mubr.f32.mxu0 %v469
      %762 = vmatmul.mubr.f32.gmra.mrb[0].mxu0 %v468
      %v763 = vpop.f32.mrb[0].mxu0
      %v764 = vadd.f32 %v545, %v763
      %v765 = vpop.f32.mrb[0].mxu0
      %766 = vmatprep.mubr.f32.mxu0 %v473
      %767 = vmatmul.mubr.f32.gmra.mrb[0].mxu0 %v472
      %v768 = vpop.f32.mrb[0].mxu0
      %v769 = vadd.f32 %v545, %v768
      %v770 = vpop.f32.mrb[0].mxu0
      %771 = vdwg.mxu0
      %772 = vmatprep.subr.mxu0 0.0
      %773 = vmatpush1.msra.mxu0 %v508
      %774 = vmatprep.subr.mxu0 0.0
      %775 = vmatpush1.msra.mxu0 %v509
      %776 = vmatprep.subr.mxu0 0.0
      %777 = vmatpush1.msra.mxu0 %v510
      %778 = vmatprep.subr.mxu0 0.0
      %779 = vmatpush1.msra.mxu0 %v511
      %780 = vmatprep.subr.mxu0 0.0
      %781 = vmatpush1.msra.mxu0 %v512
      %782 = vmatprep.subr.mxu0 0.0
      %783 = vmatpush1.msra.mxu0 %v513
      %784 = vmatprep.subr.mxu0 0.0
      %785 = vmatpush1.msra.mxu0 %v514
      %786 = vmatprep.subr.mxu0 0.0
      %787 = vmatpush1.msra.mxu0 %v515
      %788 = vmatprep.subr.mxu0 0.0
      %789 = vmatpush1.msra.mxu0 %v516
      %790 = vmatprep.subr.mxu0 0.0
      %791 = vmatpush1.msra.mxu0 %v517
      %792 = vmatprep.subr.mxu0 0.0
      %793 = vmatpush1.msra.mxu0 %v518
      %794 = vmatprep.subr.mxu0 0.0
      %795 = vmatpush1.msra.mxu0 %v519
      %796 = vmatprep.subr.mxu0 0.0
      %797 = vmatpush1.msra.mxu0 %v520
      %798 = vmatprep.subr.mxu0 0.0
      %799 = vmatpush1.msra.mxu0 %v521
      %800 = vmatprep.subr.mxu0 0.0
      %801 = vmatpush1.msra.mxu0 %v522
      %802 = vmatprep.subr.mxu0 0.0
      %803 = vmatpush1.msra.mxu0 %v523
      %804 = vmatprep.subr.mxu0 0.0
      %805 = vmatpush1.msra.mxu0 %v524
      %806 = vmatprep.subr.mxu0 0.0
      %807 = vmatpush1.msra.mxu0 %v525
      %808 = vmatprep.subr.mxu0 0.0
      %809 = vmatpush1.msra.mxu0 %v526
      %810 = vmatprep.subr.mxu0 0.0
      %811 = vmatpush1.msra.mxu0 %v527
      %812 = vmatprep.subr.mxu0 0.0
      %813 = vmatpush1.msra.mxu0 %v528
      %814 = vmatprep.subr.mxu0 0.0
      %815 = vmatpush1.msra.mxu0 %v529
      %816 = vmatprep.subr.mxu0 0.0
      %817 = vmatpush1.msra.mxu0 %v530
      %818 = vmatprep.subr.mxu0 0.0
      %819 = vmatpush1.msra.mxu0 %v531
      %820 = vmatprep.subr.mxu0 0.0
      %821 = vmatpush1.msra.mxu0 %v532
      %822 = vmatprep.subr.mxu0 0.0
      %823 = vmatpush1.msra.mxu0 %v533
      %824 = vmatprep.subr.mxu0 0.0
      %825 = vmatpush1.msra.mxu0 %v534
      %826 = vmatprep.subr.mxu0 0.0
      %827 = vmatpush1.msra.mxu0 %v535
      %828 = vmatprep.subr.mxu0 0.0
      %829 = vmatpush1.msra.mxu0 %v536
      %830 = vmatprep.subr.mxu0 0.0
      %831 = vmatpush1.msra.mxu0 %v537
      %832 = vmatprep.subr.mxu0 0.0
      %833 = vmatpush1.msra.mxu0 %v538
      %834 = vmatprep.subr.mxu0 0.0
      %835 = vmatpush1.msra.mxu0 %v539
      %836 = vmatprep.mubr.f32.mxu0 %v351
      %837 = vmatmul.mubr.f32.gmra.mrb[0].mxu0 %v350
      %v838 = vpop.f32.mrb[0].mxu0
      %v839 = vadd.f32 %v614, %v838
      %v840 = vpop.f32.mrb[0].mxu0
      %841 = vmatprep.mubr.f32.mxu0 %v355
      %842 = vmatmul.mubr.f32.gmra.mrb[0].mxu0 %v354
      %v843 = vpop.f32.mrb[0].mxu0
      %v844 = vadd.f32 %v619, %v843
      %v845 = vpop.f32.mrb[0].mxu0
      %846 = vmatprep.mubr.f32.mxu0 %v359
      %847 = vmatmul.mubr.f32.gmra.mrb[0].mxu0 %v358
      %v848 = vpop.f32.mrb[0].mxu0
      %v849 = vadd.f32 %v624, %v848
      %v850 = vpop.f32.mrb[0].mxu0
      %851 = vmatprep.mubr.f32.mxu0 %v363
      %852 = vmatmul.mubr.f32.gmra.mrb[0].mxu0 %v362
      %v853 = vpop.f32.mrb[0].mxu0
      %v854 = vadd.f32 %v629, %v853
      %v855 = vpop.f32.mrb[0].mxu0
      %856 = vmatprep.mubr.f32.mxu0 %v367
      %857 = vmatmul.mubr.f32.gmra.mrb[0].mxu0 %v366
      %v858 = vpop.f32.mrb[0].mxu0
      %v859 = vadd.f32 %v634, %v858
      %v860 = vpop.f32.mrb[0].mxu0
      %861 = vmatprep.mubr.f32.mxu0 %v371
      %862 = vmatmul.mubr.f32.gmra.mrb[0].mxu0 %v370
      %v863 = vpop.f32.mrb[0].mxu0
      %v864 = vadd.f32 %v639, %v863
      %v865 = vpop.f32.mrb[0].mxu0
      %866 = vmatprep.mubr.f32.mxu0 %v375
      %867 = vmatmul.mubr.f32.gmra.mrb[0].mxu0 %v374
      %v868 = vpop.f32.mrb[0].mxu0
      %v869 = vadd.f32 %v644, %v868
      %v870 = vpop.f32.mrb[0].mxu0
      %871 = vmatprep.mubr.f32.mxu0 %v379
      %872 = vmatmul.mubr.f32.gmra.mrb[0].mxu0 %v378
      %v873 = vpop.f32.mrb[0].mxu0
      %v874 = vadd.f32 %v649, %v873
      %v875 = vpop.f32.mrb[0].mxu0
      %876 = vmatprep.mubr.f32.mxu0 %v383
      %877 = vmatmul.mubr.f32.gmra.mrb[0].mxu0 %v382
      %v878 = vpop.f32.mrb[0].mxu0
      %v879 = vadd.f32 %v654, %v878
      %v880 = vpop.f32.mrb[0].mxu0
      %881 = vmatprep.mubr.f32.mxu0 %v387
      %882 = vmatmul.mubr.f32.gmra.mrb[0].mxu0 %v386
      %v883 = vpop.f32.mrb[0].mxu0
      %v884 = vadd.f32 %v659, %v883
      %v885 = vpop.f32.mrb[0].mxu0
      %886 = vmatprep.mubr.f32.mxu0 %v391
      %887 = vmatmul.mubr.f32.gmra.mrb[0].mxu0 %v390
      %v888 = vpop.f32.mrb[0].mxu0
      %v889 = vadd.f32 %v664, %v888
      %v890 = vpop.f32.mrb[0].mxu0
      %891 = vmatprep.mubr.f32.mxu0 %v395
      %892 = vmatmul.mubr.f32.gmra.mrb[0].mxu0 %v394
      %v893 = vpop.f32.mrb[0].mxu0
      %v894 = vadd.f32 %v669, %v893
      %v895 = vpop.f32.mrb[0].mxu0
      %896 = vmatprep.mubr.f32.mxu0 %v399
      %897 = vmatmul.mubr.f32.gmra.mrb[0].mxu0 %v398
      %v898 = vpop.f32.mrb[0].mxu0
      %v899 = vadd.f32 %v674, %v898
      %v900 = vpop.f32.mrb[0].mxu0
      %901 = vmatprep.mubr.f32.mxu0 %v403
      %902 = vmatmul.mubr.f32.gmra.mrb[0].mxu0 %v402
      %v903 = vpop.f32.mrb[0].mxu0
      %v904 = vadd.f32 %v679, %v903
      %v905 = vpop.f32.mrb[0].mxu0
      %906 = vmatprep.mubr.f32.mxu0 %v407
      %907 = vmatmul.mubr.f32.gmra.mrb[0].mxu0 %v406
      %v908 = vpop.f32.mrb[0].mxu0
      %v909 = vadd.f32 %v684, %v908
      %v910 = vpop.f32.mrb[0].mxu0
      %911 = vmatprep.mubr.f32.mxu0 %v411
      %912 = vmatmul.mubr.f32.gmra.mrb[0].mxu0 %v410
      %v913 = vpop.f32.mrb[0].mxu0
      %v914 = vadd.f32 %v689, %v913
      %v915 = vpop.f32.mrb[0].mxu0
      %916 = vmatprep.mubr.f32.mxu0 %v415
      %917 = vmatmul.mubr.f32.gmra.mrb[0].mxu0 %v414
      %v918 = vpop.f32.mrb[0].mxu0
      %v919 = vadd.f32 %v694, %v918
      %v920 = vpop.f32.mrb[0].mxu0
      %921 = vmatprep.mubr.f32.mxu0 %v419
      %922 = vmatmul.mubr.f32.gmra.mrb[0].mxu0 %v418
      %v923 = vpop.f32.mrb[0].mxu0
      %v924 = vadd.f32 %v699, %v923
      %v925 = vpop.f32.mrb[0].mxu0
      %926 = vmatprep.mubr.f32.mxu0 %v423
      %927 = vmatmul.mubr.f32.gmra.mrb[0].mxu0 %v422
      %v928 = vpop.f32.mrb[0].mxu0
      %v929 = vadd.f32 %v704, %v928
      %v930 = vpop.f32.mrb[0].mxu0
      %931 = vmatprep.mubr.f32.mxu0 %v427
      %932 = vmatmul.mubr.f32.gmra.mrb[0].mxu0 %v426
      %v933 = vpop.f32.mrb[0].mxu0
      %v934 = vadd.f32 %v709, %v933
      %v935 = vpop.f32.mrb[0].mxu0
      %936 = vmatprep.mubr.f32.mxu0 %v431
      %937 = vmatmul.mubr.f32.gmra.mrb[0].mxu0 %v430
      %v938 = vpop.f32.mrb[0].mxu0
      %v939 = vadd.f32 %v714, %v938
      %v940 = vpop.f32.mrb[0].mxu0
      %941 = vmatprep.mubr.f32.mxu0 %v435
      %942 = vmatmul.mubr.f32.gmra.mrb[0].mxu0 %v434
      %v943 = vpop.f32.mrb[0].mxu0
      %v944 = vadd.f32 %v719, %v943
      %v945 = vpop.f32.mrb[0].mxu0
      %946 = vmatprep.mubr.f32.mxu0 %v439
      %947 = vmatmul.mubr.f32.gmra.mrb[0].mxu0 %v438
      %v948 = vpop.f32.mrb[0].mxu0
      %v949 = vadd.f32 %v724, %v948
      %v950 = vpop.f32.mrb[0].mxu0
      %951 = vmatprep.mubr.f32.mxu0 %v443
      %952 = vmatmul.mubr.f32.gmra.mrb[0].mxu0 %v442
      %v953 = vpop.f32.mrb[0].mxu0
      %v954 = vadd.f32 %v729, %v953
      %v955 = vpop.f32.mrb[0].mxu0
      %956 = vmatprep.mubr.f32.mxu0 %v447
      %957 = vmatmul.mubr.f32.gmra.mrb[0].mxu0 %v446
      %v958 = vpop.f32.mrb[0].mxu0
      %v959 = vadd.f32 %v734, %v958
      %v960 = vpop.f32.mrb[0].mxu0
      %961 = vmatprep.mubr.f32.mxu0 %v451
      %962 = vmatmul.mubr.f32.gmra.mrb[0].mxu0 %v450
      %v963 = vpop.f32.mrb[0].mxu0
      %v964 = vadd.f32 %v739, %v963
      %v965 = vpop.f32.mrb[0].mxu0
      %966 = vmatprep.mubr.f32.mxu0 %v455
      %967 = vmatmul.mubr.f32.gmra.mrb[0].mxu0 %v454
      %v968 = vpop.f32.mrb[0].mxu0
      %v969 = vadd.f32 %v744, %v968
      %v970 = vpop.f32.mrb[0].mxu0
      %971 = vmatprep.mubr.f32.mxu0 %v459
      %972 = vmatmul.mubr.f32.gmra.mrb[0].mxu0 %v458
      %v973 = vpop.f32.mrb[0].mxu0
      %v974 = vadd.f32 %v749, %v973
      %v975 = vpop.f32.mrb[0].mxu0
      %976 = vmatprep.mubr.f32.mxu0 %v463
      %977 = vmatmul.mubr.f32.gmra.mrb[0].mxu0 %v462
      %v978 = vpop.f32.mrb[0].mxu0
      %v979 = vadd.f32 %v754, %v978
      %v980 = vpop.f32.mrb[0].mxu0
      %981 = vmatprep.mubr.f32.mxu0 %v467
      %982 = vmatmul.mubr.f32.gmra.mrb[0].mxu0 %v466
      %v983 = vpop.f32.mrb[0].mxu0
      %v984 = vadd.f32 %v759, %v983
      %v985 = vpop.f32.mrb[0].mxu0
      %986 = vmatprep.mubr.f32.mxu0 %v471
      %987 = vmatmul.mubr.f32.gmra.mrb[0].mxu0 %v470
      %v988 = vpop.f32.mrb[0].mxu0
      %v989 = vadd.f32 %v764, %v988
      %v990 = vpop.f32.mrb[0].mxu0
      %991 = vmatprep.mubr.f32.mxu0 %v475
      %992 = vmatmul.mubr.f32.gmra.mrb[0].mxu0 %v474
      %v993 = vpop.f32.mrb[0].mxu0
      %v994 = vadd.f32 %v769, %v993
      %v995 = vpop.f32.mrb[0].mxu0
      %996 = vdwg.mxu0
      %v997 = vld [vmem:[%s334] sm:$0xff]
      %v998 = vld [vmem:[%s334 + $0x8] sm:$0xff]
      %v999 = vld [vmem:[%s334 + $0x10] sm:$0xff]
      %v1000 = vld [vmem:[%s334 + $0x18] sm:$0xff]
      %v1001 = vld [vmem:[%s334 + $0x20] sm:$0xff]
      %v1002 = vld [vmem:[%s334 + $0x28] sm:$0xff]
      %v1003 = vld [vmem:[%s334 + $0x30] sm:$0xff]
      %v1004 = vld [vmem:[%s334 + $0x38] sm:$0xff]
      %v1005 = vld [vmem:[%s334 + $0x40] sm:$0xff]
      %v1006 = vld [vmem:[%s334 + $0x48] sm:$0xff]
      %v1007 = vld [vmem:[%s334 + $0x50] sm:$0xff]
      %v1008 = vld [vmem:[%s334 + $0x58] sm:$0xff]
      %v1009 = vld [vmem:[%s334 + $0x60] sm:$0xff]
      %v1010 = vld [vmem:[%s334 + $0x68] sm:$0xff]
      %v1011 = vld [vmem:[%s334 + $0x70] sm:$0xff]
      %v1012 = vld [vmem:[%s334 + $0x78] sm:$0xff]
      %v1013 = vld [vmem:[%s334 + $0x80] sm:$0xff]
      %v1014 = vld [vmem:[%s334 + $0x88] sm:$0xff]
      %v1015 = vld [vmem:[%s334 + $0x90] sm:$0xff]
      %v1016 = vld [vmem:[%s334 + $0x98] sm:$0xff]
      %v1017 = vld [vmem:[%s334 + $0xa0] sm:$0xff]
      %v1018 = vld [vmem:[%s334 + $0xa8] sm:$0xff]
      %v1019 = vld [vmem:[%s334 + $0xb0] sm:$0xff]
      %v1020 = vld [vmem:[%s334 + $0xb8] sm:$0xff]
      %v1021 = vld [vmem:[%s334 + $0xc0] sm:$0xff]
      %v1022 = vld [vmem:[%s334 + $0xc8] sm:$0xff]
      %v1023 = vld [vmem:[%s334 + $0xd0] sm:$0xff]
      %v1024 = vld [vmem:[%s334 + $0xd8] sm:$0xff]
      %v1025 = vld [vmem:[%s334 + $0xe0] sm:$0xff]
      %v1026 = vld [vmem:[%s334 + $0xe8] sm:$0xff]
      %v1027 = vld [vmem:[%s334 + $0xf0] sm:$0xff]
      %v1028 = vld [vmem:[%s334 + $0xf8] sm:$0xff]
      %v1029 = vld [vmem:[%s4] sm:$0x1]
      %v1030 = vld [vmem:[%s4 + $0x1] sm:$0x1]
      %v1031 = vld [vmem:[%s4 + $0x2] sm:$0x1]
      %v1032 = vlaneseq
      %v1033 = vshrl.u32 %v1032, 7
      %v1034 = vsub.s32 0, %v1033
      %v1035 = vrot.slane %v1029, %v1034
      %v1036 = vmul.f32 %v1035, %v997
      %v1037 = vmul.f32 %v1035, %v998
      %v1038 = vmul.f32 %v1035, %v999
      %v1039 = vmul.f32 %v1035, %v1000
      %v1040 = vmul.f32 %v1035, %v1001
      %v1041 = vmul.f32 %v1035, %v1002
      %v1042 = vmul.f32 %v1035, %v1003
      %v1043 = vmul.f32 %v1035, %v1004
      %v1044 = vmul.f32 %v1035, %v1005
      %v1045 = vmul.f32 %v1035, %v1006
      %v1046 = vmul.f32 %v1035, %v1007
      %v1047 = vmul.f32 %v1035, %v1008
      %v1048 = vmul.f32 %v1035, %v1009
      %v1049 = vmul.f32 %v1035, %v1010
      %v1050 = vmul.f32 %v1035, %v1011
      %v1051 = vmul.f32 %v1035, %v1012
      %v1052 = vmul.f32 %v1035, %v1013
      %v1053 = vmul.f32 %v1035, %v1014
      %v1054 = vmul.f32 %v1035, %v1015
      %v1055 = vmul.f32 %v1035, %v1016
      %v1056 = vmul.f32 %v1035, %v1017
      %v1057 = vmul.f32 %v1035, %v1018
      %v1058 = vmul.f32 %v1035, %v1019
      %v1059 = vmul.f32 %v1035, %v1020
      %v1060 = vmul.f32 %v1035, %v1021
      %v1061 = vmul.f32 %v1035, %v1022
      %v1062 = vmul.f32 %v1035, %v1023
      %v1063 = vmul.f32 %v1035, %v1024
      %v1064 = vmul.f32 %v1035, %v1025
      %v1065 = vmul.f32 %v1035, %v1026
      %v1066 = vmul.f32 %v1035, %v1027
      %v1067 = vmul.f32 %v1035, %v1028
      %v1068 = vadd.f32 %v839, %v1036
      %v1069 = vadd.f32 %v844, %v1037
      %v1070 = vadd.f32 %v849, %v1038
      %v1071 = vadd.f32 %v854, %v1039
      %v1072 = vadd.f32 %v859, %v1040
      %v1073 = vadd.f32 %v864, %v1041
      %v1074 = vadd.f32 %v869, %v1042
      %v1075 = vadd.f32 %v874, %v1043
      %v1076 = vadd.f32 %v879, %v1044
      %v1077 = vadd.f32 %v884, %v1045
      %v1078 = vadd.f32 %v889, %v1046
      %v1079 = vadd.f32 %v894, %v1047
      %v1080 = vadd.f32 %v899, %v1048
      %v1081 = vadd.f32 %v904, %v1049
      %v1082 = vadd.f32 %v909, %v1050
      %v1083 = vadd.f32 %v914, %v1051
      %v1084 = vadd.f32 %v919, %v1052
      %v1085 = vadd.f32 %v924, %v1053
      %v1086 = vadd.f32 %v929, %v1054
      %v1087 = vadd.f32 %v934, %v1055
      %v1088 = vadd.f32 %v939, %v1056
      %v1089 = vadd.f32 %v944, %v1057
      %v1090 = vadd.f32 %v949, %v1058
      %v1091 = vadd.f32 %v954, %v1059
      %v1092 = vadd.f32 %v959, %v1060
      %v1093 = vadd.f32 %v964, %v1061
      %v1094 = vadd.f32 %v969, %v1062
      %v1095 = vadd.f32 %v974, %v1063
      %v1096 = vadd.f32 %v979, %v1064
      %v1097 = vadd.f32 %v984, %v1065
      %v1098 = vadd.f32 %v989, %v1066
      %v1099 = vadd.f32 %v994, %v1067
      %v1100 = vmul.f32 %v1068, 0.5
      %v1101 = vmul.f32 %v1069, 0.5
      %v1102 = vmul.f32 %v1070, 0.5
      %v1103 = vmul.f32 %v1071, 0.5
      %v1104 = vmul.f32 %v1072, 0.5
      %v1105 = vmul.f32 %v1073, 0.5
      %v1106 = vmul.f32 %v1074, 0.5
      %v1107 = vmul.f32 %v1075, 0.5
      %v1108 = vmul.f32 %v1076, 0.5
      %v1109 = vmul.f32 %v1077, 0.5
      %v1110 = vmul.f32 %v1078, 0.5
      %v1111 = vmul.f32 %v1079, 0.5
      %v1112 = vmul.f32 %v1080, 0.5
      %v1113 = vmul.f32 %v1081, 0.5
      %v1114 = vmul.f32 %v1082, 0.5
      %v1115 = vmul.f32 %v1083, 0.5
      %v1116 = vmul.f32 %v1084, 0.5
      %v1117 = vmul.f32 %v1085, 0.5
      %v1118 = vmul.f32 %v1086, 0.5
      %v1119 = vmul.f32 %v1087, 0.5
      %v1120 = vmul.f32 %v1088, 0.5
      %v1121 = vmul.f32 %v1089, 0.5
      %v1122 = vmul.f32 %v1090, 0.5
      %v1123 = vmul.f32 %v1091, 0.5
      %v1124 = vmul.f32 %v1092, 0.5
      %v1125 = vmul.f32 %v1093, 0.5
      %v1126 = vmul.f32 %v1094, 0.5
      %v1127 = vmul.f32 %v1095, 0.5
      %v1128 = vmul.f32 %v1096, 0.5
      %v1129 = vmul.f32 %v1097, 0.5
      %v1130 = vmul.f32 %v1098, 0.5
      %v1131 = vmul.f32 %v1099, 0.5
      %v1132 = vtanh.pop %v1100
      %v1133 = vtanh.pop %v1101
      %v1134 = vtanh.pop %v1102
      %v1135 = vtanh.pop %v1103
      %v1136 = vtanh.pop %v1104
      %v1137 = vtanh.pop %v1105
      %v1138 = vtanh.pop %v1106
      %v1139 = vtanh.pop %v1107
      %v1140 = vtanh.pop %v1108
      %v1141 = vtanh.pop %v1109
      %v1142 = vtanh.pop %v1110
      %v1143 = vtanh.pop %v1111
      %v1144 = vtanh.pop %v1112
      %v1145 = vtanh.pop %v1113
      %v1146 = vtanh.pop %v1114
      %v1147 = vtanh.pop %v1115
      %v1148 = vtanh.pop %v1116
      %v1149 = vtanh.pop %v1117
      %v1150 = vtanh.pop %v1118
      %v1151 = vtanh.pop %v1119
      %v1152 = vtanh.pop %v1120
      %v1153 = vtanh.pop %v1121
      %v1154 = vtanh.pop %v1122
      %v1155 = vtanh.pop %v1123
      %v1156 = vtanh.pop %v1124
      %v1157 = vtanh.pop %v1125
      %v1158 = vtanh.pop %v1126
      %v1159 = vtanh.pop %v1127
      %v1160 = vtanh.pop %v1128
      %v1161 = vtanh.pop %v1129
      %v1162 = vtanh.pop %v1130
      %v1163 = vtanh.pop %v1131
      %v1164 = vmul.f32 %v1132, 0.5
      %v1165 = vmul.f32 %v1133, 0.5
      %v1166 = vmul.f32 %v1134, 0.5
      %v1167 = vmul.f32 %v1135, 0.5
      %v1168 = vmul.f32 %v1136, 0.5
      %v1169 = vmul.f32 %v1137, 0.5
      %v1170 = vmul.f32 %v1138, 0.5
      %v1171 = vmul.f32 %v1139, 0.5
      %v1172 = vmul.f32 %v1140, 0.5
      %v1173 = vmul.f32 %v1141, 0.5
      %v1174 = vmul.f32 %v1142, 0.5
      %v1175 = vmul.f32 %v1143, 0.5
      %v1176 = vmul.f32 %v1144, 0.5
      %v1177 = vmul.f32 %v1145, 0.5
      %v1178 = vmul.f32 %v1146, 0.5
      %v1179 = vmul.f32 %v1147, 0.5
      %v1180 = vmul.f32 %v1148, 0.5
      %v1181 = vmul.f32 %v1149, 0.5
      %v1182 = vmul.f32 %v1150, 0.5
      %v1183 = vmul.f32 %v1151, 0.5
      %v1184 = vmul.f32 %v1152, 0.5
      %v1185 = vmul.f32 %v1153, 0.5
      %v1186 = vmul.f32 %v1154, 0.5
      %v1187 = vmul.f32 %v1155, 0.5
      %v1188 = vmul.f32 %v1156, 0.5
      %v1189 = vmul.f32 %v1157, 0.5
      %v1190 = vmul.f32 %v1158, 0.5
      %v1191 = vmul.f32 %v1159, 0.5
      %v1192 = vmul.f32 %v1160, 0.5
      %v1193 = vmul.f32 %v1161, 0.5
      %v1194 = vmul.f32 %v1162, 0.5
      %v1195 = vmul.f32 %v1163, 0.5
      %v1196 = vadd.f32 %v1164, 0.5
      %v1197 = vadd.f32 %v1165, 0.5
      %v1198 = vadd.f32 %v1166, 0.5
      %v1199 = vadd.f32 %v1167, 0.5
      %v1200 = vadd.f32 %v1168, 0.5
      %v1201 = vadd.f32 %v1169, 0.5
      %v1202 = vadd.f32 %v1170, 0.5
      %v1203 = vadd.f32 %v1171, 0.5
      %v1204 = vadd.f32 %v1172, 0.5
      %v1205 = vadd.f32 %v1173, 0.5
      %v1206 = vadd.f32 %v1174, 0.5
      %v1207 = vadd.f32 %v1175, 0.5
      %v1208 = vadd.f32 %v1176, 0.5
      %v1209 = vadd.f32 %v1177, 0.5
      %v1210 = vadd.f32 %v1178, 0.5
      %v1211 = vadd.f32 %v1179, 0.5
      %v1212 = vadd.f32 %v1180, 0.5
      %v1213 = vadd.f32 %v1181, 0.5
      %v1214 = vadd.f32 %v1182, 0.5
      %v1215 = vadd.f32 %v1183, 0.5
      %v1216 = vadd.f32 %v1184, 0.5
      %v1217 = vadd.f32 %v1185, 0.5
      %v1218 = vadd.f32 %v1186, 0.5
      %v1219 = vadd.f32 %v1187, 0.5
      %v1220 = vadd.f32 %v1188, 0.5
      %v1221 = vadd.f32 %v1189, 0.5
      %v1222 = vadd.f32 %v1190, 0.5
      %v1223 = vadd.f32 %v1191, 0.5
      %v1224 = vadd.f32 %v1192, 0.5
      %v1225 = vadd.f32 %v1193, 0.5
      %v1226 = vadd.f32 %v1194, 0.5
      %v1227 = vadd.f32 %v1195, 0.5
      %v1228 = vlaneseq
      %v1229 = vshrl.u32 %v1228, 7
      %v1230 = vsub.s32 0, %v1229
      %v1231 = vrot.slane %v1030, %v1230
      %v1232 = vmul.f32 %v1231, %v997
      %v1233 = vmul.f32 %v1231, %v998
      %v1234 = vmul.f32 %v1231, %v999
      %v1235 = vmul.f32 %v1231, %v1000
      %v1236 = vmul.f32 %v1231, %v1001
      %v1237 = vmul.f32 %v1231, %v1002
      %v1238 = vmul.f32 %v1231, %v1003
      %v1239 = vmul.f32 %v1231, %v1004
      %v1240 = vmul.f32 %v1231, %v1005
      %v1241 = vmul.f32 %v1231, %v1006
      %v1242 = vmul.f32 %v1231, %v1007
      %v1243 = vmul.f32 %v1231, %v1008
      %v1244 = vmul.f32 %v1231, %v1009
      %v1245 = vmul.f32 %v1231, %v1010
      %v1246 = vmul.f32 %v1231, %v1011
      %v1247 = vmul.f32 %v1231, %v1012
      %v1248 = vmul.f32 %v1231, %v1013
      %v1249 = vmul.f32 %v1231, %v1014
      %v1250 = vmul.f32 %v1231, %v1015
      %v1251 = vmul.f32 %v1231, %v1016
      %v1252 = vmul.f32 %v1231, %v1017
      %v1253 = vmul.f32 %v1231, %v1018
      %v1254 = vmul.f32 %v1231, %v1019
      %v1255 = vmul.f32 %v1231, %v1020
      %v1256 = vmul.f32 %v1231, %v1021
      %v1257 = vmul.f32 %v1231, %v1022
      %v1258 = vmul.f32 %v1231, %v1023
      %v1259 = vmul.f32 %v1231, %v1024
      %v1260 = vmul.f32 %v1231, %v1025
      %v1261 = vmul.f32 %v1231, %v1026
      %v1262 = vmul.f32 %v1231, %v1027
      %v1263 = vmul.f32 %v1231, %v1028
      %1296 = vrot.lane.b32.xlu0 %v1232, 32
      %v1297 = vpop.permute.xlu0 %1296
      %1298 = vrot.lane.b32.xlu0 %v1233, 32
      %v1299 = vpop.permute.xlu0 %1298
      %1300 = vrot.lane.b32.xlu0 %v1234, 32
      %v1301 = vpop.permute.xlu0 %1300
      %1302 = vrot.lane.b32.xlu0 %v1235, 32
      %v1303 = vpop.permute.xlu0 %1302
      %1304 = vrot.lane.b32.xlu0 %v1236, 32
      %v1305 = vpop.permute.xlu0 %1304
      %1306 = vrot.lane.b32.xlu0 %v1237, 32
      %v1307 = vpop.permute.xlu0 %1306
      %1308 = vrot.lane.b32.xlu0 %v1238, 32
      %v1309 = vpop.permute.xlu0 %1308
      %1310 = vrot.lane.b32.xlu0 %v1239, 32
      %v1311 = vpop.permute.xlu0 %1310
      %1312 = vrot.lane.b32.xlu0 %v1240, 32
      %v1313 = vpop.permute.xlu0 %1312
      %1314 = vrot.lane.b32.xlu0 %v1241, 32
      %v1315 = vpop.permute.xlu0 %1314
      %1316 = vrot.lane.b32.xlu0 %v1242, 32
      %v1317 = vpop.permute.xlu0 %1316
      %1318 = vrot.lane.b32.xlu0 %v1243, 32
      %v1319 = vpop.permute.xlu0 %1318
      %1320 = vrot.lane.b32.xlu0 %v1244, 32
      %v1321 = vpop.permute.xlu0 %1320
      %1322 = vrot.lane.b32.xlu0 %v1245, 32
      %v1323 = vpop.permute.xlu0 %1322
      %1324 = vrot.lane.b32.xlu0 %v1246, 32
      %v1325 = vpop.permute.xlu0 %1324
      %1326 = vrot.lane.b32.xlu0 %v1247, 32
      %v1327 = vpop.permute.xlu0 %1326
      %1328 = vrot.lane.b32.xlu0 %v1248, 32
      %v1329 = vpop.permute.xlu0 %1328
      %1330 = vrot.lane.b32.xlu0 %v1249, 32
      %v1331 = vpop.permute.xlu0 %1330
      %1332 = vrot.lane.b32.xlu0 %v1250, 32
      %v1333 = vpop.permute.xlu0 %1332
      %1334 = vrot.lane.b32.xlu0 %v1251, 32
      %v1335 = vpop.permute.xlu0 %1334
      %1336 = vrot.lane.b32.xlu0 %v1252, 32
      %v1337 = vpop.permute.xlu0 %1336
      %1338 = vrot.lane.b32.xlu0 %v1253, 32
      %v1339 = vpop.permute.xlu0 %1338
      %1340 = vrot.lane.b32.xlu0 %v1254, 32
      %v1341 = vpop.permute.xlu0 %1340
      %1342 = vrot.lane.b32.xlu0 %v1255, 32
      %v1343 = vpop.permute.xlu0 %1342
      %1344 = vrot.lane.b32.xlu0 %v1256, 32
      %v1345 = vpop.permute.xlu0 %1344
      %1346 = vrot.lane.b32.xlu0 %v1257, 32
      %v1347 = vpop.permute.xlu0 %1346
      %1348 = vrot.lane.b32.xlu0 %v1258, 32
      %v1349 = vpop.permute.xlu0 %1348
      %1350 = vrot.lane.b32.xlu0 %v1259, 32
      %v1351 = vpop.permute.xlu0 %1350
      %1352 = vrot.lane.b32.xlu0 %v1260, 32
      %v1353 = vpop.permute.xlu0 %1352
      %1354 = vrot.lane.b32.xlu0 %v1261, 32
      %v1355 = vpop.permute.xlu0 %1354
      %1356 = vrot.lane.b32.xlu0 %v1262, 32
      %v1357 = vpop.permute.xlu0 %1356
      %1358 = vrot.lane.b32.xlu0 %v1263, 32
      %v1359 = vpop.permute.xlu0 %1358
      %v1392 = vadd.f32 %v839, %v1297
      %v1393 = vadd.f32 %v844, %v1299
      %v1394 = vadd.f32 %v849, %v1301
      %v1395 = vadd.f32 %v854, %v1303
      %v1396 = vadd.f32 %v859, %v1305
      %v1397 = vadd.f32 %v864, %v1307
      %v1398 = vadd.f32 %v869, %v1309
      %v1399 = vadd.f32 %v874, %v1311
      %v1400 = vadd.f32 %v879, %v1313
      %v1401 = vadd.f32 %v884, %v1315
      %v1402 = vadd.f32 %v889, %v1317
      %v1403 = vadd.f32 %v894, %v1319
      %v1404 = vadd.f32 %v899, %v1321
      %v1405 = vadd.f32 %v904, %v1323
      %v1406 = vadd.f32 %v909, %v1325
      %v1407 = vadd.f32 %v914, %v1327
      %v1408 = vadd.f32 %v919, %v1329
      %v1409 = vadd.f32 %v924, %v1331
      %v1410 = vadd.f32 %v929, %v1333
      %v1411 = vadd.f32 %v934, %v1335
      %v1412 = vadd.f32 %v939, %v1337
      %v1413 = vadd.f32 %v944, %v1339
      %v1414 = vadd.f32 %v949, %v1341
      %v1415 = vadd.f32 %v954, %v1343
      %v1416 = vadd.f32 %v959, %v1345
      %v1417 = vadd.f32 %v964, %v1347
      %v1418 = vadd.f32 %v969, %v1349
      %v1419 = vadd.f32 %v974, %v1351
      %v1420 = vadd.f32 %v979, %v1353
      %v1421 = vadd.f32 %v984, %v1355
      %v1422 = vadd.f32 %v989, %v1357
      %v1423 = vadd.f32 %v994, %v1359
      %v1424 = vmul.f32 %v1392, 0.5
      %v1425 = vmul.f32 %v1393, 0.5
      %v1426 = vmul.f32 %v1394, 0.5
      %v1427 = vmul.f32 %v1395, 0.5
      %v1428 = vmul.f32 %v1396, 0.5
      %v1429 = vmul.f32 %v1397, 0.5
      %v1430 = vmul.f32 %v1398, 0.5
      %v1431 = vmul.f32 %v1399, 0.5
      %v1432 = vmul.f32 %v1400, 0.5
      %v1433 = vmul.f32 %v1401, 0.5
      %v1434 = vmul.f32 %v1402, 0.5
      %v1435 = vmul.f32 %v1403, 0.5
      %v1436 = vmul.f32 %v1404, 0.5
      %v1437 = vmul.f32 %v1405, 0.5
      %v1438 = vmul.f32 %v1406, 0.5
      %v1439 = vmul.f32 %v1407, 0.5
      %v1440 = vmul.f32 %v1408, 0.5
      %v1441 = vmul.f32 %v1409, 0.5
      %v1442 = vmul.f32 %v1410, 0.5
      %v1443 = vmul.f32 %v1411, 0.5
      %v1444 = vmul.f32 %v1412, 0.5
      %v1445 = vmul.f32 %v1413, 0.5
      %v1446 = vmul.f32 %v1414, 0.5
      %v1447 = vmul.f32 %v1415, 0.5
      %v1448 = vmul.f32 %v1416, 0.5
      %v1449 = vmul.f32 %v1417, 0.5
      %v1450 = vmul.f32 %v1418, 0.5
      %v1451 = vmul.f32 %v1419, 0.5
      %v1452 = vmul.f32 %v1420, 0.5
      %v1453 = vmul.f32 %v1421, 0.5
      %v1454 = vmul.f32 %v1422, 0.5
      %v1455 = vmul.f32 %v1423, 0.5
      %v1456 = vtanh.pop %v1424
      %v1457 = vtanh.pop %v1425
      %v1458 = vtanh.pop %v1426
      %v1459 = vtanh.pop %v1427
      %v1460 = vtanh.pop %v1428
      %v1461 = vtanh.pop %v1429
      %v1462 = vtanh.pop %v1430
      %v1463 = vtanh.pop %v1431
      %v1464 = vtanh.pop %v1432
      %v1465 = vtanh.pop %v1433
      %v1466 = vtanh.pop %v1434
      %v1467 = vtanh.pop %v1435
      %v1468 = vtanh.pop %v1436
      %v1469 = vtanh.pop %v1437
      %v1470 = vtanh.pop %v1438
      %v1471 = vtanh.pop %v1439
      %v1472 = vtanh.pop %v1440
      %v1473 = vtanh.pop %v1441
      %v1474 = vtanh.pop %v1442
      %v1475 = vtanh.pop %v1443
      %v1476 = vtanh.pop %v1444
      %v1477 = vtanh.pop %v1445
      %v1478 = vtanh.pop %v1446
      %v1479 = vtanh.pop %v1447
      %v1480 = vtanh.pop %v1448
      %v1481 = vtanh.pop %v1449
      %v1482 = vtanh.pop %v1450
      %v1483 = vtanh.pop %v1451
      %v1484 = vtanh.pop %v1452
      %v1485 = vtanh.pop %v1453
      %v1486 = vtanh.pop %v1454
      %v1487 = vtanh.pop %v1455
      %v1488 = vmul.f32 %v1456, 0.5
      %v1489 = vmul.f32 %v1457, 0.5
      %v1490 = vmul.f32 %v1458, 0.5
      %v1491 = vmul.f32 %v1459, 0.5
      %v1492 = vmul.f32 %v1460, 0.5
      %v1493 = vmul.f32 %v1461, 0.5
      %v1494 = vmul.f32 %v1462, 0.5
      %v1495 = vmul.f32 %v1463, 0.5
      %v1496 = vmul.f32 %v1464, 0.5
      %v1497 = vmul.f32 %v1465, 0.5
      %v1498 = vmul.f32 %v1466, 0.5
      %v1499 = vmul.f32 %v1467, 0.5
      %v1500 = vmul.f32 %v1468, 0.5
      %v1501 = vmul.f32 %v1469, 0.5
      %v1502 = vmul.f32 %v1470, 0.5
      %v1503 = vmul.f32 %v1471, 0.5
      %v1504 = vmul.f32 %v1472, 0.5
      %v1505 = vmul.f32 %v1473, 0.5
      %v1506 = vmul.f32 %v1474, 0.5
      %v1507 = vmul.f32 %v1475, 0.5
      %v1508 = vmul.f32 %v1476, 0.5
      %v1509 = vmul.f32 %v1477, 0.5
      %v1510 = vmul.f32 %v1478, 0.5
      %v1511 = vmul.f32 %v1479, 0.5
      %v1512 = vmul.f32 %v1480, 0.5
      %v1513 = vmul.f32 %v1481, 0.5
      %v1514 = vmul.f32 %v1482, 0.5
      %v1515 = vmul.f32 %v1483, 0.5
      %v1516 = vmul.f32 %v1484, 0.5
      %v1517 = vmul.f32 %v1485, 0.5
      %v1518 = vmul.f32 %v1486, 0.5
      %v1519 = vmul.f32 %v1487, 0.5
      %v1520 = vadd.f32 %v1488, 0.5
      %v1521 = vadd.f32 %v1489, 0.5
      %v1522 = vadd.f32 %v1490, 0.5
      %v1523 = vadd.f32 %v1491, 0.5
      %v1524 = vadd.f32 %v1492, 0.5
      %v1525 = vadd.f32 %v1493, 0.5
      %v1526 = vadd.f32 %v1494, 0.5
      %v1527 = vadd.f32 %v1495, 0.5
      %v1528 = vadd.f32 %v1496, 0.5
      %v1529 = vadd.f32 %v1497, 0.5
      %v1530 = vadd.f32 %v1498, 0.5
      %v1531 = vadd.f32 %v1499, 0.5
      %v1532 = vadd.f32 %v1500, 0.5
      %v1533 = vadd.f32 %v1501, 0.5
      %v1534 = vadd.f32 %v1502, 0.5
      %v1535 = vadd.f32 %v1503, 0.5
      %v1536 = vadd.f32 %v1504, 0.5
      %v1537 = vadd.f32 %v1505, 0.5
      %v1538 = vadd.f32 %v1506, 0.5
      %v1539 = vadd.f32 %v1507, 0.5
      %v1540 = vadd.f32 %v1508, 0.5
      %v1541 = vadd.f32 %v1509, 0.5
      %v1542 = vadd.f32 %v1510, 0.5
      %v1543 = vadd.f32 %v1511, 0.5
      %v1544 = vadd.f32 %v1512, 0.5
      %v1545 = vadd.f32 %v1513, 0.5
      %v1546 = vadd.f32 %v1514, 0.5
      %v1547 = vadd.f32 %v1515, 0.5
      %v1548 = vadd.f32 %v1516, 0.5
      %v1549 = vadd.f32 %v1517, 0.5
      %v1550 = vadd.f32 %v1518, 0.5
      %v1551 = vadd.f32 %v1519, 0.5
      %v1552 = vtanh.pop %v839
      %v1553 = vtanh.pop %v844
      %v1554 = vtanh.pop %v849
      %v1555 = vtanh.pop %v854
      %v1556 = vtanh.pop %v859
      %v1557 = vtanh.pop %v864
      %v1558 = vtanh.pop %v869
      %v1559 = vtanh.pop %v874
      %v1560 = vtanh.pop %v879
      %v1561 = vtanh.pop %v884
      %v1562 = vtanh.pop %v889
      %v1563 = vtanh.pop %v894
      %v1564 = vtanh.pop %v899
      %v1565 = vtanh.pop %v904
      %v1566 = vtanh.pop %v909
      %v1567 = vtanh.pop %v914
      %v1568 = vtanh.pop %v919
      %v1569 = vtanh.pop %v924
      %v1570 = vtanh.pop %v929
      %v1571 = vtanh.pop %v934
      %v1572 = vtanh.pop %v939
      %v1573 = vtanh.pop %v944
      %v1574 = vtanh.pop %v949
      %v1575 = vtanh.pop %v954
      %v1576 = vtanh.pop %v959
      %v1577 = vtanh.pop %v964
      %v1578 = vtanh.pop %v969
      %v1579 = vtanh.pop %v974
      %v1580 = vtanh.pop %v979
      %v1581 = vtanh.pop %v984
      %v1582 = vtanh.pop %v989
      %v1583 = vtanh.pop %v994
      %1616 = vrot.lane.b32.xlu0 %v997, 32
      %v1617 = vpop.permute.xlu0 %1616
      %1618 = vrot.lane.b32.xlu0 %v998, 32
      %v1619 = vpop.permute.xlu0 %1618
      %1620 = vrot.lane.b32.xlu0 %v999, 32
      %v1621 = vpop.permute.xlu0 %1620
      %1622 = vrot.lane.b32.xlu0 %v1000, 32
      %v1623 = vpop.permute.xlu0 %1622
      %1624 = vrot.lane.b32.xlu0 %v1001, 32
      %v1625 = vpop.permute.xlu0 %1624
      %1626 = vrot.lane.b32.xlu0 %v1002, 32
      %v1627 = vpop.permute.xlu0 %1626
      %1628 = vrot.lane.b32.xlu0 %v1003, 32
      %v1629 = vpop.permute.xlu0 %1628
      %1630 = vrot.lane.b32.xlu0 %v1004, 32
      %v1631 = vpop.permute.xlu0 %1630
      %1632 = vrot.lane.b32.xlu0 %v1005, 32
      %v1633 = vpop.permute.xlu0 %1632
      %1634 = vrot.lane.b32.xlu0 %v1006, 32
      %v1635 = vpop.permute.xlu0 %1634
      %1636 = vrot.lane.b32.xlu0 %v1007, 32
      %v1637 = vpop.permute.xlu0 %1636
      %1638 = vrot.lane.b32.xlu0 %v1008, 32
      %v1639 = vpop.permute.xlu0 %1638
      %1640 = vrot.lane.b32.xlu0 %v1009, 32
      %v1641 = vpop.permute.xlu0 %1640
      %1642 = vrot.lane.b32.xlu0 %v1010, 32
      %v1643 = vpop.permute.xlu0 %1642
      %1644 = vrot.lane.b32.xlu0 %v1011, 32
      %v1645 = vpop.permute.xlu0 %1644
      %1646 = vrot.lane.b32.xlu0 %v1012, 32
      %v1647 = vpop.permute.xlu0 %1646
      %1648 = vrot.lane.b32.xlu0 %v1013, 32
      %v1649 = vpop.permute.xlu0 %1648
      %1650 = vrot.lane.b32.xlu0 %v1014, 32
      %v1651 = vpop.permute.xlu0 %1650
      %1652 = vrot.lane.b32.xlu0 %v1015, 32
      %v1653 = vpop.permute.xlu0 %1652
      %1654 = vrot.lane.b32.xlu0 %v1016, 32
      %v1655 = vpop.permute.xlu0 %1654
      %1656 = vrot.lane.b32.xlu0 %v1017, 32
      %v1657 = vpop.permute.xlu0 %1656
      %1658 = vrot.lane.b32.xlu0 %v1018, 32
      %v1659 = vpop.permute.xlu0 %1658
      %1660 = vrot.lane.b32.xlu0 %v1019, 32
      %v1661 = vpop.permute.xlu0 %1660
      %1662 = vrot.lane.b32.xlu0 %v1020, 32
      %v1663 = vpop.permute.xlu0 %1662
      %1664 = vrot.lane.b32.xlu0 %v1021, 32
      %v1665 = vpop.permute.xlu0 %1664
      %1666 = vrot.lane.b32.xlu0 %v1022, 32
      %v1667 = vpop.permute.xlu0 %1666
      %1668 = vrot.lane.b32.xlu0 %v1023, 32
      %v1669 = vpop.permute.xlu0 %1668
      %1670 = vrot.lane.b32.xlu0 %v1024, 32
      %v1671 = vpop.permute.xlu0 %1670
      %1672 = vrot.lane.b32.xlu0 %v1025, 32
      %v1673 = vpop.permute.xlu0 %1672
      %1674 = vrot.lane.b32.xlu0 %v1026, 32
      %v1675 = vpop.permute.xlu0 %1674
      %1676 = vrot.lane.b32.xlu0 %v1027, 32
      %v1677 = vpop.permute.xlu0 %1676
      %1678 = vrot.lane.b32.xlu0 %v1028, 32
      %v1679 = vpop.permute.xlu0 %1678
      %v1712 = vmul.f32 %v1520, %v1617
      %v1713 = vmul.f32 %v1521, %v1619
      %v1714 = vmul.f32 %v1522, %v1621
      %v1715 = vmul.f32 %v1523, %v1623
      %v1716 = vmul.f32 %v1524, %v1625
      %v1717 = vmul.f32 %v1525, %v1627
      %v1718 = vmul.f32 %v1526, %v1629
      %v1719 = vmul.f32 %v1527, %v1631
      %v1720 = vmul.f32 %v1528, %v1633
      %v1721 = vmul.f32 %v1529, %v1635
      %v1722 = vmul.f32 %v1530, %v1637
      %v1723 = vmul.f32 %v1531, %v1639
      %v1724 = vmul.f32 %v1532, %v1641
      %v1725 = vmul.f32 %v1533, %v1643
      %v1726 = vmul.f32 %v1534, %v1645
      %v1727 = vmul.f32 %v1535, %v1647
      %v1728 = vmul.f32 %v1536, %v1649
      %v1729 = vmul.f32 %v1537, %v1651
      %v1730 = vmul.f32 %v1538, %v1653
      %v1731 = vmul.f32 %v1539, %v1655
      %v1732 = vmul.f32 %v1540, %v1657
      %v1733 = vmul.f32 %v1541, %v1659
      %v1734 = vmul.f32 %v1542, %v1661
      %v1735 = vmul.f32 %v1543, %v1663
      %v1736 = vmul.f32 %v1544, %v1665
      %v1737 = vmul.f32 %v1545, %v1667
      %v1738 = vmul.f32 %v1546, %v1669
      %v1739 = vmul.f32 %v1547, %v1671
      %v1740 = vmul.f32 %v1548, %v1673
      %v1741 = vmul.f32 %v1549, %v1675
      %v1742 = vmul.f32 %v1550, %v1677
      %v1743 = vmul.f32 %v1551, %v1679
      %1776 = vrot.lane.b32.xlu0 %v1552, 64
      %v1777 = vpop.permute.xlu0 %1776
      %1778 = vrot.lane.b32.xlu0 %v1553, 64
      %v1779 = vpop.permute.xlu0 %1778
      %1780 = vrot.lane.b32.xlu0 %v1554, 64
      %v1781 = vpop.permute.xlu0 %1780
      %1782 = vrot.lane.b32.xlu0 %v1555, 64
      %v1783 = vpop.permute.xlu0 %1782
      %1784 = vrot.lane.b32.xlu0 %v1556, 64
      %v1785 = vpop.permute.xlu0 %1784
      %1786 = vrot.lane.b32.xlu0 %v1557, 64
      %v1787 = vpop.permute.xlu0 %1786
      %1788 = vrot.lane.b32.xlu0 %v1558, 64
      %v1789 = vpop.permute.xlu0 %1788
      %1790 = vrot.lane.b32.xlu0 %v1559, 64
      %v1791 = vpop.permute.xlu0 %1790
      %1792 = vrot.lane.b32.xlu0 %v1560, 64
      %v1793 = vpop.permute.xlu0 %1792
      %1794 = vrot.lane.b32.xlu0 %v1561, 64
      %v1795 = vpop.permute.xlu0 %1794
      %1796 = vrot.lane.b32.xlu0 %v1562, 64
      %v1797 = vpop.permute.xlu0 %1796
      %1798 = vrot.lane.b32.xlu0 %v1563, 64
      %v1799 = vpop.permute.xlu0 %1798
      %1800 = vrot.lane.b32.xlu0 %v1564, 64
      %v1801 = vpop.permute.xlu0 %1800
      %1802 = vrot.lane.b32.xlu0 %v1565, 64
      %v1803 = vpop.permute.xlu0 %1802
      %1804 = vrot.lane.b32.xlu0 %v1566, 64
      %v1805 = vpop.permute.xlu0 %1804
      %1806 = vrot.lane.b32.xlu0 %v1567, 64
      %v1807 = vpop.permute.xlu0 %1806
      %1808 = vrot.lane.b32.xlu0 %v1568, 64
      %v1809 = vpop.permute.xlu0 %1808
      %1810 = vrot.lane.b32.xlu0 %v1569, 64
      %v1811 = vpop.permute.xlu0 %1810
      %1812 = vrot.lane.b32.xlu0 %v1570, 64
      %v1813 = vpop.permute.xlu0 %1812
      %1814 = vrot.lane.b32.xlu0 %v1571, 64
      %v1815 = vpop.permute.xlu0 %1814
      %1816 = vrot.lane.b32.xlu0 %v1572, 64
      %v1817 = vpop.permute.xlu0 %1816
      %1818 = vrot.lane.b32.xlu0 %v1573, 64
      %v1819 = vpop.permute.xlu0 %1818
      %1820 = vrot.lane.b32.xlu0 %v1574, 64
      %v1821 = vpop.permute.xlu0 %1820
      %1822 = vrot.lane.b32.xlu0 %v1575, 64
      %v1823 = vpop.permute.xlu0 %1822
      %1824 = vrot.lane.b32.xlu0 %v1576, 64
      %v1825 = vpop.permute.xlu0 %1824
      %1826 = vrot.lane.b32.xlu0 %v1577, 64
      %v1827 = vpop.permute.xlu0 %1826
      %1828 = vrot.lane.b32.xlu0 %v1578, 64
      %v1829 = vpop.permute.xlu0 %1828
      %1830 = vrot.lane.b32.xlu0 %v1579, 64
      %v1831 = vpop.permute.xlu0 %1830
      %1832 = vrot.lane.b32.xlu0 %v1580, 64
      %v1833 = vpop.permute.xlu0 %1832
      %1834 = vrot.lane.b32.xlu0 %v1581, 64
      %v1835 = vpop.permute.xlu0 %1834
      %1836 = vrot.lane.b32.xlu0 %v1582, 64
      %v1837 = vpop.permute.xlu0 %1836
      %1838 = vrot.lane.b32.xlu0 %v1583, 64
      %v1839 = vpop.permute.xlu0 %1838
      %v1872 = vmul.f32 %v1196, %v1777
      %v1873 = vmul.f32 %v1197, %v1779
      %v1874 = vmul.f32 %v1198, %v1781
      %v1875 = vmul.f32 %v1199, %v1783
      %v1876 = vmul.f32 %v1200, %v1785
      %v1877 = vmul.f32 %v1201, %v1787
      %v1878 = vmul.f32 %v1202, %v1789
      %v1879 = vmul.f32 %v1203, %v1791
      %v1880 = vmul.f32 %v1204, %v1793
      %v1881 = vmul.f32 %v1205, %v1795
      %v1882 = vmul.f32 %v1206, %v1797
      %v1883 = vmul.f32 %v1207, %v1799
      %v1884 = vmul.f32 %v1208, %v1801
      %v1885 = vmul.f32 %v1209, %v1803
      %v1886 = vmul.f32 %v1210, %v1805
      %v1887 = vmul.f32 %v1211, %v1807
      %v1888 = vmul.f32 %v1212, %v1809
      %v1889 = vmul.f32 %v1213, %v1811
      %v1890 = vmul.f32 %v1214, %v1813
      %v1891 = vmul.f32 %v1215, %v1815
      %v1892 = vmul.f32 %v1216, %v1817
      %v1893 = vmul.f32 %v1217, %v1819
      %v1894 = vmul.f32 %v1218, %v1821
      %v1895 = vmul.f32 %v1219, %v1823
      %v1896 = vmul.f32 %v1220, %v1825
      %v1897 = vmul.f32 %v1221, %v1827
      %v1898 = vmul.f32 %v1222, %v1829
      %v1899 = vmul.f32 %v1223, %v1831
      %v1900 = vmul.f32 %v1224, %v1833
      %v1901 = vmul.f32 %v1225, %v1835
      %v1902 = vmul.f32 %v1226, %v1837
      %v1903 = vmul.f32 %v1227, %v1839
      %1936 = vrot.lane.b32.xlu0 %v1872, 32
      %v1937 = vpop.permute.xlu0 %1936
      %1938 = vrot.lane.b32.xlu0 %v1873, 32
      %v1939 = vpop.permute.xlu0 %1938
      %1940 = vrot.lane.b32.xlu0 %v1874, 32
      %v1941 = vpop.permute.xlu0 %1940
      %1942 = vrot.lane.b32.xlu0 %v1875, 32
      %v1943 = vpop.permute.xlu0 %1942
      %1944 = vrot.lane.b32.xlu0 %v1876, 32
      %v1945 = vpop.permute.xlu0 %1944
      %1946 = vrot.lane.b32.xlu0 %v1877, 32
      %v1947 = vpop.permute.xlu0 %1946
      %1948 = vrot.lane.b32.xlu0 %v1878, 32
      %v1949 = vpop.permute.xlu0 %1948
      %1950 = vrot.lane.b32.xlu0 %v1879, 32
      %v1951 = vpop.permute.xlu0 %1950
      %1952 = vrot.lane.b32.xlu0 %v1880, 32
      %v1953 = vpop.permute.xlu0 %1952
      %1954 = vrot.lane.b32.xlu0 %v1881, 32
      %v1955 = vpop.permute.xlu0 %1954
      %1956 = vrot.lane.b32.xlu0 %v1882, 32
      %v1957 = vpop.permute.xlu0 %1956
      %1958 = vrot.lane.b32.xlu0 %v1883, 32
      %v1959 = vpop.permute.xlu0 %1958
      %1960 = vrot.lane.b32.xlu0 %v1884, 32
      %v1961 = vpop.permute.xlu0 %1960
      %1962 = vrot.lane.b32.xlu0 %v1885, 32
      %v1963 = vpop.permute.xlu0 %1962
      %1964 = vrot.lane.b32.xlu0 %v1886, 32
      %v1965 = vpop.permute.xlu0 %1964
      %1966 = vrot.lane.b32.xlu0 %v1887, 32
      %v1967 = vpop.permute.xlu0 %1966
      %1968 = vrot.lane.b32.xlu0 %v1888, 32
      %v1969 = vpop.permute.xlu0 %1968
      %1970 = vrot.lane.b32.xlu0 %v1889, 32
      %v1971 = vpop.permute.xlu0 %1970
      %1972 = vrot.lane.b32.xlu0 %v1890, 32
      %v1973 = vpop.permute.xlu0 %1972
      %1974 = vrot.lane.b32.xlu0 %v1891, 32
      %v1975 = vpop.permute.xlu0 %1974
      %1976 = vrot.lane.b32.xlu0 %v1892, 32
      %v1977 = vpop.permute.xlu0 %1976
      %1978 = vrot.lane.b32.xlu0 %v1893, 32
      %v1979 = vpop.permute.xlu0 %1978
      %1980 = vrot.lane.b32.xlu0 %v1894, 32
      %v1981 = vpop.permute.xlu0 %1980
      %1982 = vrot.lane.b32.xlu0 %v1895, 32
      %v1983 = vpop.permute.xlu0 %1982
      %1984 = vrot.lane.b32.xlu0 %v1896, 32
      %v1985 = vpop.permute.xlu0 %1984
      %1986 = vrot.lane.b32.xlu0 %v1897, 32
      %v1987 = vpop.permute.xlu0 %1986
      %1988 = vrot.lane.b32.xlu0 %v1898, 32
      %v1989 = vpop.permute.xlu0 %1988
      %1990 = vrot.lane.b32.xlu0 %v1899, 32
      %v1991 = vpop.permute.xlu0 %1990
      %1992 = vrot.lane.b32.xlu0 %v1900, 32
      %v1993 = vpop.permute.xlu0 %1992
      %1994 = vrot.lane.b32.xlu0 %v1901, 32
      %v1995 = vpop.permute.xlu0 %1994
      %1996 = vrot.lane.b32.xlu0 %v1902, 32
      %v1997 = vpop.permute.xlu0 %1996
      %1998 = vrot.lane.b32.xlu0 %v1903, 32
      %v1999 = vpop.permute.xlu0 %1998
      %v2032 = vadd.f32 %v1712, %v1937
      %v2033 = vadd.f32 %v1713, %v1939
      %v2034 = vadd.f32 %v1714, %v1941
      %v2035 = vadd.f32 %v1715, %v1943
      %v2036 = vadd.f32 %v1716, %v1945
      %v2037 = vadd.f32 %v1717, %v1947
      %v2038 = vadd.f32 %v1718, %v1949
      %v2039 = vadd.f32 %v1719, %v1951
      %v2040 = vadd.f32 %v1720, %v1953
      %v2041 = vadd.f32 %v1721, %v1955
      %v2042 = vadd.f32 %v1722, %v1957
      %v2043 = vadd.f32 %v1723, %v1959
      %v2044 = vadd.f32 %v1724, %v1961
      %v2045 = vadd.f32 %v1725, %v1963
      %v2046 = vadd.f32 %v1726, %v1965
      %v2047 = vadd.f32 %v1727, %v1967
      %v2048 = vadd.f32 %v1728, %v1969
      %v2049 = vadd.f32 %v1729, %v1971
      %v2050 = vadd.f32 %v1730, %v1973
      %v2051 = vadd.f32 %v1731, %v1975
      %v2052 = vadd.f32 %v1732, %v1977
      %v2053 = vadd.f32 %v1733, %v1979
      %v2054 = vadd.f32 %v1734, %v1981
      %v2055 = vadd.f32 %v1735, %v1983
      %v2056 = vadd.f32 %v1736, %v1985
      %v2057 = vadd.f32 %v1737, %v1987
      %v2058 = vadd.f32 %v1738, %v1989
      %v2059 = vadd.f32 %v1739, %v1991
      %v2060 = vadd.f32 %v1740, %v1993
      %v2061 = vadd.f32 %v1741, %v1995
      %v2062 = vadd.f32 %v1742, %v1997
      %v2063 = vadd.f32 %v1743, %v1999
      %v2064 = vlaneseq
      %v2065 = vshrl.u32 %v2064, 7
      %v2066 = vsub.s32 0, %v2065
      %v2067 = vrot.slane %v1031, %v2066
      %2100 = vrot.lane.b32.xlu0 %v2032, 96
      %v2101 = vpop.permute.xlu0 %2100
      %2102 = vrot.lane.b32.xlu0 %v2033, 96
      %v2103 = vpop.permute.xlu0 %2102
      %2104 = vrot.lane.b32.xlu0 %v2034, 96
      %v2105 = vpop.permute.xlu0 %2104
      %2106 = vrot.lane.b32.xlu0 %v2035, 96
      %v2107 = vpop.permute.xlu0 %2106
      %2108 = vrot.lane.b32.xlu0 %v2036, 96
      %v2109 = vpop.permute.xlu0 %2108
      %2110 = vrot.lane.b32.xlu0 %v2037, 96
      %v2111 = vpop.permute.xlu0 %2110
      %2112 = vrot.lane.b32.xlu0 %v2038, 96
      %v2113 = vpop.permute.xlu0 %2112
      %2114 = vrot.lane.b32.xlu0 %v2039, 96
      %v2115 = vpop.permute.xlu0 %2114
      %2116 = vrot.lane.b32.xlu0 %v2040, 96
      %v2117 = vpop.permute.xlu0 %2116
      %2118 = vrot.lane.b32.xlu0 %v2041, 96
      %v2119 = vpop.permute.xlu0 %2118
      %2120 = vrot.lane.b32.xlu0 %v2042, 96
      %v2121 = vpop.permute.xlu0 %2120
      %2122 = vrot.lane.b32.xlu0 %v2043, 96
      %v2123 = vpop.permute.xlu0 %2122
      %2124 = vrot.lane.b32.xlu0 %v2044, 96
      %v2125 = vpop.permute.xlu0 %2124
      %2126 = vrot.lane.b32.xlu0 %v2045, 96
      %v2127 = vpop.permute.xlu0 %2126
      %2128 = vrot.lane.b32.xlu0 %v2046, 96
      %v2129 = vpop.permute.xlu0 %2128
      %2130 = vrot.lane.b32.xlu0 %v2047, 96
      %v2131 = vpop.permute.xlu0 %2130
      %2132 = vrot.lane.b32.xlu0 %v2048, 96
      %v2133 = vpop.permute.xlu0 %2132
      %2134 = vrot.lane.b32.xlu0 %v2049, 96
      %v2135 = vpop.permute.xlu0 %2134
      %2136 = vrot.lane.b32.xlu0 %v2050, 96
      %v2137 = vpop.permute.xlu0 %2136
      %2138 = vrot.lane.b32.xlu0 %v2051, 96
      %v2139 = vpop.permute.xlu0 %2138
      %2140 = vrot.lane.b32.xlu0 %v2052, 96
      %v2141 = vpop.permute.xlu0 %2140
      %2142 = vrot.lane.b32.xlu0 %v2053, 96
      %v2143 = vpop.permute.xlu0 %2142
      %2144 = vrot.lane.b32.xlu0 %v2054, 96
      %v2145 = vpop.permute.xlu0 %2144
      %2146 = vrot.lane.b32.xlu0 %v2055, 96
      %v2147 = vpop.permute.xlu0 %2146
      %2148 = vrot.lane.b32.xlu0 %v2056, 96
      %v2149 = vpop.permute.xlu0 %2148
      %2150 = vrot.lane.b32.xlu0 %v2057, 96
      %v2151 = vpop.permute.xlu0 %2150
      %2152 = vrot.lane.b32.xlu0 %v2058, 96
      %v2153 = vpop.permute.xlu0 %2152
      %2154 = vrot.lane.b32.xlu0 %v2059, 96
      %v2155 = vpop.permute.xlu0 %2154
      %2156 = vrot.lane.b32.xlu0 %v2060, 96
      %v2157 = vpop.permute.xlu0 %2156
      %2158 = vrot.lane.b32.xlu0 %v2061, 96
      %v2159 = vpop.permute.xlu0 %2158
      %2160 = vrot.lane.b32.xlu0 %v2062, 96
      %v2161 = vpop.permute.xlu0 %2160
      %2162 = vrot.lane.b32.xlu0 %v2063, 96
      %v2163 = vpop.permute.xlu0 %2162
      %v2196 = vmul.f32 %v2067, %v2101
      %v2197 = vmul.f32 %v2067, %v2103
      %v2198 = vmul.f32 %v2067, %v2105
      %v2199 = vmul.f32 %v2067, %v2107
      %v2200 = vmul.f32 %v2067, %v2109
      %v2201 = vmul.f32 %v2067, %v2111
      %v2202 = vmul.f32 %v2067, %v2113
      %v2203 = vmul.f32 %v2067, %v2115
      %v2204 = vmul.f32 %v2067, %v2117
      %v2205 = vmul.f32 %v2067, %v2119
      %v2206 = vmul.f32 %v2067, %v2121
      %v2207 = vmul.f32 %v2067, %v2123
      %v2208 = vmul.f32 %v2067, %v2125
      %v2209 = vmul.f32 %v2067, %v2127
      %v2210 = vmul.f32 %v2067, %v2129
      %v2211 = vmul.f32 %v2067, %v2131
      %v2212 = vmul.f32 %v2067, %v2133
      %v2213 = vmul.f32 %v2067, %v2135
      %v2214 = vmul.f32 %v2067, %v2137
      %v2215 = vmul.f32 %v2067, %v2139
      %v2216 = vmul.f32 %v2067, %v2141
      %v2217 = vmul.f32 %v2067, %v2143
      %v2218 = vmul.f32 %v2067, %v2145
      %v2219 = vmul.f32 %v2067, %v2147
      %v2220 = vmul.f32 %v2067, %v2149
      %v2221 = vmul.f32 %v2067, %v2151
      %v2222 = vmul.f32 %v2067, %v2153
      %v2223 = vmul.f32 %v2067, %v2155
      %v2224 = vmul.f32 %v2067, %v2157
      %v2225 = vmul.f32 %v2067, %v2159
      %v2226 = vmul.f32 %v2067, %v2161
      %v2227 = vmul.f32 %v2067, %v2163
      %2260 = vrot.lane.b32.xlu0 %v2196, 96
      %v2261 = vpop.permute.xlu0 %2260
      %2262 = vrot.lane.b32.xlu0 %v2197, 96
      %v2263 = vpop.permute.xlu0 %2262
      %2264 = vrot.lane.b32.xlu0 %v2198, 96
      %v2265 = vpop.permute.xlu0 %2264
      %2266 = vrot.lane.b32.xlu0 %v2199, 96
      %v2267 = vpop.permute.xlu0 %2266
      %2268 = vrot.lane.b32.xlu0 %v2200, 96
      %v2269 = vpop.permute.xlu0 %2268
      %2270 = vrot.lane.b32.xlu0 %v2201, 96
      %v2271 = vpop.permute.xlu0 %2270
      %2272 = vrot.lane.b32.xlu0 %v2202, 96
      %v2273 = vpop.permute.xlu0 %2272
      %2274 = vrot.lane.b32.xlu0 %v2203, 96
      %v2275 = vpop.permute.xlu0 %2274
      %2276 = vrot.lane.b32.xlu0 %v2204, 96
      %v2277 = vpop.permute.xlu0 %2276
      %2278 = vrot.lane.b32.xlu0 %v2205, 96
      %v2279 = vpop.permute.xlu0 %2278
      %2280 = vrot.lane.b32.xlu0 %v2206, 96
      %v2281 = vpop.permute.xlu0 %2280
      %2282 = vrot.lane.b32.xlu0 %v2207, 96
      %v2283 = vpop.permute.xlu0 %2282
      %2284 = vrot.lane.b32.xlu0 %v2208, 96
      %v2285 = vpop.permute.xlu0 %2284
      %2286 = vrot.lane.b32.xlu0 %v2209, 96
      %v2287 = vpop.permute.xlu0 %2286
      %2288 = vrot.lane.b32.xlu0 %v2210, 96
      %v2289 = vpop.permute.xlu0 %2288
      %2290 = vrot.lane.b32.xlu0 %v2211, 96
      %v2291 = vpop.permute.xlu0 %2290
      %2292 = vrot.lane.b32.xlu0 %v2212, 96
      %v2293 = vpop.permute.xlu0 %2292
      %2294 = vrot.lane.b32.xlu0 %v2213, 96
      %v2295 = vpop.permute.xlu0 %2294
      %2296 = vrot.lane.b32.xlu0 %v2214, 96
      %v2297 = vpop.permute.xlu0 %2296
      %2298 = vrot.lane.b32.xlu0 %v2215, 96
      %v2299 = vpop.permute.xlu0 %2298
      %2300 = vrot.lane.b32.xlu0 %v2216, 96
      %v2301 = vpop.permute.xlu0 %2300
      %2302 = vrot.lane.b32.xlu0 %v2217, 96
      %v2303 = vpop.permute.xlu0 %2302
      %2304 = vrot.lane.b32.xlu0 %v2218, 96
      %v2305 = vpop.permute.xlu0 %2304
      %2306 = vrot.lane.b32.xlu0 %v2219, 96
      %v2307 = vpop.permute.xlu0 %2306
      %2308 = vrot.lane.b32.xlu0 %v2220, 96
      %v2309 = vpop.permute.xlu0 %2308
      %2310 = vrot.lane.b32.xlu0 %v2221, 96
      %v2311 = vpop.permute.xlu0 %2310
      %2312 = vrot.lane.b32.xlu0 %v2222, 96
      %v2313 = vpop.permute.xlu0 %2312
      %2314 = vrot.lane.b32.xlu0 %v2223, 96
      %v2315 = vpop.permute.xlu0 %2314
      %2316 = vrot.lane.b32.xlu0 %v2224, 96
      %v2317 = vpop.permute.xlu0 %2316
      %2318 = vrot.lane.b32.xlu0 %v2225, 96
      %v2319 = vpop.permute.xlu0 %2318
      %2320 = vrot.lane.b32.xlu0 %v2226, 96
      %v2321 = vpop.permute.xlu0 %2320
      %2322 = vrot.lane.b32.xlu0 %v2227, 96
      %v2323 = vpop.permute.xlu0 %2322
      %v2356 = vadd.f32 %v839, %v2261
      %v2357 = vadd.f32 %v844, %v2263
      %v2358 = vadd.f32 %v849, %v2265
      %v2359 = vadd.f32 %v854, %v2267
      %v2360 = vadd.f32 %v859, %v2269
      %v2361 = vadd.f32 %v864, %v2271
      %v2362 = vadd.f32 %v869, %v2273
      %v2363 = vadd.f32 %v874, %v2275
      %v2364 = vadd.f32 %v879, %v2277
      %v2365 = vadd.f32 %v884, %v2279
      %v2366 = vadd.f32 %v889, %v2281
      %v2367 = vadd.f32 %v894, %v2283
      %v2368 = vadd.f32 %v899, %v2285
      %v2369 = vadd.f32 %v904, %v2287
      %v2370 = vadd.f32 %v909, %v2289
      %v2371 = vadd.f32 %v914, %v2291
      %v2372 = vadd.f32 %v919, %v2293
      %v2373 = vadd.f32 %v924, %v2295
      %v2374 = vadd.f32 %v929, %v2297
      %v2375 = vadd.f32 %v934, %v2299
      %v2376 = vadd.f32 %v939, %v2301
      %v2377 = vadd.f32 %v944, %v2303
      %v2378 = vadd.f32 %v949, %v2305
      %v2379 = vadd.f32 %v954, %v2307
      %v2380 = vadd.f32 %v959, %v2309
      %v2381 = vadd.f32 %v964, %v2311
      %v2382 = vadd.f32 %v969, %v2313
      %v2383 = vadd.f32 %v974, %v2315
      %v2384 = vadd.f32 %v979, %v2317
      %v2385 = vadd.f32 %v984, %v2319
      %v2386 = vadd.f32 %v989, %v2321
      %v2387 = vadd.f32 %v994, %v2323
      %v2388 = vmul.f32 %v2356, 0.5
      %v2389 = vmul.f32 %v2357, 0.5
      %v2390 = vmul.f32 %v2358, 0.5
      %v2391 = vmul.f32 %v2359, 0.5
      %v2392 = vmul.f32 %v2360, 0.5
      %v2393 = vmul.f32 %v2361, 0.5
      %v2394 = vmul.f32 %v2362, 0.5
      %v2395 = vmul.f32 %v2363, 0.5
      %v2396 = vmul.f32 %v2364, 0.5
      %v2397 = vmul.f32 %v2365, 0.5
      %v2398 = vmul.f32 %v2366, 0.5
      %v2399 = vmul.f32 %v2367, 0.5
      %v2400 = vmul.f32 %v2368, 0.5
      %v2401 = vmul.f32 %v2369, 0.5
      %v2402 = vmul.f32 %v2370, 0.5
      %v2403 = vmul.f32 %v2371, 0.5
      %v2404 = vmul.f32 %v2372, 0.5
      %v2405 = vmul.f32 %v2373, 0.5
      %v2406 = vmul.f32 %v2374, 0.5
      %v2407 = vmul.f32 %v2375, 0.5
      %v2408 = vmul.f32 %v2376, 0.5
      %v2409 = vmul.f32 %v2377, 0.5
      %v2410 = vmul.f32 %v2378, 0.5
      %v2411 = vmul.f32 %v2379, 0.5
      %v2412 = vmul.f32 %v2380, 0.5
      %v2413 = vmul.f32 %v2381, 0.5
      %v2414 = vmul.f32 %v2382, 0.5
      %v2415 = vmul.f32 %v2383, 0.5
      %v2416 = vmul.f32 %v2384, 0.5
      %v2417 = vmul.f32 %v2385, 0.5
      %v2418 = vmul.f32 %v2386, 0.5
      %v2419 = vmul.f32 %v2387, 0.5
      %v2420 = vtanh.pop %v2388
      %v2421 = vtanh.pop %v2389
      %v2422 = vtanh.pop %v2390
      %v2423 = vtanh.pop %v2391
      %v2424 = vtanh.pop %v2392
      %v2425 = vtanh.pop %v2393
      %v2426 = vtanh.pop %v2394
      %v2427 = vtanh.pop %v2395
      %v2428 = vtanh.pop %v2396
      %v2429 = vtanh.pop %v2397
      %v2430 = vtanh.pop %v2398
      %v2431 = vtanh.pop %v2399
      %v2432 = vtanh.pop %v2400
      %v2433 = vtanh.pop %v2401
      %v2434 = vtanh.pop %v2402
      %v2435 = vtanh.pop %v2403
      %v2436 = vtanh.pop %v2404
      %v2437 = vtanh.pop %v2405
      %v2438 = vtanh.pop %v2406
      %v2439 = vtanh.pop %v2407
      %v2440 = vtanh.pop %v2408
      %v2441 = vtanh.pop %v2409
      %v2442 = vtanh.pop %v2410
      %v2443 = vtanh.pop %v2411
      %v2444 = vtanh.pop %v2412
      %v2445 = vtanh.pop %v2413
      %v2446 = vtanh.pop %v2414
      %v2447 = vtanh.pop %v2415
      %v2448 = vtanh.pop %v2416
      %v2449 = vtanh.pop %v2417
      %v2450 = vtanh.pop %v2418
      %v2451 = vtanh.pop %v2419
      %v2452 = vmul.f32 %v2420, 0.5
      %v2453 = vmul.f32 %v2421, 0.5
      %v2454 = vmul.f32 %v2422, 0.5
      %v2455 = vmul.f32 %v2423, 0.5
      %v2456 = vmul.f32 %v2424, 0.5
      %v2457 = vmul.f32 %v2425, 0.5
      %v2458 = vmul.f32 %v2426, 0.5
      %v2459 = vmul.f32 %v2427, 0.5
      %v2460 = vmul.f32 %v2428, 0.5
      %v2461 = vmul.f32 %v2429, 0.5
      %v2462 = vmul.f32 %v2430, 0.5
      %v2463 = vmul.f32 %v2431, 0.5
      %v2464 = vmul.f32 %v2432, 0.5
      %v2465 = vmul.f32 %v2433, 0.5
      %v2466 = vmul.f32 %v2434, 0.5
      %v2467 = vmul.f32 %v2435, 0.5
      %v2468 = vmul.f32 %v2436, 0.5
      %v2469 = vmul.f32 %v2437, 0.5
      %v2470 = vmul.f32 %v2438, 0.5
      %v2471 = vmul.f32 %v2439, 0.5
      %v2472 = vmul.f32 %v2440, 0.5
      %v2473 = vmul.f32 %v2441, 0.5
      %v2474 = vmul.f32 %v2442, 0.5
      %v2475 = vmul.f32 %v2443, 0.5
      %v2476 = vmul.f32 %v2444, 0.5
      %v2477 = vmul.f32 %v2445, 0.5
      %v2478 = vmul.f32 %v2446, 0.5
      %v2479 = vmul.f32 %v2447, 0.5
      %v2480 = vmul.f32 %v2448, 0.5
      %v2481 = vmul.f32 %v2449, 0.5
      %v2482 = vmul.f32 %v2450, 0.5
      %v2483 = vmul.f32 %v2451, 0.5
      %v2484 = vadd.f32 %v2452, 0.5
      %v2485 = vadd.f32 %v2453, 0.5
      %v2486 = vadd.f32 %v2454, 0.5
      %v2487 = vadd.f32 %v2455, 0.5
      %v2488 = vadd.f32 %v2456, 0.5
      %v2489 = vadd.f32 %v2457, 0.5
      %v2490 = vadd.f32 %v2458, 0.5
      %v2491 = vadd.f32 %v2459, 0.5
      %v2492 = vadd.f32 %v2460, 0.5
      %v2493 = vadd.f32 %v2461, 0.5
      %v2494 = vadd.f32 %v2462, 0.5
      %v2495 = vadd.f32 %v2463, 0.5
      %v2496 = vadd.f32 %v2464, 0.5
      %v2497 = vadd.f32 %v2465, 0.5
      %v2498 = vadd.f32 %v2466, 0.5
      %v2499 = vadd.f32 %v2467, 0.5
      %v2500 = vadd.f32 %v2468, 0.5
      %v2501 = vadd.f32 %v2469, 0.5
      %v2502 = vadd.f32 %v2470, 0.5
      %v2503 = vadd.f32 %v2471, 0.5
      %v2504 = vadd.f32 %v2472, 0.5
      %v2505 = vadd.f32 %v2473, 0.5
      %v2506 = vadd.f32 %v2474, 0.5
      %v2507 = vadd.f32 %v2475, 0.5
      %v2508 = vadd.f32 %v2476, 0.5
      %v2509 = vadd.f32 %v2477, 0.5
      %v2510 = vadd.f32 %v2478, 0.5
      %v2511 = vadd.f32 %v2479, 0.5
      %v2512 = vadd.f32 %v2480, 0.5
      %v2513 = vadd.f32 %v2481, 0.5
      %v2514 = vadd.f32 %v2482, 0.5
      %v2515 = vadd.f32 %v2483, 0.5
      %v2516 = vtanh.pop %v2032
      %v2517 = vtanh.pop %v2033
      %v2518 = vtanh.pop %v2034
      %v2519 = vtanh.pop %v2035
      %v2520 = vtanh.pop %v2036
      %v2521 = vtanh.pop %v2037
      %v2522 = vtanh.pop %v2038
      %v2523 = vtanh.pop %v2039
      %v2524 = vtanh.pop %v2040
      %v2525 = vtanh.pop %v2041
      %v2526 = vtanh.pop %v2042
      %v2527 = vtanh.pop %v2043
      %v2528 = vtanh.pop %v2044
      %v2529 = vtanh.pop %v2045
      %v2530 = vtanh.pop %v2046
      %v2531 = vtanh.pop %v2047
      %v2532 = vtanh.pop %v2048
      %v2533 = vtanh.pop %v2049
      %v2534 = vtanh.pop %v2050
      %v2535 = vtanh.pop %v2051
      %v2536 = vtanh.pop %v2052
      %v2537 = vtanh.pop %v2053
      %v2538 = vtanh.pop %v2054
      %v2539 = vtanh.pop %v2055
      %v2540 = vtanh.pop %v2056
      %v2541 = vtanh.pop %v2057
      %v2542 = vtanh.pop %v2058
      %v2543 = vtanh.pop %v2059
      %v2544 = vtanh.pop %v2060
      %v2545 = vtanh.pop %v2061
      %v2546 = vtanh.pop %v2062
      %v2547 = vtanh.pop %v2063
      %2580 = vrot.lane.b32.xlu0 %v2516, 64
      %v2581 = vpop.permute.xlu0 %2580
      %2582 = vrot.lane.b32.xlu0 %v2517, 64
      %v2583 = vpop.permute.xlu0 %2582
      %2584 = vrot.lane.b32.xlu0 %v2518, 64
      %v2585 = vpop.permute.xlu0 %2584
      %2586 = vrot.lane.b32.xlu0 %v2519, 64
      %v2587 = vpop.permute.xlu0 %2586
      %2588 = vrot.lane.b32.xlu0 %v2520, 64
      %v2589 = vpop.permute.xlu0 %2588
      %2590 = vrot.lane.b32.xlu0 %v2521, 64
      %v2591 = vpop.permute.xlu0 %2590
      %2592 = vrot.lane.b32.xlu0 %v2522, 64
      %v2593 = vpop.permute.xlu0 %2592
      %2594 = vrot.lane.b32.xlu0 %v2523, 64
      %v2595 = vpop.permute.xlu0 %2594
      %2596 = vrot.lane.b32.xlu0 %v2524, 64
      %v2597 = vpop.permute.xlu0 %2596
      %2598 = vrot.lane.b32.xlu0 %v2525, 64
      %v2599 = vpop.permute.xlu0 %2598
      %2600 = vrot.lane.b32.xlu0 %v2526, 64
      %v2601 = vpop.permute.xlu0 %2600
      %2602 = vrot.lane.b32.xlu0 %v2527, 64
      %v2603 = vpop.permute.xlu0 %2602
      %2604 = vrot.lane.b32.xlu0 %v2528, 64
      %v2605 = vpop.permute.xlu0 %2604
      %2606 = vrot.lane.b32.xlu0 %v2529, 64
      %v2607 = vpop.permute.xlu0 %2606
      %2608 = vrot.lane.b32.xlu0 %v2530, 64
      %v2609 = vpop.permute.xlu0 %2608
      %2610 = vrot.lane.b32.xlu0 %v2531, 64
      %v2611 = vpop.permute.xlu0 %2610
      %2612 = vrot.lane.b32.xlu0 %v2532, 64
      %v2613 = vpop.permute.xlu0 %2612
      %2614 = vrot.lane.b32.xlu0 %v2533, 64
      %v2615 = vpop.permute.xlu0 %2614
      %2616 = vrot.lane.b32.xlu0 %v2534, 64
      %v2617 = vpop.permute.xlu0 %2616
      %2618 = vrot.lane.b32.xlu0 %v2535, 64
      %v2619 = vpop.permute.xlu0 %2618
      %2620 = vrot.lane.b32.xlu0 %v2536, 64
      %v2621 = vpop.permute.xlu0 %2620
      %2622 = vrot.lane.b32.xlu0 %v2537, 64
      %v2623 = vpop.permute.xlu0 %2622
      %2624 = vrot.lane.b32.xlu0 %v2538, 64
      %v2625 = vpop.permute.xlu0 %2624
      %2626 = vrot.lane.b32.xlu0 %v2539, 64
      %v2627 = vpop.permute.xlu0 %2626
      %2628 = vrot.lane.b32.xlu0 %v2540, 64
      %v2629 = vpop.permute.xlu0 %2628
      %2630 = vrot.lane.b32.xlu0 %v2541, 64
      %v2631 = vpop.permute.xlu0 %2630
      %2632 = vrot.lane.b32.xlu0 %v2542, 64
      %v2633 = vpop.permute.xlu0 %2632
      %2634 = vrot.lane.b32.xlu0 %v2543, 64
      %v2635 = vpop.permute.xlu0 %2634
      %2636 = vrot.lane.b32.xlu0 %v2544, 64
      %v2637 = vpop.permute.xlu0 %2636
      %2638 = vrot.lane.b32.xlu0 %v2545, 64
      %v2639 = vpop.permute.xlu0 %2638
      %2640 = vrot.lane.b32.xlu0 %v2546, 64
      %v2641 = vpop.permute.xlu0 %2640
      %2642 = vrot.lane.b32.xlu0 %v2547, 64
      %v2643 = vpop.permute.xlu0 %2642
      %v2676 = vmul.f32 %v2484, %v2581
      %v2677 = vmul.f32 %v2485, %v2583
      %v2678 = vmul.f32 %v2486, %v2585
      %v2679 = vmul.f32 %v2487, %v2587
      %v2680 = vmul.f32 %v2488, %v2589
      %v2681 = vmul.f32 %v2489, %v2591
      %v2682 = vmul.f32 %v2490, %v2593
      %v2683 = vmul.f32 %v2491, %v2595
      %v2684 = vmul.f32 %v2492, %v2597
      %v2685 = vmul.f32 %v2493, %v2599
      %v2686 = vmul.f32 %v2494, %v2601
      %v2687 = vmul.f32 %v2495, %v2603
      %v2688 = vmul.f32 %v2496, %v2605
      %v2689 = vmul.f32 %v2497, %v2607
      %v2690 = vmul.f32 %v2498, %v2609
      %v2691 = vmul.f32 %v2499, %v2611
      %v2692 = vmul.f32 %v2500, %v2613
      %v2693 = vmul.f32 %v2501, %v2615
      %v2694 = vmul.f32 %v2502, %v2617
      %v2695 = vmul.f32 %v2503, %v2619
      %v2696 = vmul.f32 %v2504, %v2621
      %v2697 = vmul.f32 %v2505, %v2623
      %v2698 = vmul.f32 %v2506, %v2625
      %v2699 = vmul.f32 %v2507, %v2627
      %v2700 = vmul.f32 %v2508, %v2629
      %v2701 = vmul.f32 %v2509, %v2631
      %v2702 = vmul.f32 %v2510, %v2633
      %v2703 = vmul.f32 %v2511, %v2635
      %v2704 = vmul.f32 %v2512, %v2637
      %v2705 = vmul.f32 %v2513, %v2639
      %v2706 = vmul.f32 %v2514, %v2641
      %v2707 = vmul.f32 %v2515, %v2643
      %2740 = vrot.lane.b32.xlu0 %v2676, 32
      %v2741 = vpop.permute.xlu0 %2740
      %2742 = vrot.lane.b32.xlu0 %v2677, 32
      %v2743 = vpop.permute.xlu0 %2742
      %2744 = vrot.lane.b32.xlu0 %v2678, 32
      %v2745 = vpop.permute.xlu0 %2744
      %2746 = vrot.lane.b32.xlu0 %v2679, 32
      %v2747 = vpop.permute.xlu0 %2746
      %2748 = vrot.lane.b32.xlu0 %v2680, 32
      %v2749 = vpop.permute.xlu0 %2748
      %2750 = vrot.lane.b32.xlu0 %v2681, 32
      %v2751 = vpop.permute.xlu0 %2750
      %2752 = vrot.lane.b32.xlu0 %v2682, 32
      %v2753 = vpop.permute.xlu0 %2752
      %2754 = vrot.lane.b32.xlu0 %v2683, 32
      %v2755 = vpop.permute.xlu0 %2754
      %2756 = vrot.lane.b32.xlu0 %v2684, 32
      %v2757 = vpop.permute.xlu0 %2756
      %2758 = vrot.lane.b32.xlu0 %v2685, 32
      %v2759 = vpop.permute.xlu0 %2758
      %2760 = vrot.lane.b32.xlu0 %v2686, 32
      %v2761 = vpop.permute.xlu0 %2760
      %2762 = vrot.lane.b32.xlu0 %v2687, 32
      %v2763 = vpop.permute.xlu0 %2762
      %2764 = vrot.lane.b32.xlu0 %v2688, 32
      %v2765 = vpop.permute.xlu0 %2764
      %2766 = vrot.lane.b32.xlu0 %v2689, 32
      %v2767 = vpop.permute.xlu0 %2766
      %2768 = vrot.lane.b32.xlu0 %v2690, 32
      %v2769 = vpop.permute.xlu0 %2768
      %2770 = vrot.lane.b32.xlu0 %v2691, 32
      %v2771 = vpop.permute.xlu0 %2770
      %2772 = vrot.lane.b32.xlu0 %v2692, 32
      %v2773 = vpop.permute.xlu0 %2772
      %2774 = vrot.lane.b32.xlu0 %v2693, 32
      %v2775 = vpop.permute.xlu0 %2774
      %2776 = vrot.lane.b32.xlu0 %v2694, 32
      %v2777 = vpop.permute.xlu0 %2776
      %2778 = vrot.lane.b32.xlu0 %v2695, 32
      %v2779 = vpop.permute.xlu0 %2778
      %2780 = vrot.lane.b32.xlu0 %v2696, 32
      %v2781 = vpop.permute.xlu0 %2780
      %2782 = vrot.lane.b32.xlu0 %v2697, 32
      %v2783 = vpop.permute.xlu0 %2782
      %2784 = vrot.lane.b32.xlu0 %v2698, 32
      %v2785 = vpop.permute.xlu0 %2784
      %2786 = vrot.lane.b32.xlu0 %v2699, 32
      %v2787 = vpop.permute.xlu0 %2786
      %2788 = vrot.lane.b32.xlu0 %v2700, 32
      %v2789 = vpop.permute.xlu0 %2788
      %2790 = vrot.lane.b32.xlu0 %v2701, 32
      %v2791 = vpop.permute.xlu0 %2790
      %2792 = vrot.lane.b32.xlu0 %v2702, 32
      %v2793 = vpop.permute.xlu0 %2792
      %2794 = vrot.lane.b32.xlu0 %v2703, 32
      %v2795 = vpop.permute.xlu0 %2794
      %2796 = vrot.lane.b32.xlu0 %v2704, 32
      %v2797 = vpop.permute.xlu0 %2796
      %2798 = vrot.lane.b32.xlu0 %v2705, 32
      %v2799 = vpop.permute.xlu0 %2798
      %2800 = vrot.lane.b32.xlu0 %v2706, 32
      %v2801 = vpop.permute.xlu0 %2800
      %2802 = vrot.lane.b32.xlu0 %v2707, 32
      %v2803 = vpop.permute.xlu0 %2802
      %vm2836 = vcmask 261120
      %v2837 = vsel %vm2836, %v2741, %v2032
      %v2838 = vsel %vm2836, %v2743, %v2033
      %v2839 = vsel %vm2836, %v2745, %v2034
      %v2840 = vsel %vm2836, %v2747, %v2035
      %v2841 = vsel %vm2836, %v2749, %v2036
      %v2842 = vsel %vm2836, %v2751, %v2037
      %v2843 = vsel %vm2836, %v2753, %v2038
      %v2844 = vsel %vm2836, %v2755, %v2039
      %v2845 = vsel %vm2836, %v2757, %v2040
      %v2846 = vsel %vm2836, %v2759, %v2041
      %v2847 = vsel %vm2836, %v2761, %v2042
      %v2848 = vsel %vm2836, %v2763, %v2043
      %v2849 = vsel %vm2836, %v2765, %v2044
      %v2850 = vsel %vm2836, %v2767, %v2045
      %v2851 = vsel %vm2836, %v2769, %v2046
      %v2852 = vsel %vm2836, %v2771, %v2047
      %v2853 = vsel %vm2836, %v2773, %v2048
      %v2854 = vsel %vm2836, %v2775, %v2049
      %v2855 = vsel %vm2836, %v2777, %v2050
      %v2856 = vsel %vm2836, %v2779, %v2051
      %v2857 = vsel %vm2836, %v2781, %v2052
      %v2858 = vsel %vm2836, %v2783, %v2053
      %v2859 = vsel %vm2836, %v2785, %v2054
      %v2860 = vsel %vm2836, %v2787, %v2055
      %v2861 = vsel %vm2836, %v2789, %v2056
      %v2862 = vsel %vm2836, %v2791, %v2057
      %v2863 = vsel %vm2836, %v2793, %v2058
      %v2864 = vsel %vm2836, %v2795, %v2059
      %v2865 = vsel %vm2836, %v2797, %v2060
      %v2866 = vsel %vm2836, %v2799, %v2061
      %v2867 = vsel %vm2836, %v2801, %v2062
      %v2868 = vsel %vm2836, %v2803, %v2063
      %vm2869 = vcmask 523264
      %v2870 = vsel %vm2869, %v2837, 0.0
      %v2871 = vsel %vm2869, %v2838, 0.0
      %v2872 = vsel %vm2869, %v2839, 0.0
      %v2873 = vsel %vm2869, %v2840, 0.0
      %v2874 = vsel %vm2869, %v2841, 0.0
      %v2875 = vsel %vm2869, %v2842, 0.0
      %v2876 = vsel %vm2869, %v2843, 0.0
      %v2877 = vsel %vm2869, %v2844, 0.0
      %v2878 = vsel %vm2869, %v2845, 0.0
      %v2879 = vsel %vm2869, %v2846, 0.0
      %v2880 = vsel %vm2869, %v2847, 0.0
      %v2881 = vsel %vm2869, %v2848, 0.0
      %v2882 = vsel %vm2869, %v2849, 0.0
      %v2883 = vsel %vm2869, %v2850, 0.0
      %v2884 = vsel %vm2869, %v2851, 0.0
      %v2885 = vsel %vm2869, %v2852, 0.0
      %v2886 = vsel %vm2869, %v2853, 0.0
      %v2887 = vsel %vm2869, %v2854, 0.0
      %v2888 = vsel %vm2869, %v2855, 0.0
      %v2889 = vsel %vm2869, %v2856, 0.0
      %v2890 = vsel %vm2869, %v2857, 0.0
      %v2891 = vsel %vm2869, %v2858, 0.0
      %v2892 = vsel %vm2869, %v2859, 0.0
      %v2893 = vsel %vm2869, %v2860, 0.0
      %v2894 = vsel %vm2869, %v2861, 0.0
      %v2895 = vsel %vm2869, %v2862, 0.0
      %v2896 = vsel %vm2869, %v2863, 0.0
      %v2897 = vsel %vm2869, %v2864, 0.0
      %v2898 = vsel %vm2869, %v2865, 0.0
      %v2899 = vsel %vm2869, %v2866, 0.0
      %v2900 = vsel %vm2869, %v2867, 0.0
      %v2901 = vsel %vm2869, %v2868, 0.0
      %2902 = vst [vmem:[%s346] sm:$0xff] %v2870
      %2903 = vst [vmem:[%s346 + $0x8] sm:$0xff] %v2871
      %2904 = vst [vmem:[%s346 + $0x10] sm:$0xff] %v2872
      %2905 = vst [vmem:[%s346 + $0x18] sm:$0xff] %v2873
      %2906 = vst [vmem:[%s346 + $0x20] sm:$0xff] %v2874
      %2907 = vst [vmem:[%s346 + $0x28] sm:$0xff] %v2875
      %2908 = vst [vmem:[%s346 + $0x30] sm:$0xff] %v2876
      %2909 = vst [vmem:[%s346 + $0x38] sm:$0xff] %v2877
      %2910 = vst [vmem:[%s346 + $0x40] sm:$0xff] %v2878
      %2911 = vst [vmem:[%s346 + $0x48] sm:$0xff] %v2879
      %2912 = vst [vmem:[%s346 + $0x50] sm:$0xff] %v2880
      %2913 = vst [vmem:[%s346 + $0x58] sm:$0xff] %v2881
      %2914 = vst [vmem:[%s346 + $0x60] sm:$0xff] %v2882
      %2915 = vst [vmem:[%s346 + $0x68] sm:$0xff] %v2883
      %2916 = vst [vmem:[%s346 + $0x70] sm:$0xff] %v2884
      %2917 = vst [vmem:[%s346 + $0x78] sm:$0xff] %v2885
      %2918 = vst [vmem:[%s346 + $0x80] sm:$0xff] %v2886
      %2919 = vst [vmem:[%s346 + $0x88] sm:$0xff] %v2887
      %2920 = vst [vmem:[%s346 + $0x90] sm:$0xff] %v2888
      %2921 = vst [vmem:[%s346 + $0x98] sm:$0xff] %v2889
      %2922 = vst [vmem:[%s346 + $0xa0] sm:$0xff] %v2890
      %2923 = vst [vmem:[%s346 + $0xa8] sm:$0xff] %v2891
      %2924 = vst [vmem:[%s346 + $0xb0] sm:$0xff] %v2892
      %2925 = vst [vmem:[%s346 + $0xb8] sm:$0xff] %v2893
      %2926 = vst [vmem:[%s346 + $0xc0] sm:$0xff] %v2894
      %2927 = vst [vmem:[%s346 + $0xc8] sm:$0xff] %v2895
      %2928 = vst [vmem:[%s346 + $0xd0] sm:$0xff] %v2896
      %2929 = vst [vmem:[%s346 + $0xd8] sm:$0xff] %v2897
      %2930 = vst [vmem:[%s346 + $0xe0] sm:$0xff] %v2898
      %2931 = vst [vmem:[%s346 + $0xe8] sm:$0xff] %v2899
      %2932 = vst [vmem:[%s346 + $0xf0] sm:$0xff] %v2900
      %2933 = vst [vmem:[%s346 + $0xf8] sm:$0xff] %v2901
      %v2934 = vmax.f32 %v2676, 0.0
      %v2935 = vmax.f32 %v2677, 0.0
      %v2936 = vmax.f32 %v2678, 0.0
      %v2937 = vmax.f32 %v2679, 0.0
      %v2938 = vmax.f32 %v2680, 0.0
      %v2939 = vmax.f32 %v2681, 0.0
      %v2940 = vmax.f32 %v2682, 0.0
      %v2941 = vmax.f32 %v2683, 0.0
      %v2942 = vmax.f32 %v2684, 0.0
      %v2943 = vmax.f32 %v2685, 0.0
      %v2944 = vmax.f32 %v2686, 0.0
      %v2945 = vmax.f32 %v2687, 0.0
      %v2946 = vmax.f32 %v2688, 0.0
      %v2947 = vmax.f32 %v2689, 0.0
      %v2948 = vmax.f32 %v2690, 0.0
      %v2949 = vmax.f32 %v2691, 0.0
      %v2950 = vmax.f32 %v2692, 0.0
      %v2951 = vmax.f32 %v2693, 0.0
      %v2952 = vmax.f32 %v2694, 0.0
      %v2953 = vmax.f32 %v2695, 0.0
      %v2954 = vmax.f32 %v2696, 0.0
      %v2955 = vmax.f32 %v2697, 0.0
      %v2956 = vmax.f32 %v2698, 0.0
      %v2957 = vmax.f32 %v2699, 0.0
      %v2958 = vmax.f32 %v2700, 0.0
      %v2959 = vmax.f32 %v2701, 0.0
      %v2960 = vmax.f32 %v2702, 0.0
      %v2961 = vmax.f32 %v2703, 0.0
      %v2962 = vmax.f32 %v2704, 0.0
      %v2963 = vmax.f32 %v2705, 0.0
      %v2964 = vmax.f32 %v2706, 0.0
      %v2965 = vmax.f32 %v2707, 0.0
      %v2966 = vld [vmem:[%s5] sm:$0xff]
      %v2967 = vld [vmem:[%s5 + $0x8] sm:$0xff]
      %v2968 = vld [vmem:[%s5 + $0x10] sm:$0xff]
      %v2969 = vld [vmem:[%s5 + $0x18] sm:$0xff]
      %v2970 = vld [vmem:[%s6] sm:$0x1]
      %v2972 = vlaneseq
      %v2973 = vshrl.u32 %v2972, 7
      %v2974 = vsub.s32 0, %v2973
      %v2975 = vrot.slane %v2970, %v2974
      %3009 = vrot.lane.b32.xlu0 %v2934, 32
      %v3010 = vpop.permute.xlu0 %3009
      %3011 = vrot.lane.b32.xlu0 %v2935, 32
      %v3012 = vpop.permute.xlu0 %3011
      %3013 = vrot.lane.b32.xlu0 %v2936, 32
      %v3014 = vpop.permute.xlu0 %3013
      %3015 = vrot.lane.b32.xlu0 %v2937, 32
      %v3016 = vpop.permute.xlu0 %3015
      %3017 = vrot.lane.b32.xlu0 %v2938, 32
      %v3018 = vpop.permute.xlu0 %3017
      %3019 = vrot.lane.b32.xlu0 %v2939, 32
      %v3020 = vpop.permute.xlu0 %3019
      %3021 = vrot.lane.b32.xlu0 %v2940, 32
      %v3022 = vpop.permute.xlu0 %3021
      %3023 = vrot.lane.b32.xlu0 %v2941, 32
      %v3024 = vpop.permute.xlu0 %3023
      %3025 = vrot.lane.b32.xlu0 %v2942, 32
      %v3026 = vpop.permute.xlu0 %3025
      %3027 = vrot.lane.b32.xlu0 %v2943, 32
      %v3028 = vpop.permute.xlu0 %3027
      %3029 = vrot.lane.b32.xlu0 %v2944, 32
      %v3030 = vpop.permute.xlu0 %3029
      %3031 = vrot.lane.b32.xlu0 %v2945, 32
      %v3032 = vpop.permute.xlu0 %3031
      %3033 = vrot.lane.b32.xlu0 %v2946, 32
      %v3034 = vpop.permute.xlu0 %3033
      %3035 = vrot.lane.b32.xlu0 %v2947, 32
      %v3036 = vpop.permute.xlu0 %3035
      %3037 = vrot.lane.b32.xlu0 %v2948, 32
      %v3038 = vpop.permute.xlu0 %3037
      %3039 = vrot.lane.b32.xlu0 %v2949, 32
      %v3040 = vpop.permute.xlu0 %3039
      %3041 = vrot.lane.b32.xlu0 %v2950, 32
      %v3042 = vpop.permute.xlu0 %3041
      %3043 = vrot.lane.b32.xlu0 %v2951, 32
      %v3044 = vpop.permute.xlu0 %3043
      %3045 = vrot.lane.b32.xlu0 %v2952, 32
      %v3046 = vpop.permute.xlu0 %3045
      %3047 = vrot.lane.b32.xlu0 %v2953, 32
      %v3048 = vpop.permute.xlu0 %3047
      %3049 = vrot.lane.b32.xlu0 %v2954, 32
      %v3050 = vpop.permute.xlu0 %3049
      %3051 = vrot.lane.b32.xlu0 %v2955, 32
      %v3052 = vpop.permute.xlu0 %3051
      %3053 = vrot.lane.b32.xlu0 %v2956, 32
      %v3054 = vpop.permute.xlu0 %3053
      %3055 = vrot.lane.b32.xlu0 %v2957, 32
      %v3056 = vpop.permute.xlu0 %3055
      %3057 = vrot.lane.b32.xlu0 %v2958, 32
      %v3058 = vpop.permute.xlu0 %3057
      %3059 = vrot.lane.b32.xlu0 %v2959, 32
      %v3060 = vpop.permute.xlu0 %3059
      %3061 = vrot.lane.b32.xlu0 %v2960, 32
      %v3062 = vpop.permute.xlu0 %3061
      %3063 = vrot.lane.b32.xlu0 %v2961, 32
      %v3064 = vpop.permute.xlu0 %3063
      %3065 = vrot.lane.b32.xlu0 %v2962, 32
      %v3066 = vpop.permute.xlu0 %3065
      %3067 = vrot.lane.b32.xlu0 %v2963, 32
      %v3068 = vpop.permute.xlu0 %3067
      %3069 = vrot.lane.b32.xlu0 %v2964, 32
      %v3070 = vpop.permute.xlu0 %3069
      %3071 = vrot.lane.b32.xlu0 %v2965, 32
      %v3072 = vpop.permute.xlu0 %3071
      %v3073 = vsel %vm2836, %v3010, 0
      %v3075 = vsel %vm2836, %v3012, 0
      %v3077 = vsel %vm2836, %v3014, 0
      %v3079 = vsel %vm2836, %v3016, 0
      %v3081 = vsel %vm2836, %v3018, 0
      %v3083 = vsel %vm2836, %v3020, 0
      %v3085 = vsel %vm2836, %v3022, 0
      %v3087 = vsel %vm2836, %v3024, 0
      %v3089 = vsel %vm2836, %v3026, 0
      %v3091 = vsel %vm2836, %v3028, 0
      %v3093 = vsel %vm2836, %v3030, 0
      %v3095 = vsel %vm2836, %v3032, 0
      %v3097 = vsel %vm2836, %v3034, 0
      %v3099 = vsel %vm2836, %v3036, 0
      %v3101 = vsel %vm2836, %v3038, 0
      %v3103 = vsel %vm2836, %v3040, 0
      %v3105 = vsel %vm2836, %v3042, 0
      %v3107 = vsel %vm2836, %v3044, 0
      %v3109 = vsel %vm2836, %v3046, 0
      %v3111 = vsel %vm2836, %v3048, 0
      %v3113 = vsel %vm2836, %v3050, 0
      %v3115 = vsel %vm2836, %v3052, 0
      %v3117 = vsel %vm2836, %v3054, 0
      %v3119 = vsel %vm2836, %v3056, 0
      %v3121 = vsel %vm2836, %v3058, 0
      %v3123 = vsel %vm2836, %v3060, 0
      %v3125 = vsel %vm2836, %v3062, 0
      %v3127 = vsel %vm2836, %v3064, 0
      %v3129 = vsel %vm2836, %v3066, 0
      %v3131 = vsel %vm2836, %v3068, 0
      %v3133 = vsel %vm2836, %v3070, 0
      %v3135 = vsel %vm2836, %v3072, 0
      %3137 = vmatprep.subr.mxu0 0.0
      %3138 = vmatpush1.msra.mxu0 %v2966
      %3139 = vmatprep.subr.mxu0 0.0
      %3140 = vmatpush1.msra.mxu0 %v2967
      %3141 = vmatprep.subr.mxu0 0.0
      %3142 = vmatpush1.msra.mxu0 %v2968
      %3143 = vmatprep.subr.mxu0 0.0
      %3144 = vmatpush1.msra.mxu0 %v2969
      %3145 = vmatprep.subr.mxu0 0.0
      %3146 = vmatpush1.msra.mxu0 0.0
      %3147 = vmatprep.subr.mxu0 0.0
      %3148 = vmatpush1.msra.mxu0 0.0
      %3149 = vmatprep.subr.mxu0 0.0
      %3150 = vmatpush1.msra.mxu0 0.0
      %3151 = vmatprep.subr.mxu0 0.0
      %3152 = vmatpush1.msra.mxu0 0.0
      %3153 = vmatprep.subr.mxu0 0.0
      %3154 = vmatpush1.msra.mxu0 0.0
      %3155 = vmatprep.subr.mxu0 0.0
      %3156 = vmatpush1.msra.mxu0 0.0
      %3157 = vmatprep.subr.mxu0 0.0
      %3158 = vmatpush1.msra.mxu0 0.0
      %3159 = vmatprep.subr.mxu0 0.0
      %3160 = vmatpush1.msra.mxu0 0.0
      %3161 = vmatprep.subr.mxu0 0.0
      %3162 = vmatpush1.msra.mxu0 0.0
      %3163 = vmatprep.subr.mxu0 0.0
      %3164 = vmatpush1.msra.mxu0 0.0
      %3165 = vmatprep.subr.mxu0 0.0
      %3166 = vmatpush1.msra.mxu0 0.0
      %3167 = vmatprep.subr.mxu0 0.0
      %3168 = vmatpush1.msra.mxu0 0.0
      %3169 = vmatprep.subr.mxu0 0.0
      %3170 = vmatpush1.msra.mxu0 0.0
      %3171 = vmatprep.subr.mxu0 0.0
      %3172 = vmatpush1.msra.mxu0 0.0
      %3173 = vmatprep.subr.mxu0 0.0
      %3174 = vmatpush1.msra.mxu0 0.0
      %3175 = vmatprep.subr.mxu0 0.0
      %3176 = vmatpush1.msra.mxu0 0.0
      %3177 = vmatprep.subr.mxu0 0.0
      %3178 = vmatpush1.msra.mxu0 0.0
      %3179 = vmatprep.subr.mxu0 0.0
      %3180 = vmatpush1.msra.mxu0 0.0
      %3181 = vmatprep.subr.mxu0 0.0
      %3182 = vmatpush1.msra.mxu0 0.0
      %3183 = vmatprep.subr.mxu0 0.0
      %3184 = vmatpush1.msra.mxu0 0.0
      %3185 = vmatprep.subr.mxu0 0.0
      %3186 = vmatpush1.msra.mxu0 0.0
      %3187 = vmatprep.subr.mxu0 0.0
      %3188 = vmatpush1.msra.mxu0 0.0
      %3189 = vmatprep.subr.mxu0 0.0
      %3190 = vmatpush1.msra.mxu0 0.0
      %3191 = vmatprep.subr.mxu0 0.0
      %3192 = vmatpush1.msra.mxu0 0.0
      %3193 = vmatprep.subr.mxu0 0.0
      %3194 = vmatpush1.msra.mxu0 0.0
      %3195 = vmatprep.subr.mxu0 0.0
      %3196 = vmatpush1.msra.mxu0 0.0
      %3197 = vmatprep.subr.mxu0 0.0
      %3198 = vmatpush1.msra.mxu0 0.0
      %3199 = vmatprep.subr.mxu0 0.0
      %3200 = vmatpush1.msra.mxu0 0.0
      %3201 = vmatprep.mubr.f32.mxu0 0.0
      %3202 = vmatmul.mubr.f32.gmra.mrb[0].mxu0 %v3073
      %v3203 = vpop.f32.mrb[0].mxu0
      %v3204 = vadd.f32 %v2975, %v3203
      %v3205 = vpop.f32.mrb[0].mxu0
      %3206 = vmatprep.mubr.f32.mxu0 0.0
      %3207 = vmatmul.mubr.f32.gmra.mrb[0].mxu0 %v3075
      %v3208 = vpop.f32.mrb[0].mxu0
      %v3209 = vadd.f32 %v2975, %v3208
      %v3210 = vpop.f32.mrb[0].mxu0
      %3211 = vmatprep.mubr.f32.mxu0 0.0
      %3212 = vmatmul.mubr.f32.gmra.mrb[0].mxu0 %v3077
      %v3213 = vpop.f32.mrb[0].mxu0
      %v3214 = vadd.f32 %v2975, %v3213
      %v3215 = vpop.f32.mrb[0].mxu0
      %3216 = vmatprep.mubr.f32.mxu0 0.0
      %3217 = vmatmul.mubr.f32.gmra.mrb[0].mxu0 %v3079
      %v3218 = vpop.f32.mrb[0].mxu0
      %v3219 = vadd.f32 %v2975, %v3218
      %v3220 = vpop.f32.mrb[0].mxu0
      %3221 = vmatprep.mubr.f32.mxu0 0.0
      %3222 = vmatmul.mubr.f32.gmra.mrb[0].mxu0 %v3081
      %v3223 = vpop.f32.mrb[0].mxu0
      %v3224 = vadd.f32 %v2975, %v3223
      %v3225 = vpop.f32.mrb[0].mxu0
      %3226 = vmatprep.mubr.f32.mxu0 0.0
      %3227 = vmatmul.mubr.f32.gmra.mrb[0].mxu0 %v3083
      %v3228 = vpop.f32.mrb[0].mxu0
      %v3229 = vadd.f32 %v2975, %v3228
      %v3230 = vpop.f32.mrb[0].mxu0
      %3231 = vmatprep.mubr.f32.mxu0 0.0
      %3232 = vmatmul.mubr.f32.gmra.mrb[0].mxu0 %v3085
      %v3233 = vpop.f32.mrb[0].mxu0
      %v3234 = vadd.f32 %v2975, %v3233
      %v3235 = vpop.f32.mrb[0].mxu0
      %3236 = vmatprep.mubr.f32.mxu0 0.0
      %3237 = vmatmul.mubr.f32.gmra.mrb[0].mxu0 %v3087
      %v3238 = vpop.f32.mrb[0].mxu0
      %v3239 = vadd.f32 %v2975, %v3238
      %v3240 = vpop.f32.mrb[0].mxu0
      %3241 = vmatprep.mubr.f32.mxu0 0.0
      %3242 = vmatmul.mubr.f32.gmra.mrb[0].mxu0 %v3089
      %v3243 = vpop.f32.mrb[0].mxu0
      %v3244 = vadd.f32 %v2975, %v3243
      %v3245 = vpop.f32.mrb[0].mxu0
      %3246 = vmatprep.mubr.f32.mxu0 0.0
      %3247 = vmatmul.mubr.f32.gmra.mrb[0].mxu0 %v3091
      %v3248 = vpop.f32.mrb[0].mxu0
      %v3249 = vadd.f32 %v2975, %v3248
      %v3250 = vpop.f32.mrb[0].mxu0
      %3251 = vmatprep.mubr.f32.mxu0 0.0
      %3252 = vmatmul.mubr.f32.gmra.mrb[0].mxu0 %v3093
      %v3253 = vpop.f32.mrb[0].mxu0
      %v3254 = vadd.f32 %v2975, %v3253
      %v3255 = vpop.f32.mrb[0].mxu0
      %3256 = vmatprep.mubr.f32.mxu0 0.0
      %3257 = vmatmul.mubr.f32.gmra.mrb[0].mxu0 %v3095
      %v3258 = vpop.f32.mrb[0].mxu0
      %v3259 = vadd.f32 %v2975, %v3258
      %v3260 = vpop.f32.mrb[0].mxu0
      %3261 = vmatprep.mubr.f32.mxu0 0.0
      %3262 = vmatmul.mubr.f32.gmra.mrb[0].mxu0 %v3097
      %v3263 = vpop.f32.mrb[0].mxu0
      %v3264 = vadd.f32 %v2975, %v3263
      %v3265 = vpop.f32.mrb[0].mxu0
      %3266 = vmatprep.mubr.f32.mxu0 0.0
      %3267 = vmatmul.mubr.f32.gmra.mrb[0].mxu0 %v3099
      %v3268 = vpop.f32.mrb[0].mxu0
      %v3269 = vadd.f32 %v2975, %v3268
      %v3270 = vpop.f32.mrb[0].mxu0
      %3271 = vmatprep.mubr.f32.mxu0 0.0
      %3272 = vmatmul.mubr.f32.gmra.mrb[0].mxu0 %v3101
      %v3273 = vpop.f32.mrb[0].mxu0
      %v3274 = vadd.f32 %v2975, %v3273
      %v3275 = vpop.f32.mrb[0].mxu0
      %3276 = vmatprep.mubr.f32.mxu0 0.0
      %3277 = vmatmul.mubr.f32.gmra.mrb[0].mxu0 %v3103
      %v3278 = vpop.f32.mrb[0].mxu0
      %v3279 = vadd.f32 %v2975, %v3278
      %v3280 = vpop.f32.mrb[0].mxu0
      %3281 = vmatprep.mubr.f32.mxu0 0.0
      %3282 = vmatmul.mubr.f32.gmra.mrb[0].mxu0 %v3105
      %v3283 = vpop.f32.mrb[0].mxu0
      %v3284 = vadd.f32 %v2975, %v3283
      %v3285 = vpop.f32.mrb[0].mxu0
      %3286 = vmatprep.mubr.f32.mxu0 0.0
      %3287 = vmatmul.mubr.f32.gmra.mrb[0].mxu0 %v3107
      %v3288 = vpop.f32.mrb[0].mxu0
      %v3289 = vadd.f32 %v2975, %v3288
      %v3290 = vpop.f32.mrb[0].mxu0
      %3291 = vmatprep.mubr.f32.mxu0 0.0
      %3292 = vmatmul.mubr.f32.gmra.mrb[0].mxu0 %v3109
      %v3293 = vpop.f32.mrb[0].mxu0
      %v3294 = vadd.f32 %v2975, %v3293
      %v3295 = vpop.f32.mrb[0].mxu0
      %3296 = vmatprep.mubr.f32.mxu0 0.0
      %3297 = vmatmul.mubr.f32.gmra.mrb[0].mxu0 %v3111
      %v3298 = vpop.f32.mrb[0].mxu0
      %v3299 = vadd.f32 %v2975, %v3298
      %v3300 = vpop.f32.mrb[0].mxu0
      %3301 = vmatprep.mubr.f32.mxu0 0.0
      %3302 = vmatmul.mubr.f32.gmra.mrb[0].mxu0 %v3113
      %v3303 = vpop.f32.mrb[0].mxu0
      %v3304 = vadd.f32 %v2975, %v3303
      %v3305 = vpop.f32.mrb[0].mxu0
      %3306 = vmatprep.mubr.f32.mxu0 0.0
      %3307 = vmatmul.mubr.f32.gmra.mrb[0].mxu0 %v3115
      %v3308 = vpop.f32.mrb[0].mxu0
      %v3309 = vadd.f32 %v2975, %v3308
      %v3310 = vpop.f32.mrb[0].mxu0
      %3311 = vmatprep.mubr.f32.mxu0 0.0
      %3312 = vmatmul.mubr.f32.gmra.mrb[0].mxu0 %v3117
      %v3313 = vpop.f32.mrb[0].mxu0
      %v3314 = vadd.f32 %v2975, %v3313
      %v3315 = vpop.f32.mrb[0].mxu0
      %3316 = vmatprep.mubr.f32.mxu0 0.0
      %3317 = vmatmul.mubr.f32.gmra.mrb[0].mxu0 %v3119
      %v3318 = vpop.f32.mrb[0].mxu0
      %v3319 = vadd.f32 %v2975, %v3318
      %v3320 = vpop.f32.mrb[0].mxu0
      %3321 = vmatprep.mubr.f32.mxu0 0.0
      %3322 = vmatmul.mubr.f32.gmra.mrb[0].mxu0 %v3121
      %v3323 = vpop.f32.mrb[0].mxu0
      %v3324 = vadd.f32 %v2975, %v3323
      %v3325 = vpop.f32.mrb[0].mxu0
      %3326 = vmatprep.mubr.f32.mxu0 0.0
      %3327 = vmatmul.mubr.f32.gmra.mrb[0].mxu0 %v3123
      %v3328 = vpop.f32.mrb[0].mxu0
      %v3329 = vadd.f32 %v2975, %v3328
      %v3330 = vpop.f32.mrb[0].mxu0
      %3331 = vmatprep.mubr.f32.mxu0 0.0
      %3332 = vmatmul.mubr.f32.gmra.mrb[0].mxu0 %v3125
      %v3333 = vpop.f32.mrb[0].mxu0
      %v3334 = vadd.f32 %v2975, %v3333
      %v3335 = vpop.f32.mrb[0].mxu0
      %3336 = vmatprep.mubr.f32.mxu0 0.0
      %3337 = vmatmul.mubr.f32.gmra.mrb[0].mxu0 %v3127
      %v3338 = vpop.f32.mrb[0].mxu0
      %v3339 = vadd.f32 %v2975, %v3338
      %v3340 = vpop.f32.mrb[0].mxu0
      %3341 = vmatprep.mubr.f32.mxu0 0.0
      %3342 = vmatmul.mubr.f32.gmra.mrb[0].mxu0 %v3129
      %v3343 = vpop.f32.mrb[0].mxu0
      %v3344 = vadd.f32 %v2975, %v3343
      %v3345 = vpop.f32.mrb[0].mxu0
      %3346 = vmatprep.mubr.f32.mxu0 0.0
      %3347 = vmatmul.mubr.f32.gmra.mrb[0].mxu0 %v3131
      %v3348 = vpop.f32.mrb[0].mxu0
      %v3349 = vadd.f32 %v2975, %v3348
      %v3350 = vpop.f32.mrb[0].mxu0
      %3351 = vmatprep.mubr.f32.mxu0 0.0
      %3352 = vmatmul.mubr.f32.gmra.mrb[0].mxu0 %v3133
      %v3353 = vpop.f32.mrb[0].mxu0
      %v3354 = vadd.f32 %v2975, %v3353
      %v3355 = vpop.f32.mrb[0].mxu0
      %3356 = vmatprep.mubr.f32.mxu0 0.0
      %3357 = vmatmul.mubr.f32.gmra.mrb[0].mxu0 %v3135
      %v3358 = vpop.f32.mrb[0].mxu0
      %v3359 = vadd.f32 %v2975, %v3358
      %v3360 = vpop.f32.mrb[0].mxu0
      %3361 = vdwg.mxu0
      %3362 = vst [vmem:[%s340] sm:$0xff] %v3204
      %3363 = vst [vmem:[%s340 + $0x8] sm:$0xff] %v3209
      %3364 = vst [vmem:[%s340 + $0x10] sm:$0xff] %v3214
      %3365 = vst [vmem:[%s340 + $0x18] sm:$0xff] %v3219
      %3366 = vst [vmem:[%s340 + $0x20] sm:$0xff] %v3224
      %3367 = vst [vmem:[%s340 + $0x28] sm:$0xff] %v3229
      %3368 = vst [vmem:[%s340 + $0x30] sm:$0xff] %v3234
      %3369 = vst [vmem:[%s340 + $0x38] sm:$0xff] %v3239
      %3370 = vst [vmem:[%s340 + $0x40] sm:$0xff] %v3244
      %3371 = vst [vmem:[%s340 + $0x48] sm:$0xff] %v3249
      %3372 = vst [vmem:[%s340 + $0x50] sm:$0xff] %v3254
      %3373 = vst [vmem:[%s340 + $0x58] sm:$0xff] %v3259
      %3374 = vst [vmem:[%s340 + $0x60] sm:$0xff] %v3264
      %3375 = vst [vmem:[%s340 + $0x68] sm:$0xff] %v3269
      %3376 = vst [vmem:[%s340 + $0x70] sm:$0xff] %v3274
      %3377 = vst [vmem:[%s340 + $0x78] sm:$0xff] %v3279
      %3378 = vst [vmem:[%s340 + $0x80] sm:$0xff] %v3284
      %3379 = vst [vmem:[%s340 + $0x88] sm:$0xff] %v3289
      %3380 = vst [vmem:[%s340 + $0x90] sm:$0xff] %v3294
      %3381 = vst [vmem:[%s340 + $0x98] sm:$0xff] %v3299
      %3382 = vst [vmem:[%s340 + $0xa0] sm:$0xff] %v3304
      %3383 = vst [vmem:[%s340 + $0xa8] sm:$0xff] %v3309
      %3384 = vst [vmem:[%s340 + $0xb0] sm:$0xff] %v3314
      %3385 = vst [vmem:[%s340 + $0xb8] sm:$0xff] %v3319
      %3386 = vst [vmem:[%s340 + $0xc0] sm:$0xff] %v3324
      %3387 = vst [vmem:[%s340 + $0xc8] sm:$0xff] %v3329
      %3388 = vst [vmem:[%s340 + $0xd0] sm:$0xff] %v3334
      %3389 = vst [vmem:[%s340 + $0xd8] sm:$0xff] %v3339
      %3390 = vst [vmem:[%s340 + $0xe0] sm:$0xff] %v3344
      %3391 = vst [vmem:[%s340 + $0xe8] sm:$0xff] %v3349
      %3392 = vst [vmem:[%s340 + $0xf0] sm:$0xff] %v3354
      %3393 = vst [vmem:[%s340 + $0xf8] sm:$0xff] %v3359
      %s3394 = smul.u32 32, %s20
      %p3395 = scmp.lt.s32.totalorder %s3394, 95
      %s3396 = scalar_select %p3395, %s3394, 95
      %s3397 = smul.addr %s3396, 8
      %s3398 = scalar_lea.vmem %s7, %s3397
      %s3399 = smul.u32 32, %s20
      %p3400 = scmp.lt.s32.totalorder %s3399, 95
      %s3401 = scalar_select %p3400, %s3399, 95
      %s3402 = smul.addr %s3401, 8
      %s3403 = scalar_lea.vmem %s8, %s3402
      // Predicated region
      $region49: #{recurrent_gconv_lstm_forward.7} parent=47 // pred_check
        %p3404 = pneg %p195
      $region50: #{recurrent_gconv_lstm_forward.7} parent=47 // pred_check_branch
        %3406 = sbr.rel (%p3404) target = $region52
      $region51: #{recurrent_gconv_lstm_forward.7} parent=47 // pred_region
        %s3407 = smul.u32 32, %s20
      $region52: #{recurrent_gconv_lstm_forward.7} parent=47 // pred_fallthru
        _
      // Predicated region
      $region53: #{recurrent_gconv_lstm_forward.7} parent=47 // pred_check
        %p3408 = pneg %p221
      $region54: #{recurrent_gconv_lstm_forward.7} parent=47 // pred_check_branch
        %3410 = sbr.rel (%p3408) target = $region56
      $region55: #{recurrent_gconv_lstm_forward.7} parent=47 // pred_region
        %s3411 = smul.u32 32, %s20
      $region56: #{recurrent_gconv_lstm_forward.7} parent=47 // pred_fallthru
        _
    $region48: #{recurrent_gconv_lstm_forward.7} parent=5 // pred_fallthru
      _
    %p3412 = scmp.le.s32.totalorder 2, %s15
    // Predicated region
    $region57: #{recurrent_gconv_lstm_forward.7} parent=5 // pred_check
      %p3413 = pneg %p3412
    $region58: #{recurrent_gconv_lstm_forward.7} parent=5 // pred_check_branch
      %3415 = sbr.rel (%p3413) target = $region60
    $region59: #{recurrent_gconv_lstm_forward.7} parent=5 // pred_region
      %s3416 = ssub.s32 %s15, 2
      // Predicated region
      $region61: #{recurrent_gconv_lstm_forward.7} parent=59 // pred_check
        %p3417 = pneg %p201
      $region62: #{recurrent_gconv_lstm_forward.7} parent=59 // pred_check_branch
        %3419 = sbr.rel (%p3417) target = $region64
      $region63: #{recurrent_gconv_lstm_forward.7} parent=59 // pred_region
        %s3420 = smul.u32 32, %s21
        %p3421 = scmp.lt.s32.totalorder %s3420, 95
        %s3422 = scalar_select %p3421, %s3420, 95
        %s3423 = smul.addr %s3422, 8
        %s3424 = scalar_lea.vmem %s7, %s3423
      $region64: #{recurrent_gconv_lstm_forward.7} parent=59 // pred_fallthru
        _
      // Predicated region
      $region65: #{recurrent_gconv_lstm_forward.7} parent=59 // pred_check
        %p3425 = pneg %p227
      $region66: #{recurrent_gconv_lstm_forward.7} parent=59 // pred_check_branch
        %3427 = sbr.rel (%p3425) target = $region68
      $region67: #{recurrent_gconv_lstm_forward.7} parent=59 // pred_region
        %s3428 = smul.u32 32, %s21
        %p3429 = scmp.lt.s32.totalorder %s3428, 95
        %s3430 = scalar_select %p3429, %s3428, 95
        %s3431 = smul.addr %s3430, 8
        %s3432 = scalar_lea.vmem %s8, %s3431
      $region68: #{recurrent_gconv_lstm_forward.7} parent=59 // pred_fallthru
        _
    $region60: #{recurrent_gconv_lstm_forward.7} parent=5 // pred_fallthru
      _
  $region6: #{recurrent_gconv_lstm_forward.7} parent=0 // loop_footer
    %s19 = sadd.s32 1, %s15
  $region7: #{recurrent_gconv_lstm_forward.7} parent=0 // loop_footer_branch
    %14 = sbr.rel target = $region3
  $region8: #{recurrent_gconv_lstm_forward.7} parent=0 // loop_exit
    _

</llo_original>
